<compile_context>
chip_gen: v6e
topology: v6e:2x2x1
jax: 0.10.0
libtpu: 0.0.40
codegen_flags: <defaults>
</compile_context>

<pallas_src>
from functools import partial

import numpy as np
import jax
import jax.numpy as jnp
from jax import lax
from jax.experimental import pallas as pl
from jax.experimental.pallas import tpu as pltpu


def _vmem_limit_bytes():
    """Generation-aware VMEM budget (~half of physical capacity)."""
    cap = 128 * 1024 * 1024
    try:
        cap = int(getattr(pltpu.get_tpu_info(), "vmem_capacity_bytes", cap))
    except Exception:
        pass
    return max(32 * 1024 * 1024, min(cap // 2, 64 * 1024 * 1024))


def _row_pitch(w):
    """Row pitch of the flattened width-padded layout (>= w + 2).

    Rounded up to a sublane multiple so the kh-shifted conv2 windows are
    tile-aligned, unless that would add more than ~25% wasted columns.
    """
    wp = w + 2
    wr = ((wp + 7) // 8) * 8
    return wr if 4 * wr <= 5 * wp else wp


# ----------------------------------------------------------------------------
# stride=1 kernel: whole Bottleneck for one image, identity residual.
# Activations are flattened as (rows = H * Wr, channels); Wr is the padded row
# pitch so every 3x3 tap is a contiguous static window of the scratch buffer.
# ----------------------------------------------------------------------------
def _bottleneck_s1_kernel(x_ref, mask_ref, w1_ref, b1_ref, w2p_ref, b2_ref,
                          w3_ref, b3_ref, o_ref, p_ref, *, Wr):
    f32 = jnp.float32
    M = x_ref.shape[1]
    width = b1_ref.shape[1]

    x = x_ref[0]                                           # (M, Cin) bf16

    # ---- conv1 (1x1) + folded bn1 + relu; mask zeroes the W-pad columns ----
    h1 = jnp.dot(x, w1_ref[...], preferred_element_type=f32) + b1_ref[...]
    h1 = jnp.maximum(h1, 0.0) * mask_ref[...]
    h1b = h1.astype(jnp.bfloat16)

    # ---- build the packed-K conv2 operand in VMEM ----
    # P[t, kw*width:(kw+1)*width] == h1_padded[t - Wr + kw - 1]   (zero outside)
    zeros = jnp.zeros((Wr + 1, 3 * width), jnp.bfloat16)
    p_ref[0:Wr + 1, :] = zeros                              # top H-pad guard
    p_ref[M + Wr - 1:M + 2 * Wr, :] = zeros                 # bottom H-pad guard
    p_ref[Wr + 1:Wr + 1 + M, 0:width] = h1b                 # kw = 0 tap column
    p_ref[Wr:Wr + M, width:2 * width] = h1b                 # kw = 1 tap column
    p_ref[Wr - 1:Wr - 1 + M, 2 * width:3 * width] = h1b     # kw = 2 tap column

    # ---- conv2 (3x3, pad 1) + folded bn2 + relu: 3 MXU matmuls, K = 3*width ----
    acc = jnp.dot(p_ref[0:M, :], w2p_ref[0], preferred_element_type=f32)
    acc = acc + jnp.dot(p_ref[Wr:Wr + M, :], w2p_ref[1], preferred_element_type=f32)
    acc = acc + jnp.dot(p_ref[2 * Wr:2 * Wr + M, :], w2p_ref[2],
                        preferred_element_type=f32)
    h2 = jnp.maximum(acc + b2_ref[...], 0.0).astype(jnp.bfloat16)

    # ---- conv3 (1x1) + folded bn3 + identity residual + relu ----
    y = jnp.dot(h2, w3_ref[...], preferred_element_type=f32) + b3_ref[...]
    y = y + x.astype(f32)                                   # identity (Cin == 4*planes)
    o_ref[0] = jnp.maximum(y, 0.0).astype(o_ref.dtype)


# ----------------------------------------------------------------------------
# stride=2 kernel: whole Bottleneck for one image, 3x3/stride-2 downsample branch.
# Input is pre-split into 4 (row,col)-parity planes of the zero-padded image.
# Grid = (batch, cout_tiles); conv1/conv2 run once per image (first tile) and
# persist in scratch; the downsample + conv3 epilogue runs per cout tile so the
# big downsample weight is only brought in tile by tile.
# ----------------------------------------------------------------------------
def _bottleneck_s2_kernel(x_ref, mask_ref, w1_ref, b1_ref, w2p_ref, b2_ref,
                          w3_ref, b3_ref, wdp_ref, bd_ref, o_ref,
                          q0_ref, q1_ref, r0_ref, r1_ref, h2_ref, *, Mo, Wc, Npl):
    f32 = jnp.float32
    width = b1_ref.shape[1]
    cin = w1_ref.shape[0]
    npl1 = x_ref.shape[2]
    q_refs = (q0_ref, q1_ref)
    r_refs = (r0_ref, r1_ref)

    @pl.when(pl.program_id(1) == 0)
    def _prologue():
        for a in range(2):                      # row parity of the padded image
            xa0 = x_ref[0, 2 * a]               # (npl1, cin) bf16, col parity 0
            xa1 = x_ref[0, 2 * a + 1]           # (npl1, cin) bf16, col parity 1
            # conv1 (1x1) + folded bn1 + relu; mask zeroes the image-pad rows/cols
            h0 = jnp.dot(xa0, w1_ref[...], preferred_element_type=f32) + b1_ref[...]
            h0 = (jnp.maximum(h0, 0.0) * mask_ref[2 * a]).astype(jnp.bfloat16)
            h1 = jnp.dot(xa1, w1_ref[...], preferred_element_type=f32) + b1_ref[...]
            h1 = (jnp.maximum(h1, 0.0) * mask_ref[2 * a + 1]).astype(jnp.bfloat16)
            # kw-packed conv2 operand: [h(a,0) | h(a,1) | h(a,0) shifted one column]
            q_refs[a][:, 0:width] = h0
            q_refs[a][:, width:2 * width] = h1
            q_refs[a][0:Npl, 2 * width:3 * width] = h0[1:npl1]
            q_refs[a][Npl:npl1, 2 * width:3 * width] = jnp.zeros((1, width),
                                                                 jnp.bfloat16)
            # kw-packed downsample operand (same tap structure, raw x planes)
            r_refs[a][:, 0:cin] = xa0
            r_refs[a][:, cin:2 * cin] = xa1
            r_refs[a][0:Npl, 2 * cin:3 * cin] = xa0[1:npl1]
            r_refs[a][Npl:npl1, 2 * cin:3 * cin] = jnp.zeros((1, cin), jnp.bfloat16)

        # conv2 (3x3, stride 2) + folded bn2 + relu: 3 MXU matmuls, K = 3*width
        acc = jnp.dot(q0_ref[0:Mo, :], w2p_ref[0], preferred_element_type=f32)
        acc = acc + jnp.dot(q1_ref[0:Mo, :], w2p_ref[1], preferred_element_type=f32)
        acc = acc + jnp.dot(q0_ref[Wc:Wc + Mo, :], w2p_ref[2],
                            preferred_element_type=f32)
        h2_ref[...] = jnp.maximum(acc + b2_ref[...], 0.0).astype(jnp.bfloat16)

    # ---- per-cout-tile epilogue ----
    # downsample branch: conv (3x3, stride 2) + folded bn (no relu), K = 3*cin
    idn = jnp.dot(r0_ref[0:Mo, :], wdp_ref[0], preferred_element_type=f32)
    idn = idn + jnp.dot(r1_ref[0:Mo, :], wdp_ref[1], preferred_element_type=f32)
    idn = idn + jnp.dot(r0_ref[Wc:Wc + Mo, :], wdp_ref[2],
                        preferred_element_type=f32)
    # conv3 (1x1) + folded bn3 + residual + relu
    y = jnp.dot(h2_ref[...], w3_ref[...], preferred_element_type=f32) + b3_ref[...]
    o_ref[0] = jnp.maximum(y + idn + bd_ref[...], 0.0).astype(o_ref.dtype)


# ----------------------------------------------------------------------------
# Parameter construction (deterministic).  PyTorch conv shapes -> BN-folded,
# kw-packed bf16 kernel layout (per-channel bias kept in f32).
# ----------------------------------------------------------------------------
def init_bottleneck_params(key, inplanes, planes, stride, base_width=64, groups=1):
    assert groups == 1
    width = int(planes * (base_width / 64.0)) * groups
    cout = planes * 4
    eps = 1e-5
    keys = iter(jax.random.split(key, 32))

    def conv_init(co, ci, k):
        fan_in = ci * k * k
        bound = 1.0 / np.sqrt(fan_in)
        w = jax.random.uniform(next(keys), (co, ci, k, k), jnp.float32, -bound, bound)
        b = jax.random.uniform(next(keys), (co,), jnp.float32, -bound, bound)
        return w, b

    def bn_init(c):
        g = 1.0 + 0.1 * jax.random.normal(next(keys), (c,), jnp.float32)
        beta = 0.1 * jax.random.normal(next(keys), (c,), jnp.float32)
        mean = 0.1 * jax.random.normal(next(keys), (c,), jnp.float32)
        var = jax.random.uniform(next(keys), (c,), jnp.float32, 0.5, 1.5)
        return g, beta, mean, var

    raw = {
        "conv1": conv_init(width, inplanes, 1), "bn1": bn_init(width),
        "conv2": conv_init(width, width, 3),    "bn2": bn_init(width),
        "conv3": conv_init(cout, width, 1),     "bn3": bn_init(cout),
    }
    if stride == 2:
        raw["convd"] = conv_init(cout, inplanes, 3)
        raw["bnd"] = bn_init(cout)

    def fold(bn, conv_b):
        g, beta, mean, var = bn
        s = g / jnp.sqrt(var + eps)
        return s, (beta + (conv_b - mean) * s).reshape(1, -1)

    p = {}
    sc1, p["b1"] = fold(raw["bn1"], raw["conv1"][1])
    p["w1"] = (raw["conv1"][0][:, :, 0, 0].T * sc1[None, :]).astype(jnp.bfloat16)
    sc2, p["b2"] = fold(raw["bn2"], raw["conv2"][1])
    # (kh, kw, cin, cout) -> packed (kh, kw*cin, cout): one MXU RHS per kh tap row
    w2 = jnp.transpose(raw["conv2"][0], (2, 3, 1, 0)) * sc2[None, None, None, :]
    p["w2p"] = w2.reshape(3, 3 * width, width).astype(jnp.bfloat16)
    sc3, p["b3"] = fold(raw["bn3"], raw["conv3"][1])
    p["w3"] = (raw["conv3"][0][:, :, 0, 0].T * sc3[None, :]).astype(jnp.bfloat16)
    if stride == 2:
        scd, p["bd"] = fold(raw["bnd"], raw["convd"][1])
        wd = jnp.transpose(raw["convd"][0], (2, 3, 1, 0)) * scd[None, None, None, :]
        p["wdp"] = wd.reshape(3, 3 * inplanes, cout).astype(jnp.bfloat16)
    return p, raw


# ----------------------------------------------------------------------------
# Bottleneck forward (NCHW in / NCHW out, like the PyTorch module).
# ----------------------------------------------------------------------------
def bottleneck_forward(x_nchw, params, stride, cout_tile=None):
    n, cin, h, w = x_nchw.shape
    width = params["w1"].shape[1]
    cout = params["w3"].shape[1]
    x = jnp.transpose(x_nchw, (0, 2, 3, 1))     # NHWC (channels -> lanes)

    if stride == 1:
        assert cin == cout, "stride=1 Bottleneck requires inplanes == planes*4"
        wr = _row_pitch(w)
        m = h * wr
        # W padding only (the kernel handles H padding in its packed VMEM scratch)
        x_flat = jnp.pad(x, ((0, 0), (0, 0), (1, wr - w - 1), (0, 0)))
        x_flat = x_flat.reshape(n, m, cin).astype(jnp.bfloat16)
        # hoisted pad-column mask: 1 on real pixels, 0 on the zero-pad columns
        col = np.arange(m, dtype=np.int32) % wr
        mask = ((col >= 1) & (col <= w)).astype(np.float32).reshape(m, 1)
        mask = jnp.asarray(mask, dtype=jnp.bfloat16)

        flops = 2 * n * m * (cin * width + 9 * width * width + width * cout)
        bytes_acc = (n * m * cin * 2 + n * m * cout * 4 + m * 2 +
                     2 * (cin * width + 9 * width * width + width * cout))

        cparams = pltpu.CompilerParams(dimension_semantics=("parallel",),
                                       vmem_limit_bytes=_vmem_limit_bytes())
        out = pl.pallas_call(
            partial(_bottleneck_s1_kernel, Wr=wr),
            out_shape=jax.ShapeDtypeStruct((n, m, cout), x_nchw.dtype),
            grid=(n,),
            in_specs=[
                pl.BlockSpec((1, m, cin), lambda b: (b, 0, 0)),
                pl.BlockSpec((m, 1), lambda b: (0, 0)),
                pl.BlockSpec((cin, width), lambda b: (0, 0)),
                pl.BlockSpec((1, width), lambda b: (0, 0)),
                pl.BlockSpec((3, 3 * width, width), lambda b: (0, 0, 0)),
                pl.BlockSpec((1, width), lambda b: (0, 0)),
                pl.BlockSpec((width, cout), lambda b: (0, 0)),
                pl.BlockSpec((1, cout), lambda b: (0, 0)),
            ],
            out_specs=pl.BlockSpec((1, m, cout), lambda b: (b, 0, 0)),
            scratch_shapes=[pltpu.VMEM((m + 2 * wr, 3 * width), jnp.bfloat16)],
            compiler_params=cparams,
            cost_estimate=pl.CostEstimate(flops=flops, transcendentals=0,
                                          bytes_accessed=bytes_acc),
        )(x_flat, mask, params["w1"], params["b1"], params["w2p"], params["b2"],
          params["w3"], params["b3"])
        out = out.reshape(n, h, wr, cout)[:, :, 1:w + 1, :]
    else:
        assert stride == 2 and h % 2 == 0 and w % 2 == 0
        ho, wo = h // 2, w // 2
        wc = wo + 1
        npl = (ho + 1) * wc
        npl1 = npl + 1
        mo = ho * wc

        ct = cout_tile if cout_tile is not None else min(cout, 512)
        assert cout % ct == 0 and (ct == cout or ct % 128 == 0), \
            "cout tile must divide cout and be lane-aligned"
        n_ct = cout // ct

        # zero-pad, split into the 4 (row,col)-parity planes of the padded image,
        # flatten each plane and append one guard row (kept zero).
        xp = jnp.pad(x, ((0, 0), (1, 1), (1, 1), (0, 0)))
        xpp = xp.reshape(n, ho + 1, 2, wo + 1, 2, cin)
        xpp = jnp.transpose(xpp, (0, 2, 4, 1, 3, 5)).reshape(n, 4, npl, cin)
        xpp = jnp.pad(xpp, ((0, 0), (0, 0), (0, 1), (0, 0))).astype(jnp.bfloat16)

        # hoisted per-plane pad masks (zero at image-pad rows/cols and guard row)
        prow = np.arange(npl1, dtype=np.int32) // wc
        pcol = np.arange(npl1, dtype=np.int32) % wc
        masks = np.zeros((4, npl1, 1), np.float32)
        for a in range(2):
            for b in range(2):
                row_pad = (prow == 0) if a == 0 else (prow == ho)
                col_pad = (pcol == 0) if b == 0 else (pcol == wo)
                valid = ~(row_pad | col_pad)
                valid[npl:] = False
                masks[2 * a + b, :, 0] = valid.astype(np.float32)
        masks = jnp.asarray(masks, dtype=jnp.bfloat16)

        flops = 2 * n * (4 * npl1 * cin * width + 9 * mo * width * width +
                         9 * mo * cin * cout + mo * width * cout)
        bytes_acc = (n * 4 * npl1 * cin * 2 + n * mo * cout * 4 +
                     2 * (cin * width + 9 * width * width + width * cout +
                          9 * cin * cout))

        cparams = pltpu.CompilerParams(
            dimension_semantics=("parallel", "arbitrary"),
            vmem_limit_bytes=_vmem_limit_bytes())
        out = pl.pallas_call(
            partial(_bottleneck_s2_kernel, Mo=mo, Wc=wc, Npl=npl),
            out_shape=jax.ShapeDtypeStruct((n, mo, cout), x_nchw.dtype),
            grid=(n, n_ct),
            in_specs=[
                pl.BlockSpec((1, 4, npl1, cin), lambda b, j: (b, 0, 0, 0)),
                pl.BlockSpec((4, npl1, 1), lambda b, j: (0, 0, 0)),
                pl.BlockSpec((cin, width), lambda b, j: (0, 0)),
                pl.BlockSpec((1, width), lambda b, j: (0, 0)),
                pl.BlockSpec((3, 3 * width, width), lambda b, j: (0, 0, 0)),
                pl.BlockSpec((1, width), lambda b, j: (0, 0)),
                pl.BlockSpec((width, ct), lambda b, j: (0, j)),
                pl.BlockSpec((1, ct), lambda b, j: (0, j)),
                # cout-tiled so the big 3x3 downsample weight never needs to be
                # resident all at once (the previous biggest VMEM hazard).
                pl.BlockSpec((3, 3 * cin, ct), lambda b, j: (0, 0, j)),
                pl.BlockSpec((1, ct), lambda b, j: (0, j)),
            ],
            out_specs=pl.BlockSpec((1, mo, ct), lambda b, j: (b, 0, j)),
            scratch_shapes=[
                pltpu.VMEM((npl1, 3 * width), jnp.bfloat16),   # packed h, parity 0
                pltpu.VMEM((npl1, 3 * width), jnp.bfloat16),   # packed h, parity 1
                pltpu.VMEM((npl1, 3 * cin), jnp.bfloat16),     # packed x, parity 0
                pltpu.VMEM((npl1, 3 * cin), jnp.bfloat16),     # packed x, parity 1
                pltpu.VMEM((mo, width), jnp.bfloat16),         # h2 (persists per img)
            ],
            compiler_params=cparams,
            cost_estimate=pl.CostEstimate(flops=flops, transcendentals=0,
                                          bytes_accessed=bytes_acc),
        )(xpp, masks, params["w1"], params["b1"], params["w2p"], params["b2"],
          params["w3"], params["b3"], params["wdp"], params["bd"])
        out = out.reshape(n, ho, wc, cout)[:, :, :wo, :]

    return jnp.transpose(out, (0, 3, 1, 2))     # back to NCHW (module contract)


# ----------------------------------------------------------------------------
# Pure-JAX reference (raw, unfolded f32 parameters) for verification.
# ----------------------------------------------------------------------------
def ref_bottleneck(x_nchw, raw, stride):
    eps = 1e-5
    dn = ("NHWC", "HWIO", "NHWC")

    def conv(hh, wb, s, pad):
        wt, b = wb
        w_hwio = jnp.transpose(wt, (2, 3, 1, 0))
        y = lax.conv_general_dilated(hh, w_hwio, (s, s), pad,
                                     dimension_numbers=dn,
                                     precision=lax.Precision.HIGHEST)
        return y + b

    def bn(hh, prm):
        g, beta, mean, var = prm
        return (hh - mean) / jnp.sqrt(var + eps) * g + beta

    relu = lambda hh: jnp.maximum(hh, 0.0)
    x = jnp.transpose(x_nchw, (0, 2, 3, 1))
    out = relu(bn(conv(x, raw["conv1"], 1, [(0, 0), (0, 0)]), raw["bn1"]))
    out = relu(bn(conv(out, raw["conv2"], stride, [(1, 1), (1, 1)]), raw["bn2"]))
    out = bn(conv(out, raw["conv3"], 1, [(0, 0), (0, 0)]), raw["bn3"])
    if stride == 2:
        identity = bn(conv(x, raw["convd"], stride, [(1, 1), (1, 1)]), raw["bnd"])
    else:
        identity = x
    return jnp.transpose(relu(out + identity), (0, 3, 1, 2))


if __name__ == "__main__":
    key = jax.random.PRNGKey(0)
    k_pa, k_pb, k_xa, k_xb = jax.random.split(key, 4)

    # Config A: stride=1 (identity residual) -> inplanes == planes*4
    params_a, raw_a = init_bottleneck_params(k_pa, inplanes=16, planes=4, stride=1)
    x_a = jax.random.normal(k_xa, (2, 16, 16, 16), jnp.float32)   # NCHW
    fwd_a = jax.jit(partial(bottleneck_forward, stride=1))
    out_a = fwd_a(x_a, params_a)

    # Config B: stride=2 (3x3/stride-2 downsample), cout=256 split into 2 tiles to
    # exercise the cout-tiled grid axis of the stride-2 kernel.
    params_b, raw_b = init_bottleneck_params(k_pb, inplanes=8, planes=64, stride=2)
    x_b = jax.random.normal(k_xb, (2, 8, 16, 16), jnp.float32)    # NCHW
    fwd_b = jax.jit(partial(bottleneck_forward, stride=2, cout_tile=128))
    out_b = fwd_b(x_b, params_b)

    jax.block_until_ready((out_a, out_b))
    assert out_a.shape == (2, 16, 16, 16), out_a.shape
    assert out_b.shape == (2, 256, 8, 8), out_b.shape

    ref_a = ref_bottleneck(x_a, raw_a, stride=1)
    ref_b = ref_bottleneck(x_b, raw_b, stride=2)
    # bf16 MXU operands with f32 accumulation -> ~1% tolerance budget
    np.testing.assert_allclose(np.asarray(out_a), np.asarray(ref_a), rtol=4e-2, atol=4e-2)
    np.testing.assert_allclose(np.asarray(out_b), np.asarray(ref_b), rtol=4e-2, atol=4e-2)

    print("KERNEL_OK")
</pallas_src>

<mosaic_0001>
module attributes {stable_mosaic.version = 11 : i64} {
  func.func @_bottleneck_s1_kernel(%arg0: i32, %arg1: memref<1x288x16xbf16, #tpu.memory_space<vmem>>, %arg2: memref<288x1xbf16, #tpu.memory_space<vmem>>, %arg3: memref<16x4xbf16, #tpu.memory_space<vmem>>, %arg4: memref<1x4xf32, #tpu.memory_space<vmem>>, %arg5: memref<3x12x4xbf16, #tpu.memory_space<vmem>>, %arg6: memref<1x4xf32, #tpu.memory_space<vmem>>, %arg7: memref<4x16xbf16, #tpu.memory_space<vmem>>, %arg8: memref<1x16xf32, #tpu.memory_space<vmem>>, %arg9: memref<1x288x16xf32, #tpu.memory_space<vmem>>, %arg10: memref<324x12xbf16, #tpu.memory_space<vmem>>) attributes {dimension_semantics = [#tpu.dimension_semantics<parallel>], iteration_bounds = array<i64: 2>, scalar_prefetch = 0 : i64, scratch_operands = 1 : i64, tpu.core_type = #tpu.core_type<tc>, window_params = [{transform_indices = @transform_0, window_bounds = array<i64: 1, 288, 16>}, {pipeline_mode = #tpu.pipeline_mode<synchronous>, transform_indices = @transform_1, window_bounds = array<i64: 288, 1>}, {pipeline_mode = #tpu.pipeline_mode<synchronous>, transform_indices = @transform_2, window_bounds = array<i64: 16, 4>}, {pipeline_mode = #tpu.pipeline_mode<synchronous>, transform_indices = @transform_3, window_bounds = array<i64: 1, 4>}, {pipeline_mode = #tpu.pipeline_mode<synchronous>, transform_indices = @transform_4, window_bounds = array<i64: 3, 12, 4>}, {pipeline_mode = #tpu.pipeline_mode<synchronous>, transform_indices = @transform_5, window_bounds = array<i64: 1, 4>}, {pipeline_mode = #tpu.pipeline_mode<synchronous>, transform_indices = @transform_6, window_bounds = array<i64: 4, 16>}, {pipeline_mode = #tpu.pipeline_mode<synchronous>, transform_indices = @transform_7, window_bounds = array<i64: 1, 16>}, {transform_indices = @transform_8, window_bounds = array<i64: 1, 288, 16>}]} {
    %c0 = arith.constant 0 : index
    %c0_0 = arith.constant 0 : index
    %c0_1 = arith.constant 0 : index
    %0 = vector.load %arg1[%c0, %c0_0, %c0_1] : memref<1x288x16xbf16, #tpu.memory_space<vmem>>, vector<1x288x16xbf16>
    %1 = vector.shape_cast %0 : vector<1x288x16xbf16> to vector<288x16xbf16>
    %c0_2 = arith.constant 0 : index
    %c0_3 = arith.constant 0 : index
    %2 = vector.load %arg3[%c0_2, %c0_3] : memref<16x4xbf16, #tpu.memory_space<vmem>>, vector<16x4xbf16>
    %cst = arith.constant dense<0.000000e+00> : vector<288x4xf32>
    %3 = tpu.matmul %1, %2, %cst {dimension_numbers = #tpu.dot_dimension_numbers<[1], [0], [0], [1], [0, 0, 1, 1], [], []>} : vector<288x16xbf16>, vector<16x4xbf16>, vector<288x4xf32> -> vector<288x4xf32>
    %c0_4 = arith.constant 0 : index
    %c0_5 = arith.constant 0 : index
    %4 = vector.load %arg4[%c0_4, %c0_5] : memref<1x4xf32, #tpu.memory_space<vmem>>, vector<1x4xf32>
    %5 = vector.broadcast %4 : vector<1x4xf32> to vector<288x4xf32>
    %6 = arith.addf %3, %5 : vector<288x4xf32>
    %cst_6 = arith.constant 0.000000e+00 : f32
    %7 = vector.broadcast %cst_6 : f32 to vector<288x4xf32>
    %8 = arith.maximumf %6, %7 : vector<288x4xf32>
    %c0_7 = arith.constant 0 : index
    %c0_8 = arith.constant 0 : index
    %9 = vector.load %arg2[%c0_7, %c0_8] : memref<288x1xbf16, #tpu.memory_space<vmem>>, vector<288x1xbf16>
    %10 = arith.extf %9 : vector<288x1xbf16> to vector<288x1xf32>
    %11 = vector.broadcast %10 : vector<288x1xf32> to vector<288x4xf32>
    %12 = arith.mulf %8, %11 : vector<288x4xf32>
    %13 = arith.truncf %12 : vector<288x4xf32> to vector<288x4xbf16>
    %cst_9 = arith.constant 0.000000e+00 : bf16
    %14 = vector.broadcast %cst_9 : bf16 to vector<19x12xbf16>
    %c0_10 = arith.constant 0 : index
    %c0_11 = arith.constant 0 : index
    %15 = vector.load %arg10[%c0_10, %c0_11] : memref<324x12xbf16, #tpu.memory_space<vmem>>, vector<19x12xbf16>
    tpu.vector_store %arg10[%c0_10, %c0_11], %14 {strides = array<i32>} : memref<324x12xbf16, #tpu.memory_space<vmem>>, vector<19x12xbf16>,
    %c305 = arith.constant 305 : index
    %c0_12 = arith.constant 0 : index
    %16 = vector.load %arg10[%c305, %c0_12] : memref<324x12xbf16, #tpu.memory_space<vmem>>, vector<19x12xbf16>
    tpu.vector_store %arg10[%c305, %c0_12], %14 {strides = array<i32>} : memref<324x12xbf16, #tpu.memory_space<vmem>>, vector<19x12xbf16>,
    %c19 = arith.constant 19 : index
    %c0_13 = arith.constant 0 : index
    %17 = vector.load %arg10[%c19, %c0_13] : memref<324x12xbf16, #tpu.memory_space<vmem>>, vector<288x4xbf16>
    tpu.vector_store %arg10[%c19, %c0_13], %13 {strides = array<i32>} : memref<324x12xbf16, #tpu.memory_space<vmem>>, vector<288x4xbf16>,
    %c18 = arith.constant 18 : index
    %c4 = arith.constant 4 : index
    %18 = vector.load %arg10[%c18, %c4] : memref<324x12xbf16, #tpu.memory_space<vmem>>, vector<288x4xbf16>
    tpu.vector_store %arg10[%c18, %c4], %13 {strides = array<i32>} : memref<324x12xbf16, #tpu.memory_space<vmem>>, vector<288x4xbf16>,
    %c17 = arith.constant 17 : index
    %c8 = arith.constant 8 : index
    %19 = vector.load %arg10[%c17, %c8] : memref<324x12xbf16, #tpu.memory_space<vmem>>, vector<288x4xbf16>
    tpu.vector_store %arg10[%c17, %c8], %13 {strides = array<i32>} : memref<324x12xbf16, #tpu.memory_space<vmem>>, vector<288x4xbf16>,
    %c0_14 = arith.constant 0 : index
    %c0_15 = arith.constant 0 : index
    %20 = vector.load %arg10[%c0_14, %c0_15] : memref<324x12xbf16, #tpu.memory_space<vmem>>, vector<288x12xbf16>
    %c0_16 = arith.constant 0 : index
    %c0_17 = arith.constant 0 : index
    %c0_18 = arith.constant 0 : index
    %21 = vector.load %arg5[%c0_16, %c0_17, %c0_18] : memref<3x12x4xbf16, #tpu.memory_space<vmem>>, vector<1x12x4xbf16>
    %22 = vector.shape_cast %21 : vector<1x12x4xbf16> to vector<12x4xbf16>
    %cst_19 = arith.constant dense<0.000000e+00> : vector<288x4xf32>
    %23 = tpu.matmul %20, %22, %cst_19 {dimension_numbers = #tpu.dot_dimension_numbers<[1], [0], [0], [1], [0, 0, 1, 1], [], []>} : vector<288x12xbf16>, vector<12x4xbf16>, vector<288x4xf32> -> vector<288x4xf32>
    %c18_20 = arith.constant 18 : index
    %c0_21 = arith.constant 0 : index
    %24 = vector.load %arg10[%c18_20, %c0_21] : memref<324x12xbf16, #tpu.memory_space<vmem>>, vector<288x12xbf16>
    %c1 = arith.constant 1 : index
    %c0_22 = arith.constant 0 : index
    %c0_23 = arith.constant 0 : index
    %25 = vector.load %arg5[%c1, %c0_22, %c0_23] : memref<3x12x4xbf16, #tpu.memory_space<vmem>>, vector<1x12x4xbf16>
    %26 = vector.shape_cast %25 : vector<1x12x4xbf16> to vector<12x4xbf16>
    %cst_24 = arith.constant dense<0.000000e+00> : vector<288x4xf32>
    %27 = tpu.matmul %24, %26, %cst_24 {dimension_numbers = #tpu.dot_dimension_numbers<[1], [0], [0], [1], [0, 0, 1, 1], [], []>} : vector<288x12xbf16>, vector<12x4xbf16>, vector<288x4xf32> -> vector<288x4xf32>
    %28 = arith.addf %23, %27 : vector<288x4xf32>
    %c36 = arith.constant 36 : index
    %c0_25 = arith.constant 0 : index
    %29 = vector.load %arg10[%c36, %c0_25] : memref<324x12xbf16, #tpu.memory_space<vmem>>, vector<288x12xbf16>
    %c2 = arith.constant 2 : index
    %c0_26 = arith.constant 0 : index
    %c0_27 = arith.constant 0 : index
    %30 = vector.load %arg5[%c2, %c0_26, %c0_27] : memref<3x12x4xbf16, #tpu.memory_space<vmem>>, vector<1x12x4xbf16>
    %31 = vector.shape_cast %30 : vector<1x12x4xbf16> to vector<12x4xbf16>
    %cst_28 = arith.constant dense<0.000000e+00> : vector<288x4xf32>
    %32 = tpu.matmul %29, %31, %cst_28 {dimension_numbers = #tpu.dot_dimension_numbers<[1], [0], [0], [1], [0, 0, 1, 1], [], []>} : vector<288x12xbf16>, vector<12x4xbf16>, vector<288x4xf32> -> vector<288x4xf32>
    %33 = arith.addf %28, %32 : vector<288x4xf32>
    %c0_29 = arith.constant 0 : index
    %c0_30 = arith.constant 0 : index
    %34 = vector.load %arg6[%c0_29, %c0_30] : memref<1x4xf32, #tpu.memory_space<vmem>>, vector<1x4xf32>
    %35 = vector.broadcast %34 : vector<1x4xf32> to vector<288x4xf32>
    %36 = arith.addf %33, %35 : vector<288x4xf32>
    %cst_31 = arith.constant 0.000000e+00 : f32
    %37 = vector.broadcast %cst_31 : f32 to vector<288x4xf32>
    %38 = arith.maximumf %36, %37 : vector<288x4xf32>
    %39 = arith.truncf %38 : vector<288x4xf32> to vector<288x4xbf16>
    %c0_32 = arith.constant 0 : index
    %c0_33 = arith.constant 0 : index
    %40 = vector.load %arg7[%c0_32, %c0_33] : memref<4x16xbf16, #tpu.memory_space<vmem>>, vector<4x16xbf16>
    %cst_34 = arith.constant dense<0.000000e+00> : vector<288x16xf32>
    %41 = tpu.matmul %39, %40, %cst_34 {dimension_numbers = #tpu.dot_dimension_numbers<[1], [0], [0], [1], [0, 0, 1, 1], [], []>} : vector<288x4xbf16>, vector<4x16xbf16>, vector<288x16xf32> -> vector<288x16xf32>
    %c0_35 = arith.constant 0 : index
    %c0_36 = arith.constant 0 : index
    %42 = vector.load %arg8[%c0_35, %c0_36] : memref<1x16xf32, #tpu.memory_space<vmem>>, vector<1x16xf32>
    %43 = vector.broadcast %42 : vector<1x16xf32> to vector<288x16xf32>
    %44 = arith.addf %41, %43 : vector<288x16xf32>
    %45 = arith.extf %1 : vector<288x16xbf16> to vector<288x16xf32>
    %46 = arith.addf %44, %45 : vector<288x16xf32>
    %cst_37 = arith.constant 0.000000e+00 : f32
    %47 = vector.broadcast %cst_37 : f32 to vector<288x16xf32>
    %48 = arith.maximumf %46, %47 : vector<288x16xf32>
    %c0_38 = arith.constant 0 : index
    %c0_39 = arith.constant 0 : index
    %c0_40 = arith.constant 0 : index
    %49 = vector.load %arg9[%c0_38, %c0_39, %c0_40] : memref<1x288x16xf32, #tpu.memory_space<vmem>>, vector<1x288x16xf32>
    %50 = vector.shape_cast %49 : vector<1x288x16xf32> to vector<288x16xf32>
    %51 = vector.shape_cast %48 : vector<288x16xf32> to vector<1x288x16xf32>
    tpu.vector_store %arg9[%c0_38, %c0_39, %c0_40], %51 {strides = array<i32>} : memref<1x288x16xf32, #tpu.memory_space<vmem>>, vector<1x288x16xf32>,
    return
  }
  func.func @transform_0(%arg0: i32) -> (i32, i32, i32) {
    %c0_i32 = arith.constant 0 : i32
    %c0_i32_0 = arith.constant 0 : i32
    %c0_i32_1 = arith.constant 0 : i32
    return %arg0, %c0_i32, %c0_i32_0 : i32, i32, i32
  }
  func.func @transform_1(%arg0: i32) -> (i32, i32) {
    %c0_i32 = arith.constant 0 : i32
    %c0_i32_0 = arith.constant 0 : i32
    %c0_i32_1 = arith.constant 0 : i32
    return %c0_i32, %c0_i32_0 : i32, i32
  }
  func.func @transform_2(%arg0: i32) -> (i32, i32) {
    %c0_i32 = arith.constant 0 : i32
    %c0_i32_0 = arith.constant 0 : i32
    %c0_i32_1 = arith.constant 0 : i32
    return %c0_i32, %c0_i32_0 : i32, i32
  }
  func.func @transform_3(%arg0: i32) -> (i32, i32) {
    %c0_i32 = arith.constant 0 : i32
    %c0_i32_0 = arith.constant 0 : i32
    %c0_i32_1 = arith.constant 0 : i32
    return %c0_i32, %c0_i32_0 : i32, i32
  }
  func.func @transform_4(%arg0: i32) -> (i32, i32, i32) {
    %c0_i32 = arith.constant 0 : i32
    %c0_i32_0 = arith.constant 0 : i32
    %c0_i32_1 = arith.constant 0 : i32
    %c0_i32_2 = arith.constant 0 : i32
    return %c0_i32, %c0_i32_0, %c0_i32_1 : i32, i32, i32
  }
  func.func @transform_5(%arg0: i32) -> (i32, i32) {
    %c0_i32 = arith.constant 0 : i32
    %c0_i32_0 = arith.constant 0 : i32
    %c0_i32_1 = arith.constant 0 : i32
    return %c0_i32, %c0_i32_0 : i32, i32
  }
  func.func @transform_6(%arg0: i32) -> (i32, i32) {
    %c0_i32 = arith.constant 0 : i32
    %c0_i32_0 = arith.constant 0 : i32
    %c0_i32_1 = arith.constant 0 : i32
    return %c0_i32, %c0_i32_0 : i32, i32
  }
  func.func @transform_7(%arg0: i32) -> (i32, i32) {
    %c0_i32 = arith.constant 0 : i32
    %c0_i32_0 = arith.constant 0 : i32
    %c0_i32_1 = arith.constant 0 : i32
    return %c0_i32, %c0_i32_0 : i32, i32
  }
  func.func @transform_8(%arg0: i32) -> (i32, i32, i32) {
    %c0_i32 = arith.constant 0 : i32
    %c0_i32_0 = arith.constant 0 : i32
    %c0_i32_1 = arith.constant 0 : i32
    return %arg0, %c0_i32, %c0_i32_0 : i32, i32, i32
  }
}

</mosaic_0001>

<llo_original>
// kernel: bottleneck_forward.1
$region0: #{bottleneck_forward.1}
  #allocation0 [shape = 'u32[]', space=smem, size = 0x4, offset = 0x4, fixed_abs, tag = 'smem constant byte address 0x4 - core index']
  #allocation1 [shape = 'u32[144,128]{1,0:T(1,128)}', space=vmem, size = 0x12000, scoped, tag = 'internal scratch']
  #allocation2 [shape = 'bf16[324,12]{1,0:T(8,128)(2,1)}', space=vmem, size = 0x14800, scoped, tag = 'scratch operand']
  %s0 = inlined_call_operand.vmem [shape: bf16[2,288,16], index: 0, kind: input, shape index: {}]
  %s1 = inlined_call_operand.vmem [shape: bf16[288,1], index: 1, kind: input, shape index: {}]
  %s2 = inlined_call_operand.vmem [shape: bf16[16,4], index: 2, kind: input, shape index: {}]
  %s3 = inlined_call_operand.vmem [shape: f32[1,4], index: 3, kind: input, shape index: {}]
  %s4 = inlined_call_operand.vmem [shape: bf16[3,12,4], index: 4, kind: input, shape index: {}]
  %s5 = inlined_call_operand.vmem [shape: f32[1,4], index: 5, kind: input, shape index: {}]
  %s6 = inlined_call_operand.vmem [shape: bf16[4,16], index: 6, kind: input, shape index: {}]
  %s7 = inlined_call_operand.vmem [shape: f32[1,16], index: 7, kind: input, shape index: {}]
  %s8 = inlined_call_operand.vmem [shape: f32[2,288,16], index: 8, kind: output, shape index: {}]
  %s9 = sld [smem:[#allocation0]]
  $region65: #{bottleneck_forward.1} parent=0
    _
  %s11 = ssub.s32 1, %s9
  %s12 = scalar_select 0, %s11, %s9
  loop: start=0, step=1, limit=4
  $region2: #{bottleneck_forward.1} parent=0 // loop_pre_header
    _
  $region3: #{bottleneck_forward.1} parent=0 // loop_header
    %s14 = sphi 0, %s18
    %p15 = scmp.ge.s32.totalorder %s14, 4
    %s24 = sphi 0, %s26
    %s27 = sphi 0, %s24
    %s28 = sphi 0, %s27
    %s44 = sphi 0, %s28
    %s48 = sphi 0, %s48
    %s50 = sphi 0, %s48
    %s51 = sphi 0, %s50
    %s65 = sphi 0, %s51
    %s69 = sphi 0, %s69
    %s71 = sphi 0, %s69
    %s72 = sphi 0, %s71
    %s86 = sphi 0, %s72
    %s90 = sphi 0, %s90
    %s92 = sphi 0, %s90
    %s93 = sphi 0, %s92
    %s107 = sphi 0, %s93
    %s111 = sphi 0, %s111
    %s113 = sphi 0, %s111
    %s114 = sphi 0, %s113
    %s128 = sphi 0, %s114
    %s132 = sphi 0, %s132
    %s134 = sphi 0, %s132
    %s135 = sphi 0, %s134
    %s149 = sphi 0, %s135
    %s153 = sphi 0, %s153
    %s155 = sphi 0, %s153
    %s156 = sphi 0, %s155
    %s170 = sphi 0, %s156
    %s174 = sphi 0, %s174
    %s176 = sphi 0, %s174
    %s177 = sphi 0, %s176
    %s191 = sphi 0, %s177
    %s197 = sphi 0, %s199
    %s200 = sphi 0, %s197
    %s201 = sphi 0, %s200
    %s217 = sphi 0, %s201
  $region4: #{bottleneck_forward.1} parent=0 // loop_header_branch
    %17 = sbr.rel (%p15) target = $region8
  $region5: #{bottleneck_forward.1} parent=0 // loop_body
    %s19 = ssub.s32 %s14, 1
    %s20 = ssub.s32 %s14, 2
    %s21 = sadd.s32 %s14, 1
    %s22 = ssub.s32 %s14, %s21
    %p23 = scmp.eq.s32.totalorder %s22, 0
    %s25 = sadd.s32 %s24, 1
    %s26 = scalar_select %p23, %s24, %s25
    %p29 = pneg %p23
    %p30 = scmp.eq.s32.totalorder %s14, 1
    %p31 = por %p29, %p30
    %p32 = scmp.ne.s32.totalorder %s24, %s27
    %p33 = scmp.eq.s32.totalorder %s14, 0
    %p34 = por %p32, %p33
    %p35 = scmp.ne.s32.totalorder %s24, %s27
    %p36 = scmp.eq.s32.totalorder %s19, 1
    %p37 = por %p35, %p36
    %p38 = scmp.ne.s32.totalorder %s27, %s28
    %p39 = scmp.eq.s32.totalorder %s19, 0
    %p40 = por %p38, %p39
    %p41 = scmp.ne.s32.totalorder %s27, %s28
    %p42 = scmp.eq.s32.totalorder %s20, 1
    %p43 = por %p41, %p42
    %p45 = scmp.ne.s32.totalorder %s28, %s44
    %p46 = scmp.eq.s32.totalorder %s20, 0
    %p47 = por %p45, %p46
    %s49 = sadd.s32 %s48, 1
    %p52 = scmp.eq.s32.totalorder %s14, 1
    %p53 = scmp.ne.s32.totalorder %s48, %s50
    %p54 = scmp.eq.s32.totalorder %s14, 0
    %p55 = por %p53, %p54
    %p56 = scmp.ne.s32.totalorder %s48, %s50
    %p57 = scmp.eq.s32.totalorder %s19, 1
    %p58 = por %p56, %p57
    %p59 = scmp.ne.s32.totalorder %s50, %s51
    %p60 = scmp.eq.s32.totalorder %s19, 0
    %p61 = por %p59, %p60
    %p62 = scmp.ne.s32.totalorder %s50, %s51
    %p63 = scmp.eq.s32.totalorder %s20, 1
    %p64 = por %p62, %p63
    %p66 = scmp.ne.s32.totalorder %s51, %s65
    %p67 = scmp.eq.s32.totalorder %s20, 0
    %p68 = por %p66, %p67
    %s70 = sadd.s32 %s69, 1
    %p73 = scmp.eq.s32.totalorder %s14, 1
    %p74 = scmp.ne.s32.totalorder %s69, %s71
    %p75 = scmp.eq.s32.totalorder %s14, 0
    %p76 = por %p74, %p75
    %p77 = scmp.ne.s32.totalorder %s69, %s71
    %p78 = scmp.eq.s32.totalorder %s19, 1
    %p79 = por %p77, %p78
    %p80 = scmp.ne.s32.totalorder %s71, %s72
    %p81 = scmp.eq.s32.totalorder %s19, 0
    %p82 = por %p80, %p81
    %p83 = scmp.ne.s32.totalorder %s71, %s72
    %p84 = scmp.eq.s32.totalorder %s20, 1
    %p85 = por %p83, %p84
    %p87 = scmp.ne.s32.totalorder %s72, %s86
    %p88 = scmp.eq.s32.totalorder %s20, 0
    %p89 = por %p87, %p88
    %s91 = sadd.s32 %s90, 1
    %p94 = scmp.eq.s32.totalorder %s14, 1
    %p95 = scmp.ne.s32.totalorder %s90, %s92
    %p96 = scmp.eq.s32.totalorder %s14, 0
    %p97 = por %p95, %p96
    %p98 = scmp.ne.s32.totalorder %s90, %s92
    %p99 = scmp.eq.s32.totalorder %s19, 1
    %p100 = por %p98, %p99
    %p101 = scmp.ne.s32.totalorder %s92, %s93
    %p102 = scmp.eq.s32.totalorder %s19, 0
    %p103 = por %p101, %p102
    %p104 = scmp.ne.s32.totalorder %s92, %s93
    %p105 = scmp.eq.s32.totalorder %s20, 1
    %p106 = por %p104, %p105
    %p108 = scmp.ne.s32.totalorder %s93, %s107
    %p109 = scmp.eq.s32.totalorder %s20, 0
    %p110 = por %p108, %p109
    %s112 = sadd.s32 %s111, 1
    %p115 = scmp.eq.s32.totalorder %s14, 1
    %p116 = scmp.ne.s32.totalorder %s111, %s113
    %p117 = scmp.eq.s32.totalorder %s14, 0
    %p118 = por %p116, %p117
    %p119 = scmp.ne.s32.totalorder %s111, %s113
    %p120 = scmp.eq.s32.totalorder %s19, 1
    %p121 = por %p119, %p120
    %p122 = scmp.ne.s32.totalorder %s113, %s114
    %p123 = scmp.eq.s32.totalorder %s19, 0
    %p124 = por %p122, %p123
    %p125 = scmp.ne.s32.totalorder %s113, %s114
    %p126 = scmp.eq.s32.totalorder %s20, 1
    %p127 = por %p125, %p126
    %p129 = scmp.ne.s32.totalorder %s114, %s128
    %p130 = scmp.eq.s32.totalorder %s20, 0
    %p131 = por %p129, %p130
    %s133 = sadd.s32 %s132, 1
    %p136 = scmp.eq.s32.totalorder %s14, 1
    %p137 = scmp.ne.s32.totalorder %s132, %s134
    %p138 = scmp.eq.s32.totalorder %s14, 0
    %p139 = por %p137, %p138
    %p140 = scmp.ne.s32.totalorder %s132, %s134
    %p141 = scmp.eq.s32.totalorder %s19, 1
    %p142 = por %p140, %p141
    %p143 = scmp.ne.s32.totalorder %s134, %s135
    %p144 = scmp.eq.s32.totalorder %s19, 0
    %p145 = por %p143, %p144
    %p146 = scmp.ne.s32.totalorder %s134, %s135
    %p147 = scmp.eq.s32.totalorder %s20, 1
    %p148 = por %p146, %p147
    %p150 = scmp.ne.s32.totalorder %s135, %s149
    %p151 = scmp.eq.s32.totalorder %s20, 0
    %p152 = por %p150, %p151
    %s154 = sadd.s32 %s153, 1
    %p157 = scmp.eq.s32.totalorder %s14, 1
    %p158 = scmp.ne.s32.totalorder %s153, %s155
    %p159 = scmp.eq.s32.totalorder %s14, 0
    %p160 = por %p158, %p159
    %p161 = scmp.ne.s32.totalorder %s153, %s155
    %p162 = scmp.eq.s32.totalorder %s19, 1
    %p163 = por %p161, %p162
    %p164 = scmp.ne.s32.totalorder %s155, %s156
    %p165 = scmp.eq.s32.totalorder %s19, 0
    %p166 = por %p164, %p165
    %p167 = scmp.ne.s32.totalorder %s155, %s156
    %p168 = scmp.eq.s32.totalorder %s20, 1
    %p169 = por %p167, %p168
    %p171 = scmp.ne.s32.totalorder %s156, %s170
    %p172 = scmp.eq.s32.totalorder %s20, 0
    %p173 = por %p171, %p172
    %s175 = sadd.s32 %s174, 1
    %p178 = scmp.eq.s32.totalorder %s14, 1
    %p179 = scmp.ne.s32.totalorder %s174, %s176
    %p180 = scmp.eq.s32.totalorder %s14, 0
    %p181 = por %p179, %p180
    %p182 = scmp.ne.s32.totalorder %s174, %s176
    %p183 = scmp.eq.s32.totalorder %s19, 1
    %p184 = por %p182, %p183
    %p185 = scmp.ne.s32.totalorder %s176, %s177
    %p186 = scmp.eq.s32.totalorder %s19, 0
    %p187 = por %p185, %p186
    %p188 = scmp.ne.s32.totalorder %s176, %s177
    %p189 = scmp.eq.s32.totalorder %s20, 1
    %p190 = por %p188, %p189
    %p192 = scmp.ne.s32.totalorder %s177, %s191
    %p193 = scmp.eq.s32.totalorder %s20, 0
    %p194 = por %p192, %p193
    %s195 = ssub.s32 %s14, %s21
    %p196 = scmp.eq.s32.totalorder %s195, 0
    %s198 = sadd.s32 %s197, 1
    %s199 = scalar_select %p196, %s197, %s198
    %p202 = pneg %p196
    %p203 = scmp.eq.s32.totalorder %s14, 1
    %p204 = por %p202, %p203
    %p205 = scmp.ne.s32.totalorder %s197, %s200
    %p206 = scmp.eq.s32.totalorder %s14, 0
    %p207 = por %p205, %p206
    %p208 = scmp.ne.s32.totalorder %s197, %s200
    %p209 = scmp.eq.s32.totalorder %s19, 1
    %p210 = por %p208, %p209
    %p211 = scmp.ne.s32.totalorder %s200, %s201
    %p212 = scmp.eq.s32.totalorder %s19, 0
    %p213 = por %p211, %p212
    %p214 = scmp.ne.s32.totalorder %s200, %s201
    %p215 = scmp.eq.s32.totalorder %s20, 1
    %p216 = por %p214, %p215
    %p218 = scmp.ne.s32.totalorder %s201, %s217
    %p219 = scmp.eq.s32.totalorder %s20, 0
    %p220 = por %p218, %p219
    %p221 = scmp.le.s32.totalorder 1, %s14
    %p222 = scmp.lt.s32.totalorder %s14, 3
    %p223 = pnand %p221, %p222
    %p224 = pneg %p223
    // Predicated region
    $region9: #{bottleneck_forward.1} parent=5 // pred_check
      _
    $region10: #{bottleneck_forward.1} parent=5 // pred_check_branch
      %226 = sbr.rel (%p223) target = $region12
    $region11: #{bottleneck_forward.1} parent=5 // pred_region
      %s227 = ssub.s32 %s14, 1
      // Predicated region
      $region13: #{bottleneck_forward.1} parent=11 // pred_check
        %p228 = pneg %p61
      $region14: #{bottleneck_forward.1} parent=11 // pred_check_branch
        %230 = sbr.rel (%p228) target = $region16
      $region15: #{bottleneck_forward.1} parent=11 // pred_region
        _
      $region16: #{bottleneck_forward.1} parent=11 // pred_fallthru
        _
      // Predicated region
      $region17: #{bottleneck_forward.1} parent=11 // pred_check
        %p231 = pneg %p82
      $region18: #{bottleneck_forward.1} parent=11 // pred_check_branch
        %233 = sbr.rel (%p231) target = $region20
      $region19: #{bottleneck_forward.1} parent=11 // pred_region
        _
      $region20: #{bottleneck_forward.1} parent=11 // pred_fallthru
        _
      // Predicated region
      $region21: #{bottleneck_forward.1} parent=11 // pred_check
        %p234 = pneg %p103
      $region22: #{bottleneck_forward.1} parent=11 // pred_check_branch
        %236 = sbr.rel (%p234) target = $region24
      $region23: #{bottleneck_forward.1} parent=11 // pred_region
        _
      $region24: #{bottleneck_forward.1} parent=11 // pred_fallthru
        _
      // Predicated region
      $region25: #{bottleneck_forward.1} parent=11 // pred_check
        %p237 = pneg %p124
      $region26: #{bottleneck_forward.1} parent=11 // pred_check_branch
        %239 = sbr.rel (%p237) target = $region28
      $region27: #{bottleneck_forward.1} parent=11 // pred_region
        _
      $region28: #{bottleneck_forward.1} parent=11 // pred_fallthru
        _
      // Predicated region
      $region29: #{bottleneck_forward.1} parent=11 // pred_check
        %p240 = pneg %p145
      $region30: #{bottleneck_forward.1} parent=11 // pred_check_branch
        %242 = sbr.rel (%p240) target = $region32
      $region31: #{bottleneck_forward.1} parent=11 // pred_region
        _
      $region32: #{bottleneck_forward.1} parent=11 // pred_fallthru
        _
      // Predicated region
      $region33: #{bottleneck_forward.1} parent=11 // pred_check
        %p243 = pneg %p166
      $region34: #{bottleneck_forward.1} parent=11 // pred_check_branch
        %245 = sbr.rel (%p243) target = $region36
      $region35: #{bottleneck_forward.1} parent=11 // pred_region
        _
      $region36: #{bottleneck_forward.1} parent=11 // pred_fallthru
        _
      // Predicated region
      $region37: #{bottleneck_forward.1} parent=11 // pred_check
        %p246 = pneg %p187
      $region38: #{bottleneck_forward.1} parent=11 // pred_check_branch
        %248 = sbr.rel (%p246) target = $region40
      $region39: #{bottleneck_forward.1} parent=11 // pred_region
        _
      $region40: #{bottleneck_forward.1} parent=11 // pred_fallthru
        _
    $region12: #{bottleneck_forward.1} parent=5 // pred_fallthru
      _
    %p249 = scmp.lt.s32.totalorder %s14, 2
    // Predicated region
    $region41: #{bottleneck_forward.1} parent=5 // pred_check
      %p250 = pneg %p249
    $region42: #{bottleneck_forward.1} parent=5 // pred_check_branch
      %252 = sbr.rel (%p250) target = $region44
    $region43: #{bottleneck_forward.1} parent=5 // pred_region
      // Predicated region
      $region45: #{bottleneck_forward.1} parent=43 // pred_check
        %p253 = pneg %p34
      $region46: #{bottleneck_forward.1} parent=43 // pred_check_branch
        %255 = sbr.rel (%p253) target = $region48
      $region47: #{bottleneck_forward.1} parent=43 // pred_region
        %p256 = scmp.lt.s32.totalorder %s14, 1
        %s257 = scalar_select %p256, %s14, 1
        %s258 = smul.addr %s257, 36
        %s259 = smul.addr %s258, 4
        %s260 = scalar_lea.vmem %s0, %s259
      $region48: #{bottleneck_forward.1} parent=43 // pred_fallthru
        _
    $region44: #{bottleneck_forward.1} parent=5 // pred_fallthru
      _
    %p261 = scmp.le.s32.totalorder 1, %s14
    %p262 = scmp.lt.s32.totalorder %s14, 3
    %p263 = pnand %p261, %p262
    %p264 = pneg %p263
    // Predicated region
    $region49: #{bottleneck_forward.1} parent=5 // pred_check
      _
    $region50: #{bottleneck_forward.1} parent=5 // pred_check_branch
      %266 = sbr.rel (%p263) target = $region52
    $region51: #{bottleneck_forward.1} parent=5 // pred_region
      %s267 = ssub.s32 %s14, 1
      %p268 = scmp.lt.s32.totalorder %s19, 1
      %s269 = scalar_select %p268, %s19, 1
      %s270 = smul.addr %s269, 36
      %s271 = smul.addr %s270, 4
      %s272 = scalar_lea.vmem %s0, %s271
      %p273 = pneg %p40
      %p274 = pneg %p37
      %p275 = pneg %p61
      %p276 = pneg %p58
      %p277 = pneg %p82
      %p278 = pneg %p79
      %p279 = pneg %p103
      %p280 = pneg %p100
      %p281 = pneg %p124
      %p282 = pneg %p121
      %p283 = pneg %p145
      %p284 = pneg %p142
      %p285 = pneg %p166
      %p286 = pneg %p163
      %p287 = pneg %p187
      %p288 = pneg %p184
      %p289 = pneg %p213
      %p290 = pneg %p210
      %p291 = scmp.lt.s32.totalorder %s19, 1
      %s292 = scalar_select %p291, %s19, 1
      %s293 = smul.addr %s292, 36
      %s294 = smul.addr %s293, 8
      %s295 = scalar_lea.vmem %s8, %s294
      %p296 = scmp.lt.s32.totalorder %s19, 1
      %s297 = scalar_select %p296, %s19, 1
      %s298 = smul.addr %s297, 36
      %s299 = smul.addr %s298, 4
      %s300 = scalar_lea.vmem %s0, %s299
      %p301 = scmp.lt.s32.totalorder %s19, 1
      %s302 = scalar_select %p301, %s19, 1
      %s303 = smul.addr %s302, 36
      %s304 = smul.addr %s303, 8
      %s305 = scalar_lea.vmem %s8, %s304
      %v307 = vld [vmem:[%s300] sm:$0xf]
      %v308 = vld [vmem:[%s300 + $0x4] sm:$0xf]
      %v309 = vld [vmem:[%s300 + $0x8] sm:$0xf]
      %v310 = vld [vmem:[%s300 + $0xc] sm:$0xf]
      %v311 = vld [vmem:[%s300 + $0x10] sm:$0xf]
      %v312 = vld [vmem:[%s300 + $0x14] sm:$0xf]
      %v313 = vld [vmem:[%s300 + $0x18] sm:$0xf]
      %v314 = vld [vmem:[%s300 + $0x1c] sm:$0xf]
      %v315 = vld [vmem:[%s300 + $0x20] sm:$0xf]
      %v316 = vld [vmem:[%s300 + $0x24] sm:$0xf]
      %v317 = vld [vmem:[%s300 + $0x28] sm:$0xf]
      %v318 = vld [vmem:[%s300 + $0x2c] sm:$0xf]
      %v319 = vld [vmem:[%s300 + $0x30] sm:$0xf]
      %v320 = vld [vmem:[%s300 + $0x34] sm:$0xf]
      %v321 = vld [vmem:[%s300 + $0x38] sm:$0xf]
      %v322 = vld [vmem:[%s300 + $0x3c] sm:$0xf]
      %v323 = vld [vmem:[%s300 + $0x40] sm:$0xf]
      %v324 = vld [vmem:[%s300 + $0x44] sm:$0xf]
      %v325 = vld [vmem:[%s300 + $0x48] sm:$0xf]
      %v326 = vld [vmem:[%s300 + $0x4c] sm:$0xf]
      %v327 = vld [vmem:[%s300 + $0x50] sm:$0xf]
      %v328 = vld [vmem:[%s300 + $0x54] sm:$0xf]
      %v329 = vld [vmem:[%s300 + $0x58] sm:$0xf]
      %v330 = vld [vmem:[%s300 + $0x5c] sm:$0xf]
      %v331 = vld [vmem:[%s300 + $0x60] sm:$0xf]
      %v332 = vld [vmem:[%s300 + $0x64] sm:$0xf]
      %v333 = vld [vmem:[%s300 + $0x68] sm:$0xf]
      %v334 = vld [vmem:[%s300 + $0x6c] sm:$0xf]
      %v335 = vld [vmem:[%s300 + $0x70] sm:$0xf]
      %v336 = vld [vmem:[%s300 + $0x74] sm:$0xf]
      %v337 = vld [vmem:[%s300 + $0x78] sm:$0xf]
      %v338 = vld [vmem:[%s300 + $0x7c] sm:$0xf]
      %v339 = vld [vmem:[%s300 + $0x80] sm:$0xf]
      %v340 = vld [vmem:[%s300 + $0x84] sm:$0xf]
      %v341 = vld [vmem:[%s300 + $0x88] sm:$0xf]
      %v342 = vld [vmem:[%s300 + $0x8c] sm:$0xf]
      %v343 = vld [vmem:[%s2] sm:$0xf]
      %v344 = vld [vmem:[%s2 + $0x4] sm:$0xf]
      %v345 = vld [vmem:[%s3] sm:$0x1]
      %v347 = vlaneseq
      %v348 = vshrl.u32 %v347, 7
      %v349 = vsub.s32 0, %v348
      %v350 = vrot.slane %v345, %v349
      %v388 = vunpack.c.l.b16 %v307
      %v389 = vunpack.c.l.b16 %v308
      %v390 = vunpack.c.l.b16 %v309
      %v391 = vunpack.c.l.b16 %v310
      %v392 = vunpack.c.l.b16 %v311
      %v393 = vunpack.c.l.b16 %v312
      %v394 = vunpack.c.l.b16 %v313
      %v395 = vunpack.c.l.b16 %v314
      %v396 = vunpack.c.l.b16 %v315
      %v397 = vunpack.c.l.b16 %v316
      %v398 = vunpack.c.l.b16 %v317
      %v399 = vunpack.c.l.b16 %v318
      %v400 = vunpack.c.l.b16 %v319
      %v401 = vunpack.c.l.b16 %v320
      %v402 = vunpack.c.l.b16 %v321
      %v403 = vunpack.c.l.b16 %v322
      %v404 = vunpack.c.l.b16 %v323
      %v405 = vunpack.c.l.b16 %v324
      %v406 = vunpack.c.l.b16 %v325
      %v407 = vunpack.c.l.b16 %v326
      %v408 = vunpack.c.l.b16 %v327
      %v409 = vunpack.c.l.b16 %v328
      %v410 = vunpack.c.l.b16 %v329
      %v411 = vunpack.c.l.b16 %v330
      %v412 = vunpack.c.l.b16 %v331
      %v413 = vunpack.c.l.b16 %v332
      %v414 = vunpack.c.l.b16 %v333
      %v415 = vunpack.c.l.b16 %v334
      %v416 = vunpack.c.l.b16 %v335
      %v417 = vunpack.c.l.b16 %v336
      %v418 = vunpack.c.l.b16 %v337
      %v419 = vunpack.c.l.b16 %v338
      %v420 = vunpack.c.l.b16 %v339
      %v421 = vunpack.c.l.b16 %v340
      %v422 = vunpack.c.l.b16 %v341
      %v423 = vunpack.c.l.b16 %v342
      %v424 = vpack.c.b16 %v389, %v388
      %v425 = vpack.c.b16 %v391, %v390
      %v426 = vpack.c.b16 %v393, %v392
      %v427 = vpack.c.b16 %v395, %v394
      %v428 = vpack.c.b16 %v397, %v396
      %v429 = vpack.c.b16 %v399, %v398
      %v430 = vpack.c.b16 %v401, %v400
      %v431 = vpack.c.b16 %v403, %v402
      %v432 = vpack.c.b16 %v405, %v404
      %v433 = vpack.c.b16 %v407, %v406
      %v434 = vpack.c.b16 %v409, %v408
      %v435 = vpack.c.b16 %v411, %v410
      %v436 = vpack.c.b16 %v413, %v412
      %v437 = vpack.c.b16 %v415, %v414
      %v438 = vpack.c.b16 %v417, %v416
      %v439 = vpack.c.b16 %v419, %v418
      %v440 = vpack.c.b16 %v421, %v420
      %v441 = vpack.c.b16 %v423, %v422
      %v444 = vunpack.c.l.b16 %v343
      %v445 = vunpack.c.l.b16 %v344
      %v446 = vpack.c.b16 %v445, %v444
      %vm448 = vcmask 130048
      %v450 = vsel %vm448, %v424, 0
      %v453 = vsel %vm448, %v425, 0
      %v456 = vsel %vm448, %v426, 0
      %v459 = vsel %vm448, %v427, 0
      %v462 = vsel %vm448, %v428, 0
      %v465 = vsel %vm448, %v429, 0
      %v468 = vsel %vm448, %v430, 0
      %v471 = vsel %vm448, %v431, 0
      %v474 = vsel %vm448, %v432, 0
      %v477 = vsel %vm448, %v433, 0
      %v480 = vsel %vm448, %v434, 0
      %v483 = vsel %vm448, %v435, 0
      %v486 = vsel %vm448, %v436, 0
      %v489 = vsel %vm448, %v437, 0
      %v492 = vsel %vm448, %v438, 0
      %v495 = vsel %vm448, %v439, 0
      %v498 = vsel %vm448, %v440, 0
      %v501 = vsel %vm448, %v441, 0
      %503 = vmatprep.subr.bf16.mxu0 0
      %504 = vmatpush1.bf16.msra.mxu0 0
      %505 = vmatprep.subr.bf16.mxu0 0
      %506 = vmatpush1.bf16.msra.mxu0 0
      %507 = vmatprep.subr.bf16.mxu0 0
      %508 = vmatpush1.bf16.msra.mxu0 0
      %509 = vmatprep.subr.bf16.mxu0 0
      %510 = vmatpush1.bf16.msra.mxu0 0
      %511 = vmatprep.subr.bf16.mxu0 0
      %512 = vmatpush1.bf16.msra.mxu0 0
      %513 = vmatprep.subr.bf16.mxu0 0
      %514 = vmatpush1.bf16.msra.mxu0 0
      %515 = vmatprep.subr.bf16.mxu0 0
      %516 = vmatpush1.bf16.msra.mxu0 0
      %517 = vmatprep.subr.bf16.mxu0 0
      %518 = vmatpush1.bf16.msra.mxu0 %v446
      %519 = vmatprep.subr.bf16.mxu0 0
      %520 = vmatpush2.bf16.msra.mxu0 0
      %521 = vmatprep.subr.bf16.mxu0 0
      %522 = vmatpush2.bf16.msra.mxu0 0
      %523 = vmatprep.subr.bf16.mxu0 0
      %524 = vmatpush2.bf16.msra.mxu0 0
      %525 = vmatprep.subr.bf16.mxu0 0
      %526 = vmatpush2.bf16.msra.mxu0 0
      %527 = vmatprep.subr.bf16.mxu0 0
      %528 = vmatpush2.bf16.msra.mxu0 0
      %529 = vmatprep.subr.bf16.mxu0 0
      %530 = vmatpush2.bf16.msra.mxu0 0
      %531 = vmatprep.subr.bf16.mxu0 0
      %532 = vmatpush2.bf16.msra.mxu0 0
      %533 = vmatprep.subr.bf16.mxu0 0
      %534 = vmatpush2.bf16.msra.mxu0 0
      %535 = vmatprep.mubr.bf16.mxu0 0
      %536 = vmatmul.mubr.bf16.gmra.mxu0 %v450
      %v537 = vpop.f32.mrf.mxu0
      %v538 = vadd.f32 %v350, %v537
      %v539 = vpop.f32.mrf.mxu0
      %v540 = vpop.f32.mrf.mxu0
      %v541 = vadd.f32 %v350, %v540
      %v542 = vpop.f32.mrf.mxu0
      %543 = vmatprep.mubr.bf16.mxu0 0
      %544 = vmatmul.mubr.bf16.gmra.mxu0 %v453
      %v545 = vpop.f32.mrf.mxu0
      %v546 = vadd.f32 %v350, %v545
      %v547 = vpop.f32.mrf.mxu0
      %v548 = vpop.f32.mrf.mxu0
      %v549 = vadd.f32 %v350, %v548
      %v550 = vpop.f32.mrf.mxu0
      %551 = vmatprep.mubr.bf16.mxu0 0
      %552 = vmatmul.mubr.bf16.gmra.mxu0 %v456
      %v553 = vpop.f32.mrf.mxu0
      %v554 = vadd.f32 %v350, %v553
      %v555 = vpop.f32.mrf.mxu0
      %v556 = vpop.f32.mrf.mxu0
      %v557 = vadd.f32 %v350, %v556
      %v558 = vpop.f32.mrf.mxu0
      %559 = vmatprep.mubr.bf16.mxu0 0
      %560 = vmatmul.mubr.bf16.gmra.mxu0 %v459
      %v561 = vpop.f32.mrf.mxu0
      %v562 = vadd.f32 %v350, %v561
      %v563 = vpop.f32.mrf.mxu0
      %v564 = vpop.f32.mrf.mxu0
      %v565 = vadd.f32 %v350, %v564
      %v566 = vpop.f32.mrf.mxu0
      %567 = vmatprep.mubr.bf16.mxu0 0
      %568 = vmatmul.mubr.bf16.gmra.mxu0 %v462
      %v569 = vpop.f32.mrf.mxu0
      %v570 = vadd.f32 %v350, %v569
      %v571 = vpop.f32.mrf.mxu0
      %v572 = vpop.f32.mrf.mxu0
      %v573 = vadd.f32 %v350, %v572
      %v574 = vpop.f32.mrf.mxu0
      %575 = vmatprep.mubr.bf16.mxu0 0
      %576 = vmatmul.mubr.bf16.gmra.mxu0 %v465
      %v577 = vpop.f32.mrf.mxu0
      %v578 = vadd.f32 %v350, %v577
      %v579 = vpop.f32.mrf.mxu0
      %v580 = vpop.f32.mrf.mxu0
      %v581 = vadd.f32 %v350, %v580
      %v582 = vpop.f32.mrf.mxu0
      %583 = vmatprep.mubr.bf16.mxu0 0
      %584 = vmatmul.mubr.bf16.gmra.mxu0 %v468
      %v585 = vpop.f32.mrf.mxu0
      %v586 = vadd.f32 %v350, %v585
      %v587 = vpop.f32.mrf.mxu0
      %v588 = vpop.f32.mrf.mxu0
      %v589 = vadd.f32 %v350, %v588
      %v590 = vpop.f32.mrf.mxu0
      %591 = vmatprep.mubr.bf16.mxu0 0
      %592 = vmatmul.mubr.bf16.gmra.mxu0 %v471
      %v593 = vpop.f32.mrf.mxu0
      %v594 = vadd.f32 %v350, %v593
      %v595 = vpop.f32.mrf.mxu0
      %v596 = vpop.f32.mrf.mxu0
      %v597 = vadd.f32 %v350, %v596
      %v598 = vpop.f32.mrf.mxu0
      %599 = vmatprep.mubr.bf16.mxu0 0
      %600 = vmatmul.mubr.bf16.gmra.mxu0 %v474
      %v601 = vpop.f32.mrf.mxu0
      %v602 = vadd.f32 %v350, %v601
      %v603 = vpop.f32.mrf.mxu0
      %v604 = vpop.f32.mrf.mxu0
      %v605 = vadd.f32 %v350, %v604
      %v606 = vpop.f32.mrf.mxu0
      %607 = vmatprep.mubr.bf16.mxu0 0
      %608 = vmatmul.mubr.bf16.gmra.mxu0 %v477
      %v609 = vpop.f32.mrf.mxu0
      %v610 = vadd.f32 %v350, %v609
      %v611 = vpop.f32.mrf.mxu0
      %v612 = vpop.f32.mrf.mxu0
      %v613 = vadd.f32 %v350, %v612
      %v614 = vpop.f32.mrf.mxu0
      %615 = vmatprep.mubr.bf16.mxu0 0
      %616 = vmatmul.mubr.bf16.gmra.mxu0 %v480
      %v617 = vpop.f32.mrf.mxu0
      %v618 = vadd.f32 %v350, %v617
      %v619 = vpop.f32.mrf.mxu0
      %v620 = vpop.f32.mrf.mxu0
      %v621 = vadd.f32 %v350, %v620
      %v622 = vpop.f32.mrf.mxu0
      %623 = vmatprep.mubr.bf16.mxu0 0
      %624 = vmatmul.mubr.bf16.gmra.mxu0 %v483
      %v625 = vpop.f32.mrf.mxu0
      %v626 = vadd.f32 %v350, %v625
      %v627 = vpop.f32.mrf.mxu0
      %v628 = vpop.f32.mrf.mxu0
      %v629 = vadd.f32 %v350, %v628
      %v630 = vpop.f32.mrf.mxu0
      %631 = vmatprep.mubr.bf16.mxu0 0
      %632 = vmatmul.mubr.bf16.gmra.mxu0 %v486
      %v633 = vpop.f32.mrf.mxu0
      %v634 = vadd.f32 %v350, %v633
      %v635 = vpop.f32.mrf.mxu0
      %v636 = vpop.f32.mrf.mxu0
      %v637 = vadd.f32 %v350, %v636
      %v638 = vpop.f32.mrf.mxu0
      %639 = vmatprep.mubr.bf16.mxu0 0
      %640 = vmatmul.mubr.bf16.gmra.mxu0 %v489
      %v641 = vpop.f32.mrf.mxu0
      %v642 = vadd.f32 %v350, %v641
      %v643 = vpop.f32.mrf.mxu0
      %v644 = vpop.f32.mrf.mxu0
      %v645 = vadd.f32 %v350, %v644
      %v646 = vpop.f32.mrf.mxu0
      %647 = vmatprep.mubr.bf16.mxu0 0
      %648 = vmatmul.mubr.bf16.gmra.mxu0 %v492
      %v649 = vpop.f32.mrf.mxu0
      %v650 = vadd.f32 %v350, %v649
      %v651 = vpop.f32.mrf.mxu0
      %v652 = vpop.f32.mrf.mxu0
      %v653 = vadd.f32 %v350, %v652
      %v654 = vpop.f32.mrf.mxu0
      %655 = vmatprep.mubr.bf16.mxu0 0
      %656 = vmatmul.mubr.bf16.gmra.mxu0 %v495
      %v657 = vpop.f32.mrf.mxu0
      %v658 = vadd.f32 %v350, %v657
      %v659 = vpop.f32.mrf.mxu0
      %v660 = vpop.f32.mrf.mxu0
      %v661 = vadd.f32 %v350, %v660
      %v662 = vpop.f32.mrf.mxu0
      %663 = vmatprep.mubr.bf16.mxu0 0
      %664 = vmatmul.mubr.bf16.gmra.mxu0 %v498
      %v665 = vpop.f32.mrf.mxu0
      %v666 = vadd.f32 %v350, %v665
      %v667 = vpop.f32.mrf.mxu0
      %v668 = vpop.f32.mrf.mxu0
      %v669 = vadd.f32 %v350, %v668
      %v670 = vpop.f32.mrf.mxu0
      %671 = vmatprep.mubr.bf16.mxu0 0
      %672 = vmatmul.mubr.bf16.gmra.mxu0 %v501
      %v673 = vpop.f32.mrf.mxu0
      %v674 = vadd.f32 %v350, %v673
      %v675 = vpop.f32.mrf.mxu0
      %v676 = vpop.f32.mrf.mxu0
      %v677 = vadd.f32 %v350, %v676
      %v678 = vpop.f32.mrf.mxu0
      %679 = vdwg.mxu0
      %v680 = vmax.f32 %v538, 0.0
      %v681 = vmax.f32 %v541, 0.0
      %v682 = vmax.f32 %v546, 0.0
      %v683 = vmax.f32 %v549, 0.0
      %v684 = vmax.f32 %v554, 0.0
      %v685 = vmax.f32 %v557, 0.0
      %v686 = vmax.f32 %v562, 0.0
      %v687 = vmax.f32 %v565, 0.0
      %v688 = vmax.f32 %v570, 0.0
      %v689 = vmax.f32 %v573, 0.0
      %v690 = vmax.f32 %v578, 0.0
      %v691 = vmax.f32 %v581, 0.0
      %v692 = vmax.f32 %v586, 0.0
      %v693 = vmax.f32 %v589, 0.0
      %v694 = vmax.f32 %v594, 0.0
      %v695 = vmax.f32 %v597, 0.0
      %v696 = vmax.f32 %v602, 0.0
      %v697 = vmax.f32 %v605, 0.0
      %v698 = vmax.f32 %v610, 0.0
      %v699 = vmax.f32 %v613, 0.0
      %v700 = vmax.f32 %v618, 0.0
      %v701 = vmax.f32 %v621, 0.0
      %v702 = vmax.f32 %v626, 0.0
      %v703 = vmax.f32 %v629, 0.0
      %v704 = vmax.f32 %v634, 0.0
      %v705 = vmax.f32 %v637, 0.0
      %v706 = vmax.f32 %v642, 0.0
      %v707 = vmax.f32 %v645, 0.0
      %v708 = vmax.f32 %v650, 0.0
      %v709 = vmax.f32 %v653, 0.0
      %v710 = vmax.f32 %v658, 0.0
      %v711 = vmax.f32 %v661, 0.0
      %v712 = vmax.f32 %v666, 0.0
      %v713 = vmax.f32 %v669, 0.0
      %v714 = vmax.f32 %v674, 0.0
      %v715 = vmax.f32 %v677, 0.0
      %v716 = vld [vmem:[%s1] sm:$0xf]
      %v717 = vld [vmem:[%s1 + $0x4] sm:$0xf]
      %v718 = vld [vmem:[%s1 + $0x8] sm:$0xf]
      %v719 = vld [vmem:[%s1 + $0xc] sm:$0xf]
      %v720 = vld [vmem:[%s1 + $0x10] sm:$0xf]
      %v721 = vld [vmem:[%s1 + $0x14] sm:$0xf]
      %v722 = vld [vmem:[%s1 + $0x18] sm:$0xf]
      %v723 = vld [vmem:[%s1 + $0x1c] sm:$0xf]
      %v724 = vld [vmem:[%s1 + $0x20] sm:$0xf]
      %v725 = vld [vmem:[%s1 + $0x24] sm:$0xf]
      %v726 = vld [vmem:[%s1 + $0x28] sm:$0xf]
      %v727 = vld [vmem:[%s1 + $0x2c] sm:$0xf]
      %v728 = vld [vmem:[%s1 + $0x30] sm:$0xf]
      %v729 = vld [vmem:[%s1 + $0x34] sm:$0xf]
      %v730 = vld [vmem:[%s1 + $0x38] sm:$0xf]
      %v731 = vld [vmem:[%s1 + $0x3c] sm:$0xf]
      %v732 = vld [vmem:[%s1 + $0x40] sm:$0xf]
      %v733 = vld [vmem:[%s1 + $0x44] sm:$0xf]
      %v734 = vld [vmem:[%s1 + $0x48] sm:$0xf]
      %v735 = vld [vmem:[%s1 + $0x4c] sm:$0xf]
      %v736 = vld [vmem:[%s1 + $0x50] sm:$0xf]
      %v737 = vld [vmem:[%s1 + $0x54] sm:$0xf]
      %v738 = vld [vmem:[%s1 + $0x58] sm:$0xf]
      %v739 = vld [vmem:[%s1 + $0x5c] sm:$0xf]
      %v740 = vld [vmem:[%s1 + $0x60] sm:$0xf]
      %v741 = vld [vmem:[%s1 + $0x64] sm:$0xf]
      %v742 = vld [vmem:[%s1 + $0x68] sm:$0xf]
      %v743 = vld [vmem:[%s1 + $0x6c] sm:$0xf]
      %v744 = vld [vmem:[%s1 + $0x70] sm:$0xf]
      %v745 = vld [vmem:[%s1 + $0x74] sm:$0xf]
      %v746 = vld [vmem:[%s1 + $0x78] sm:$0xf]
      %v747 = vld [vmem:[%s1 + $0x7c] sm:$0xf]
      %v748 = vld [vmem:[%s1 + $0x80] sm:$0xf]
      %v749 = vld [vmem:[%s1 + $0x84] sm:$0xf]
      %v750 = vld [vmem:[%s1 + $0x88] sm:$0xf]
      %v751 = vld [vmem:[%s1 + $0x8c] sm:$0xf]
      %v752 = vunpack.c.l.bf16 %v716
      %v753 = vunpack.c.l.bf16 %v717
      %v754 = vunpack.c.l.bf16 %v718
      %v755 = vunpack.c.l.bf16 %v719
      %v756 = vunpack.c.l.bf16 %v720
      %v757 = vunpack.c.l.bf16 %v721
      %v758 = vunpack.c.l.bf16 %v722
      %v759 = vunpack.c.l.bf16 %v723
      %v760 = vunpack.c.l.bf16 %v724
      %v761 = vunpack.c.l.bf16 %v725
      %v762 = vunpack.c.l.bf16 %v726
      %v763 = vunpack.c.l.bf16 %v727
      %v764 = vunpack.c.l.bf16 %v728
      %v765 = vunpack.c.l.bf16 %v729
      %v766 = vunpack.c.l.bf16 %v730
      %v767 = vunpack.c.l.bf16 %v731
      %v768 = vunpack.c.l.bf16 %v732
      %v769 = vunpack.c.l.bf16 %v733
      %v770 = vunpack.c.l.bf16 %v734
      %v771 = vunpack.c.l.bf16 %v735
      %v772 = vunpack.c.l.bf16 %v736
      %v773 = vunpack.c.l.bf16 %v737
      %v774 = vunpack.c.l.bf16 %v738
      %v775 = vunpack.c.l.bf16 %v739
      %v776 = vunpack.c.l.bf16 %v740
      %v777 = vunpack.c.l.bf16 %v741
      %v778 = vunpack.c.l.bf16 %v742
      %v779 = vunpack.c.l.bf16 %v743
      %v780 = vunpack.c.l.bf16 %v744
      %v781 = vunpack.c.l.bf16 %v745
      %v782 = vunpack.c.l.bf16 %v746
      %v783 = vunpack.c.l.bf16 %v747
      %v784 = vunpack.c.l.bf16 %v748
      %v785 = vunpack.c.l.bf16 %v749
      %v786 = vunpack.c.l.bf16 %v750
      %v787 = vunpack.c.l.bf16 %v751
      %789 = vset.pattern.permute.xlu0 0
      %790 = vperm.xlu0 %789, %v752
      %v791 = vpop.permute.xlu0 %790
      %794 = vset.pattern.permute.xlu0 0
      %795 = vperm.xlu0 %794, %v753
      %v796 = vpop.permute.xlu0 %795
      %799 = vset.pattern.permute.xlu0 0
      %800 = vperm.xlu0 %799, %v754
      %v801 = vpop.permute.xlu0 %800
      %804 = vset.pattern.permute.xlu0 0
      %805 = vperm.xlu0 %804, %v755
      %v806 = vpop.permute.xlu0 %805
      %809 = vset.pattern.permute.xlu0 0
      %810 = vperm.xlu0 %809, %v756
      %v811 = vpop.permute.xlu0 %810
      %814 = vset.pattern.permute.xlu0 0
      %815 = vperm.xlu0 %814, %v757
      %v816 = vpop.permute.xlu0 %815
      %819 = vset.pattern.permute.xlu0 0
      %820 = vperm.xlu0 %819, %v758
      %v821 = vpop.permute.xlu0 %820
      %824 = vset.pattern.permute.xlu0 0
      %825 = vperm.xlu0 %824, %v759
      %v826 = vpop.permute.xlu0 %825
      %829 = vset.pattern.permute.xlu0 0
      %830 = vperm.xlu0 %829, %v760
      %v831 = vpop.permute.xlu0 %830
      %834 = vset.pattern.permute.xlu0 0
      %835 = vperm.xlu0 %834, %v761
      %v836 = vpop.permute.xlu0 %835
      %839 = vset.pattern.permute.xlu0 0
      %840 = vperm.xlu0 %839, %v762
      %v841 = vpop.permute.xlu0 %840
      %844 = vset.pattern.permute.xlu0 0
      %845 = vperm.xlu0 %844, %v763
      %v846 = vpop.permute.xlu0 %845
      %849 = vset.pattern.permute.xlu0 0
      %850 = vperm.xlu0 %849, %v764
      %v851 = vpop.permute.xlu0 %850
      %854 = vset.pattern.permute.xlu0 0
      %855 = vperm.xlu0 %854, %v765
      %v856 = vpop.permute.xlu0 %855
      %859 = vset.pattern.permute.xlu0 0
      %860 = vperm.xlu0 %859, %v766
      %v861 = vpop.permute.xlu0 %860
      %864 = vset.pattern.permute.xlu0 0
      %865 = vperm.xlu0 %864, %v767
      %v866 = vpop.permute.xlu0 %865
      %869 = vset.pattern.permute.xlu0 0
      %870 = vperm.xlu0 %869, %v768
      %v871 = vpop.permute.xlu0 %870
      %874 = vset.pattern.permute.xlu0 0
      %875 = vperm.xlu0 %874, %v769
      %v876 = vpop.permute.xlu0 %875
      %879 = vset.pattern.permute.xlu0 0
      %880 = vperm.xlu0 %879, %v770
      %v881 = vpop.permute.xlu0 %880
      %884 = vset.pattern.permute.xlu0 0
      %885 = vperm.xlu0 %884, %v771
      %v886 = vpop.permute.xlu0 %885
      %889 = vset.pattern.permute.xlu0 0
      %890 = vperm.xlu0 %889, %v772
      %v891 = vpop.permute.xlu0 %890
      %894 = vset.pattern.permute.xlu0 0
      %895 = vperm.xlu0 %894, %v773
      %v896 = vpop.permute.xlu0 %895
      %899 = vset.pattern.permute.xlu0 0
      %900 = vperm.xlu0 %899, %v774
      %v901 = vpop.permute.xlu0 %900
      %904 = vset.pattern.permute.xlu0 0
      %905 = vperm.xlu0 %904, %v775
      %v906 = vpop.permute.xlu0 %905
      %909 = vset.pattern.permute.xlu0 0
      %910 = vperm.xlu0 %909, %v776
      %v911 = vpop.permute.xlu0 %910
      %914 = vset.pattern.permute.xlu0 0
      %915 = vperm.xlu0 %914, %v777
      %v916 = vpop.permute.xlu0 %915
      %919 = vset.pattern.permute.xlu0 0
      %920 = vperm.xlu0 %919, %v778
      %v921 = vpop.permute.xlu0 %920
      %924 = vset.pattern.permute.xlu0 0
      %925 = vperm.xlu0 %924, %v779
      %v926 = vpop.permute.xlu0 %925
      %929 = vset.pattern.permute.xlu0 0
      %930 = vperm.xlu0 %929, %v780
      %v931 = vpop.permute.xlu0 %930
      %934 = vset.pattern.permute.xlu0 0
      %935 = vperm.xlu0 %934, %v781
      %v936 = vpop.permute.xlu0 %935
      %939 = vset.pattern.permute.xlu0 0
      %940 = vperm.xlu0 %939, %v782
      %v941 = vpop.permute.xlu0 %940
      %944 = vset.pattern.permute.xlu0 0
      %945 = vperm.xlu0 %944, %v783
      %v946 = vpop.permute.xlu0 %945
      %949 = vset.pattern.permute.xlu0 0
      %950 = vperm.xlu0 %949, %v784
      %v951 = vpop.permute.xlu0 %950
      %954 = vset.pattern.permute.xlu0 0
      %955 = vperm.xlu0 %954, %v785
      %v956 = vpop.permute.xlu0 %955
      %959 = vset.pattern.permute.xlu0 0
      %960 = vperm.xlu0 %959, %v786
      %v961 = vpop.permute.xlu0 %960
      %964 = vset.pattern.permute.xlu0 0
      %965 = vperm.xlu0 %964, %v787
      %v966 = vpop.permute.xlu0 %965
      %v968 = vmul.f32 %v680, %v791
      %v969 = vmul.f32 %v681, %v796
      %v970 = vmul.f32 %v682, %v801
      %v971 = vmul.f32 %v683, %v806
      %v972 = vmul.f32 %v684, %v811
      %v973 = vmul.f32 %v685, %v816
      %v974 = vmul.f32 %v686, %v821
      %v975 = vmul.f32 %v687, %v826
      %v976 = vmul.f32 %v688, %v831
      %v977 = vmul.f32 %v689, %v836
      %v978 = vmul.f32 %v690, %v841
      %v979 = vmul.f32 %v691, %v846
      %v980 = vmul.f32 %v692, %v851
      %v981 = vmul.f32 %v693, %v856
      %v982 = vmul.f32 %v694, %v861
      %v983 = vmul.f32 %v695, %v866
      %v984 = vmul.f32 %v696, %v871
      %v985 = vmul.f32 %v697, %v876
      %v986 = vmul.f32 %v698, %v881
      %v987 = vmul.f32 %v699, %v886
      %v988 = vmul.f32 %v700, %v891
      %v989 = vmul.f32 %v701, %v896
      %v990 = vmul.f32 %v702, %v901
      %v991 = vmul.f32 %v703, %v906
      %v992 = vmul.f32 %v704, %v911
      %v993 = vmul.f32 %v705, %v916
      %v994 = vmul.f32 %v706, %v921
      %v995 = vmul.f32 %v707, %v926
      %v996 = vmul.f32 %v708, %v931
      %v997 = vmul.f32 %v709, %v936
      %v998 = vmul.f32 %v710, %v941
      %v999 = vmul.f32 %v711, %v946
      %v1000 = vmul.f32 %v712, %v951
      %v1001 = vmul.f32 %v713, %v956
      %v1002 = vmul.f32 %v714, %v961
      %v1003 = vmul.f32 %v715, %v966
      %v1004 = vpack.c.bf16 %v969, %v968
      %v1005 = vpack.c.bf16 %v971, %v970
      %v1006 = vpack.c.bf16 %v973, %v972
      %v1007 = vpack.c.bf16 %v975, %v974
      %v1008 = vpack.c.bf16 %v977, %v976
      %v1009 = vpack.c.bf16 %v979, %v978
      %v1010 = vpack.c.bf16 %v981, %v980
      %v1011 = vpack.c.bf16 %v983, %v982
      %v1012 = vpack.c.bf16 %v985, %v984
      %v1013 = vpack.c.bf16 %v987, %v986
      %v1014 = vpack.c.bf16 %v989, %v988
      %v1015 = vpack.c.bf16 %v991, %v990
      %v1016 = vpack.c.bf16 %v993, %v992
      %v1017 = vpack.c.bf16 %v995, %v994
      %v1018 = vpack.c.bf16 %v997, %v996
      %v1019 = vpack.c.bf16 %v999, %v998
      %v1020 = vpack.c.bf16 %v1001, %v1000
      %v1021 = vpack.c.bf16 %v1003, %v1002
      %vm1022 = vcmask 93184
      %1023 = vst.msk [vmem:[#allocation2] sm:$0xf] %vm1022, 0
      %1024 = vst.msk [vmem:[#allocation2 + $0x4] sm:$0xf] %vm1022, 0
      %vm1025 = vcmask 91136
      %vm1026 = vsmask.f32 1280
      %vm1027 = vmand %vm1025, %vm1026
      %v1028 = vld [vmem:[#allocation2 + $0x8] sm:$0x3]
      %v1029 = vsel %vm1027, 0, %v1028
      %1030 = vst [vmem:[#allocation2 + $0x8] sm:$0x3] %v1029
      %vm1031 = vcmask 93184
      %vm1032 = vsmask.f32 7938
      %vm1033 = vmand %vm1031, %vm1032
      %v1034 = vld [vmem:[#allocation2 + $0x98] sm:$0xf]
      %v1035 = vsel %vm1033, 0, %v1034
      %1036 = vst [vmem:[#allocation2 + $0x98] sm:$0xf] %v1035
      %1037 = vst.msk [vmem:[#allocation2 + $0x9c] sm:$0xf] %vm1022, 0
      %vm1038 = vcmask 91136
      %1039 = vst.msk [vmem:[#allocation2 + $0xa0] sm:$0x3] %vm1038, 0
      %v1058 = vunpack.c.l.b16 %v1004
      %v1059 = vunpack.c.h.b16 %v1004
      %v1060 = vunpack.c.l.b16 %v1005
      %v1061 = vunpack.c.h.b16 %v1005
      %v1062 = vunpack.c.l.b16 %v1006
      %v1063 = vunpack.c.h.b16 %v1006
      %v1064 = vunpack.c.l.b16 %v1007
      %v1065 = vunpack.c.h.b16 %v1007
      %v1066 = vunpack.c.l.b16 %v1008
      %v1067 = vunpack.c.h.b16 %v1008
      %v1068 = vunpack.c.l.b16 %v1009
      %v1069 = vunpack.c.h.b16 %v1009
      %v1070 = vunpack.c.l.b16 %v1010
      %v1071 = vunpack.c.h.b16 %v1010
      %v1072 = vunpack.c.l.b16 %v1011
      %v1073 = vunpack.c.h.b16 %v1011
      %v1074 = vunpack.c.l.b16 %v1012
      %v1075 = vunpack.c.h.b16 %v1012
      %v1076 = vunpack.c.l.b16 %v1013
      %v1077 = vunpack.c.h.b16 %v1013
      %v1078 = vunpack.c.l.b16 %v1014
      %v1079 = vunpack.c.h.b16 %v1014
      %v1080 = vunpack.c.l.b16 %v1015
      %v1081 = vunpack.c.h.b16 %v1015
      %v1082 = vunpack.c.l.b16 %v1016
      %v1083 = vunpack.c.h.b16 %v1016
      %v1084 = vunpack.c.l.b16 %v1017
      %v1085 = vunpack.c.h.b16 %v1017
      %v1086 = vunpack.c.l.b16 %v1018
      %v1087 = vunpack.c.h.b16 %v1018
      %v1088 = vunpack.c.l.b16 %v1019
      %v1089 = vunpack.c.h.b16 %v1019
      %v1090 = vunpack.c.l.b16 %v1020
      %v1091 = vunpack.c.h.b16 %v1020
      %v1092 = vunpack.c.l.b16 %v1021
      %v1093 = vunpack.c.h.b16 %v1021
      %v1094 = vpack.c.b16 %v1058, %v1058
      %v1095 = vpack.c.b16 %v1059, %v1059
      %v1096 = vpack.c.b16 %v1060, %v1060
      %v1097 = vpack.c.b16 %v1061, %v1061
      %v1098 = vpack.c.b16 %v1062, %v1062
      %v1099 = vpack.c.b16 %v1063, %v1063
      %v1100 = vpack.c.b16 %v1064, %v1064
      %v1101 = vpack.c.b16 %v1065, %v1065
      %v1102 = vpack.c.b16 %v1066, %v1066
      %v1103 = vpack.c.b16 %v1067, %v1067
      %v1104 = vpack.c.b16 %v1068, %v1068
      %v1105 = vpack.c.b16 %v1069, %v1069
      %v1106 = vpack.c.b16 %v1070, %v1070
      %v1107 = vpack.c.b16 %v1071, %v1071
      %v1108 = vpack.c.b16 %v1072, %v1072
      %v1109 = vpack.c.b16 %v1073, %v1073
      %v1110 = vpack.c.b16 %v1074, %v1074
      %v1111 = vpack.c.b16 %v1075, %v1075
      %v1112 = vpack.c.b16 %v1076, %v1076
      %v1113 = vpack.c.b16 %v1077, %v1077
      %v1114 = vpack.c.b16 %v1078, %v1078
      %v1115 = vpack.c.b16 %v1079, %v1079
      %v1116 = vpack.c.b16 %v1080, %v1080
      %v1117 = vpack.c.b16 %v1081, %v1081
      %v1118 = vpack.c.b16 %v1082, %v1082
      %v1119 = vpack.c.b16 %v1083, %v1083
      %v1120 = vpack.c.b16 %v1084, %v1084
      %v1121 = vpack.c.b16 %v1085, %v1085
      %v1122 = vpack.c.b16 %v1086, %v1086
      %v1123 = vpack.c.b16 %v1087, %v1087
      %v1124 = vpack.c.b16 %v1088, %v1088
      %v1125 = vpack.c.b16 %v1089, %v1089
      %v1126 = vpack.c.b16 %v1090, %v1090
      %v1127 = vpack.c.b16 %v1091, %v1091
      %v1128 = vpack.c.b16 %v1092, %v1092
      %v1129 = vpack.c.b16 %v1093, %v1093
      %vm1130 = vsmask.f32 5392
      %vm1131 = vmor %vm1026, %vm1130
      %v1133 = vshrl.u32 %v1094, 16
      %v1135 = vrot.slane %v1133, 6
      %v1136 = vshll.u32 %v1094, 16
      %v1138 = vrot.slane %v1136, 7
      %v1139 = vor.u32 %v1135, %v1138
      %v1140 = vrot.slane %v1139, 4
      %v1142 = vshrl.u32 %v1095, 16
      %v1144 = vrot.slane %v1142, 6
      %v1145 = vshll.u32 %v1095, 16
      %v1147 = vrot.slane %v1145, 7
      %v1148 = vor.u32 %v1144, %v1147
      %v1149 = vsel %vm1131, %v1140, %v1148
      %v1150 = vrot.slane %v1148, 4
      %v1152 = vshrl.u32 %v1096, 16
      %v1154 = vrot.slane %v1152, 6
      %v1155 = vshll.u32 %v1096, 16
      %v1157 = vrot.slane %v1155, 7
      %v1158 = vor.u32 %v1154, %v1157
      %v1159 = vsel %vm1131, %v1150, %v1158
      %v1160 = vrot.slane %v1158, 4
      %v1162 = vshrl.u32 %v1097, 16
      %v1164 = vrot.slane %v1162, 6
      %v1165 = vshll.u32 %v1097, 16
      %v1167 = vrot.slane %v1165, 7
      %v1168 = vor.u32 %v1164, %v1167
      %v1169 = vsel %vm1131, %v1160, %v1168
      %v1170 = vrot.slane %v1168, 4
      %v1172 = vshrl.u32 %v1098, 16
      %v1174 = vrot.slane %v1172, 6
      %v1175 = vshll.u32 %v1098, 16
      %v1177 = vrot.slane %v1175, 7
      %v1178 = vor.u32 %v1174, %v1177
      %v1179 = vsel %vm1131, %v1170, %v1178
      %v1180 = vrot.slane %v1178, 4
      %v1182 = vshrl.u32 %v1099, 16
      %v1184 = vrot.slane %v1182, 6
      %v1185 = vshll.u32 %v1099, 16
      %v1187 = vrot.slane %v1185, 7
      %v1188 = vor.u32 %v1184, %v1187
      %v1189 = vsel %vm1131, %v1180, %v1188
      %v1190 = vrot.slane %v1188, 4
      %v1192 = vshrl.u32 %v1100, 16
      %v1194 = vrot.slane %v1192, 6
      %v1195 = vshll.u32 %v1100, 16
      %v1197 = vrot.slane %v1195, 7
      %v1198 = vor.u32 %v1194, %v1197
      %v1199 = vsel %vm1131, %v1190, %v1198
      %v1200 = vrot.slane %v1198, 4
      %v1202 = vshrl.u32 %v1101, 16
      %v1204 = vrot.slane %v1202, 6
      %v1205 = vshll.u32 %v1101, 16
      %v1207 = vrot.slane %v1205, 7
      %v1208 = vor.u32 %v1204, %v1207
      %v1209 = vsel %vm1131, %v1200, %v1208
      %v1210 = vrot.slane %v1208, 4
      %v1212 = vshrl.u32 %v1102, 16
      %v1214 = vrot.slane %v1212, 6
      %v1215 = vshll.u32 %v1102, 16
      %v1217 = vrot.slane %v1215, 7
      %v1218 = vor.u32 %v1214, %v1217
      %v1219 = vsel %vm1131, %v1210, %v1218
      %v1220 = vrot.slane %v1218, 4
      %v1222 = vshrl.u32 %v1103, 16
      %v1224 = vrot.slane %v1222, 6
      %v1225 = vshll.u32 %v1103, 16
      %v1227 = vrot.slane %v1225, 7
      %v1228 = vor.u32 %v1224, %v1227
      %v1229 = vsel %vm1131, %v1220, %v1228
      %v1230 = vrot.slane %v1228, 4
      %v1232 = vshrl.u32 %v1104, 16
      %v1234 = vrot.slane %v1232, 6
      %v1235 = vshll.u32 %v1104, 16
      %v1237 = vrot.slane %v1235, 7
      %v1238 = vor.u32 %v1234, %v1237
      %v1239 = vsel %vm1131, %v1230, %v1238
      %v1240 = vrot.slane %v1238, 4
      %v1242 = vshrl.u32 %v1105, 16
      %v1244 = vrot.slane %v1242, 6
      %v1245 = vshll.u32 %v1105, 16
      %v1247 = vrot.slane %v1245, 7
      %v1248 = vor.u32 %v1244, %v1247
      %v1249 = vsel %vm1131, %v1240, %v1248
      %v1250 = vrot.slane %v1248, 4
      %v1252 = vshrl.u32 %v1106, 16
      %v1254 = vrot.slane %v1252, 6
      %v1255 = vshll.u32 %v1106, 16
      %v1257 = vrot.slane %v1255, 7
      %v1258 = vor.u32 %v1254, %v1257
      %v1259 = vsel %vm1131, %v1250, %v1258
      %v1260 = vrot.slane %v1258, 4
      %v1262 = vshrl.u32 %v1107, 16
      %v1264 = vrot.slane %v1262, 6
      %v1265 = vshll.u32 %v1107, 16
      %v1267 = vrot.slane %v1265, 7
      %v1268 = vor.u32 %v1264, %v1267
      %v1269 = vsel %vm1131, %v1260, %v1268
      %v1270 = vrot.slane %v1268, 4
      %v1272 = vshrl.u32 %v1108, 16
      %v1274 = vrot.slane %v1272, 6
      %v1275 = vshll.u32 %v1108, 16
      %v1277 = vrot.slane %v1275, 7
      %v1278 = vor.u32 %v1274, %v1277
      %v1279 = vsel %vm1131, %v1270, %v1278
      %v1280 = vrot.slane %v1278, 4
      %v1282 = vshrl.u32 %v1109, 16
      %v1284 = vrot.slane %v1282, 6
      %v1285 = vshll.u32 %v1109, 16
      %v1287 = vrot.slane %v1285, 7
      %v1288 = vor.u32 %v1284, %v1287
      %v1289 = vsel %vm1131, %v1280, %v1288
      %v1290 = vrot.slane %v1288, 4
      %v1292 = vshrl.u32 %v1110, 16
      %v1294 = vrot.slane %v1292, 6
      %v1295 = vshll.u32 %v1110, 16
      %v1297 = vrot.slane %v1295, 7
      %v1298 = vor.u32 %v1294, %v1297
      %v1299 = vsel %vm1131, %v1290, %v1298
      %v1300 = vrot.slane %v1298, 4
      %v1302 = vshrl.u32 %v1111, 16
      %v1304 = vrot.slane %v1302, 6
      %v1305 = vshll.u32 %v1111, 16
      %v1307 = vrot.slane %v1305, 7
      %v1308 = vor.u32 %v1304, %v1307
      %v1309 = vsel %vm1131, %v1300, %v1308
      %v1310 = vrot.slane %v1308, 4
      %v1312 = vshrl.u32 %v1112, 16
      %v1314 = vrot.slane %v1312, 6
      %v1315 = vshll.u32 %v1112, 16
      %v1317 = vrot.slane %v1315, 7
      %v1318 = vor.u32 %v1314, %v1317
      %v1319 = vsel %vm1131, %v1310, %v1318
      %v1320 = vrot.slane %v1318, 4
      %v1322 = vshrl.u32 %v1113, 16
      %v1324 = vrot.slane %v1322, 6
      %v1325 = vshll.u32 %v1113, 16
      %v1327 = vrot.slane %v1325, 7
      %v1328 = vor.u32 %v1324, %v1327
      %v1329 = vsel %vm1131, %v1320, %v1328
      %v1330 = vrot.slane %v1328, 4
      %v1332 = vshrl.u32 %v1114, 16
      %v1334 = vrot.slane %v1332, 6
      %v1335 = vshll.u32 %v1114, 16
      %v1337 = vrot.slane %v1335, 7
      %v1338 = vor.u32 %v1334, %v1337
      %v1339 = vsel %vm1131, %v1330, %v1338
      %v1340 = vrot.slane %v1338, 4
      %v1342 = vshrl.u32 %v1115, 16
      %v1344 = vrot.slane %v1342, 6
      %v1345 = vshll.u32 %v1115, 16
      %v1347 = vrot.slane %v1345, 7
      %v1348 = vor.u32 %v1344, %v1347
      %v1349 = vsel %vm1131, %v1340, %v1348
      %v1350 = vrot.slane %v1348, 4
      %v1352 = vshrl.u32 %v1116, 16
      %v1354 = vrot.slane %v1352, 6
      %v1355 = vshll.u32 %v1116, 16
      %v1357 = vrot.slane %v1355, 7
      %v1358 = vor.u32 %v1354, %v1357
      %v1359 = vsel %vm1131, %v1350, %v1358
      %v1360 = vrot.slane %v1358, 4
      %v1362 = vshrl.u32 %v1117, 16
      %v1364 = vrot.slane %v1362, 6
      %v1365 = vshll.u32 %v1117, 16
      %v1367 = vrot.slane %v1365, 7
      %v1368 = vor.u32 %v1364, %v1367
      %v1369 = vsel %vm1131, %v1360, %v1368
      %v1370 = vrot.slane %v1368, 4
      %v1372 = vshrl.u32 %v1118, 16
      %v1374 = vrot.slane %v1372, 6
      %v1375 = vshll.u32 %v1118, 16
      %v1377 = vrot.slane %v1375, 7
      %v1378 = vor.u32 %v1374, %v1377
      %v1379 = vsel %vm1131, %v1370, %v1378
      %v1380 = vrot.slane %v1378, 4
      %v1382 = vshrl.u32 %v1119, 16
      %v1384 = vrot.slane %v1382, 6
      %v1385 = vshll.u32 %v1119, 16
      %v1387 = vrot.slane %v1385, 7
      %v1388 = vor.u32 %v1384, %v1387
      %v1389 = vsel %vm1131, %v1380, %v1388
      %v1390 = vrot.slane %v1388, 4
      %v1392 = vshrl.u32 %v1120, 16
      %v1394 = vrot.slane %v1392, 6
      %v1395 = vshll.u32 %v1120, 16
      %v1397 = vrot.slane %v1395, 7
      %v1398 = vor.u32 %v1394, %v1397
      %v1399 = vsel %vm1131, %v1390, %v1398
      %v1400 = vrot.slane %v1398, 4
      %v1402 = vshrl.u32 %v1121, 16
      %v1404 = vrot.slane %v1402, 6
      %v1405 = vshll.u32 %v1121, 16
      %v1407 = vrot.slane %v1405, 7
      %v1408 = vor.u32 %v1404, %v1407
      %v1409 = vsel %vm1131, %v1400, %v1408
      %v1410 = vrot.slane %v1408, 4
      %v1412 = vshrl.u32 %v1122, 16
      %v1414 = vrot.slane %v1412, 6
      %v1415 = vshll.u32 %v1122, 16
      %v1417 = vrot.slane %v1415, 7
      %v1418 = vor.u32 %v1414, %v1417
      %v1419 = vsel %vm1131, %v1410, %v1418
      %v1420 = vrot.slane %v1418, 4
      %v1422 = vshrl.u32 %v1123, 16
      %v1424 = vrot.slane %v1422, 6
      %v1425 = vshll.u32 %v1123, 16
      %v1427 = vrot.slane %v1425, 7
      %v1428 = vor.u32 %v1424, %v1427
      %v1429 = vsel %vm1131, %v1420, %v1428
      %v1430 = vrot.slane %v1428, 4
      %v1432 = vshrl.u32 %v1124, 16
      %v1434 = vrot.slane %v1432, 6
      %v1435 = vshll.u32 %v1124, 16
      %v1437 = vrot.slane %v1435, 7
      %v1438 = vor.u32 %v1434, %v1437
      %v1439 = vsel %vm1131, %v1430, %v1438
      %v1440 = vrot.slane %v1438, 4
      %v1442 = vshrl.u32 %v1125, 16
      %v1444 = vrot.slane %v1442, 6
      %v1445 = vshll.u32 %v1125, 16
      %v1447 = vrot.slane %v1445, 7
      %v1448 = vor.u32 %v1444, %v1447
      %v1449 = vsel %vm1131, %v1440, %v1448
      %v1450 = vrot.slane %v1448, 4
      %v1452 = vshrl.u32 %v1126, 16
      %v1454 = vrot.slane %v1452, 6
      %v1455 = vshll.u32 %v1126, 16
      %v1457 = vrot.slane %v1455, 7
      %v1458 = vor.u32 %v1454, %v1457
      %v1459 = vsel %vm1131, %v1450, %v1458
      %v1460 = vrot.slane %v1458, 4
      %v1462 = vshrl.u32 %v1127, 16
      %v1464 = vrot.slane %v1462, 6
      %v1465 = vshll.u32 %v1127, 16
      %v1467 = vrot.slane %v1465, 7
      %v1468 = vor.u32 %v1464, %v1467
      %v1469 = vsel %vm1131, %v1460, %v1468
      %v1470 = vrot.slane %v1468, 4
      %v1472 = vshrl.u32 %v1128, 16
      %v1474 = vrot.slane %v1472, 6
      %v1475 = vshll.u32 %v1128, 16
      %v1477 = vrot.slane %v1475, 7
      %v1478 = vor.u32 %v1474, %v1477
      %v1479 = vsel %vm1131, %v1470, %v1478
      %v1480 = vrot.slane %v1478, 4
      %v1482 = vshrl.u32 %v1129, 16
      %v1484 = vrot.slane %v1482, 6
      %v1485 = vshll.u32 %v1129, 16
      %v1487 = vrot.slane %v1485, 7
      %v1488 = vor.u32 %v1484, %v1487
      %v1489 = vsel %vm1131, %v1480, %v1488
      %v1490 = vrot.slane %v1488, 4
      %vm1528 = vcmask 27649
      %vm1529 = vsmask.f32 7942
      %vm1530 = vmand %vm1528, %vm1529
      %v1531 = vld [vmem:[#allocation2 + $0x8] sm:$0xe]
      %v1532 = vsel %vm1530, %v1139, %v1531
      %1533 = vst [vmem:[#allocation2 + $0x8] sm:$0xe] %v1532
      %vm1534 = vcmask 27648
      %1535 = vst.msk [vmem:[#allocation2 + $0xc] sm:$0xf] %vm1534, %v1149
      %1536 = vst.msk [vmem:[#allocation2 + $0x10] sm:$0xf] %vm1534, %v1159
      %1537 = vst.msk [vmem:[#allocation2 + $0x14] sm:$0xf] %vm1534, %v1169
      %1538 = vst.msk [vmem:[#allocation2 + $0x18] sm:$0xf] %vm1534, %v1179
      %1539 = vst.msk [vmem:[#allocation2 + $0x1c] sm:$0xf] %vm1534, %v1189
      %1540 = vst.msk [vmem:[#allocation2 + $0x20] sm:$0xf] %vm1534, %v1199
      %1541 = vst.msk [vmem:[#allocation2 + $0x24] sm:$0xf] %vm1534, %v1209
      %1542 = vst.msk [vmem:[#allocation2 + $0x28] sm:$0xf] %vm1534, %v1219
      %1543 = vst.msk [vmem:[#allocation2 + $0x2c] sm:$0xf] %vm1534, %v1229
      %1544 = vst.msk [vmem:[#allocation2 + $0x30] sm:$0xf] %vm1534, %v1239
      %1545 = vst.msk [vmem:[#allocation2 + $0x34] sm:$0xf] %vm1534, %v1249
      %1546 = vst.msk [vmem:[#allocation2 + $0x38] sm:$0xf] %vm1534, %v1259
      %1547 = vst.msk [vmem:[#allocation2 + $0x3c] sm:$0xf] %vm1534, %v1269
      %1548 = vst.msk [vmem:[#allocation2 + $0x40] sm:$0xf] %vm1534, %v1279
      %1549 = vst.msk [vmem:[#allocation2 + $0x44] sm:$0xf] %vm1534, %v1289
      %1550 = vst.msk [vmem:[#allocation2 + $0x48] sm:$0xf] %vm1534, %v1299
      %1551 = vst.msk [vmem:[#allocation2 + $0x4c] sm:$0xf] %vm1534, %v1309
      %1552 = vst.msk [vmem:[#allocation2 + $0x50] sm:$0xf] %vm1534, %v1319
      %1553 = vst.msk [vmem:[#allocation2 + $0x54] sm:$0xf] %vm1534, %v1329
      %1554 = vst.msk [vmem:[#allocation2 + $0x58] sm:$0xf] %vm1534, %v1339
      %1555 = vst.msk [vmem:[#allocation2 + $0x5c] sm:$0xf] %vm1534, %v1349
      %1556 = vst.msk [vmem:[#allocation2 + $0x60] sm:$0xf] %vm1534, %v1359
      %1557 = vst.msk [vmem:[#allocation2 + $0x64] sm:$0xf] %vm1534, %v1369
      %1558 = vst.msk [vmem:[#allocation2 + $0x68] sm:$0xf] %vm1534, %v1379
      %1559 = vst.msk [vmem:[#allocation2 + $0x6c] sm:$0xf] %vm1534, %v1389
      %1560 = vst.msk [vmem:[#allocation2 + $0x70] sm:$0xf] %vm1534, %v1399
      %1561 = vst.msk [vmem:[#allocation2 + $0x74] sm:$0xf] %vm1534, %v1409
      %1562 = vst.msk [vmem:[#allocation2 + $0x78] sm:$0xf] %vm1534, %v1419
      %1563 = vst.msk [vmem:[#allocation2 + $0x7c] sm:$0xf] %vm1534, %v1429
      %1564 = vst.msk [vmem:[#allocation2 + $0x80] sm:$0xf] %vm1534, %v1439
      %1565 = vst.msk [vmem:[#allocation2 + $0x84] sm:$0xf] %vm1534, %v1449
      %1566 = vst.msk [vmem:[#allocation2 + $0x88] sm:$0xf] %vm1534, %v1459
      %1567 = vst.msk [vmem:[#allocation2 + $0x8c] sm:$0xf] %vm1534, %v1469
      %1568 = vst.msk [vmem:[#allocation2 + $0x90] sm:$0xf] %vm1534, %v1479
      %1569 = vst.msk [vmem:[#allocation2 + $0x94] sm:$0xf] %vm1534, %v1489
      %vm1570 = vcmask 25600
      %vm1571 = vmand %vm1570, %vm1026
      %v1572 = vld [vmem:[#allocation2 + $0x98] sm:$0x3]
      %v1573 = vsel %vm1571, %v1490, %v1572
      %1574 = vst [vmem:[#allocation2 + $0x98] sm:$0x3] %v1573
      %vm1575 = vcmask 1040384
      %vm1576 = vcmask 1044484
      %vm1577 = vmor %vm1575, %vm1576
      %v1578 = vrot.slane %v1094, 7
      %v1579 = vrot.slane %v1578, 4
      %v1580 = vrot.slane %v1095, 7
      %v1581 = vsel %vm1577, %v1579, %v1580
      %v1582 = vrot.slane %v1580, 4
      %v1583 = vrot.slane %v1096, 7
      %v1584 = vsel %vm1577, %v1582, %v1583
      %v1585 = vrot.slane %v1583, 4
      %v1586 = vrot.slane %v1097, 7
      %v1587 = vsel %vm1577, %v1585, %v1586
      %v1588 = vrot.slane %v1586, 4
      %v1589 = vrot.slane %v1098, 7
      %v1590 = vsel %vm1577, %v1588, %v1589
      %v1591 = vrot.slane %v1589, 4
      %v1592 = vrot.slane %v1099, 7
      %v1593 = vsel %vm1577, %v1591, %v1592
      %v1594 = vrot.slane %v1592, 4
      %v1595 = vrot.slane %v1100, 7
      %v1596 = vsel %vm1577, %v1594, %v1595
      %v1597 = vrot.slane %v1595, 4
      %v1598 = vrot.slane %v1101, 7
      %v1599 = vsel %vm1577, %v1597, %v1598
      %v1600 = vrot.slane %v1598, 4
      %v1601 = vrot.slane %v1102, 7
      %v1602 = vsel %vm1577, %v1600, %v1601
      %v1603 = vrot.slane %v1601, 4
      %v1604 = vrot.slane %v1103, 7
      %v1605 = vsel %vm1577, %v1603, %v1604
      %v1606 = vrot.slane %v1604, 4
      %v1607 = vrot.slane %v1104, 7
      %v1608 = vsel %vm1577, %v1606, %v1607
      %v1609 = vrot.slane %v1607, 4
      %v1610 = vrot.slane %v1105, 7
      %v1611 = vsel %vm1577, %v1609, %v1610
      %v1612 = vrot.slane %v1610, 4
      %v1613 = vrot.slane %v1106, 7
      %v1614 = vsel %vm1577, %v1612, %v1613
      %v1615 = vrot.slane %v1613, 4
      %v1616 = vrot.slane %v1107, 7
      %v1617 = vsel %vm1577, %v1615, %v1616
      %v1618 = vrot.slane %v1616, 4
      %v1619 = vrot.slane %v1108, 7
      %v1620 = vsel %vm1577, %v1618, %v1619
      %v1621 = vrot.slane %v1619, 4
      %v1622 = vrot.slane %v1109, 7
      %v1623 = vsel %vm1577, %v1621, %v1622
      %v1624 = vrot.slane %v1622, 4
      %v1625 = vrot.slane %v1110, 7
      %v1626 = vsel %vm1577, %v1624, %v1625
      %v1627 = vrot.slane %v1625, 4
      %v1628 = vrot.slane %v1111, 7
      %v1629 = vsel %vm1577, %v1627, %v1628
      %v1630 = vrot.slane %v1628, 4
      %v1631 = vrot.slane %v1112, 7
      %v1632 = vsel %vm1577, %v1630, %v1631
      %v1633 = vrot.slane %v1631, 4
      %v1634 = vrot.slane %v1113, 7
      %v1635 = vsel %vm1577, %v1633, %v1634
      %v1636 = vrot.slane %v1634, 4
      %v1637 = vrot.slane %v1114, 7
      %v1638 = vsel %vm1577, %v1636, %v1637
      %v1639 = vrot.slane %v1637, 4
      %v1640 = vrot.slane %v1115, 7
      %v1641 = vsel %vm1577, %v1639, %v1640
      %v1642 = vrot.slane %v1640, 4
      %v1643 = vrot.slane %v1116, 7
      %v1644 = vsel %vm1577, %v1642, %v1643
      %v1645 = vrot.slane %v1643, 4
      %v1646 = vrot.slane %v1117, 7
      %v1647 = vsel %vm1577, %v1645, %v1646
      %v1648 = vrot.slane %v1646, 4
      %v1649 = vrot.slane %v1118, 7
      %v1650 = vsel %vm1577, %v1648, %v1649
      %v1651 = vrot.slane %v1649, 4
      %v1652 = vrot.slane %v1119, 7
      %v1653 = vsel %vm1577, %v1651, %v1652
      %v1654 = vrot.slane %v1652, 4
      %v1655 = vrot.slane %v1120, 7
      %v1656 = vsel %vm1577, %v1654, %v1655
      %v1657 = vrot.slane %v1655, 4
      %v1658 = vrot.slane %v1121, 7
      %v1659 = vsel %vm1577, %v1657, %v1658
      %v1660 = vrot.slane %v1658, 4
      %v1661 = vrot.slane %v1122, 7
      %v1662 = vsel %vm1577, %v1660, %v1661
      %v1663 = vrot.slane %v1661, 4
      %v1664 = vrot.slane %v1123, 7
      %v1665 = vsel %vm1577, %v1663, %v1664
      %v1666 = vrot.slane %v1664, 4
      %v1667 = vrot.slane %v1124, 7
      %v1668 = vsel %vm1577, %v1666, %v1667
      %v1669 = vrot.slane %v1667, 4
      %v1670 = vrot.slane %v1125, 7
      %v1671 = vsel %vm1577, %v1669, %v1670
      %v1672 = vrot.slane %v1670, 4
      %v1673 = vrot.slane %v1126, 7
      %v1674 = vsel %vm1577, %v1672, %v1673
      %v1675 = vrot.slane %v1673, 4
      %v1676 = vrot.slane %v1127, 7
      %v1677 = vsel %vm1577, %v1675, %v1676
      %v1678 = vrot.slane %v1676, 4
      %v1679 = vrot.slane %v1128, 7
      %v1680 = vsel %vm1577, %v1678, %v1679
      %v1681 = vrot.slane %v1679, 4
      %v1682 = vrot.slane %v1129, 7
      %v1683 = vsel %vm1577, %v1681, %v1682
      %v1684 = vrot.slane %v1682, 4
      %1685 = vrot.lane.b32.xlu0 %v1578, 4
      %v1686 = vpop.permute.xlu0 %1685
      %1687 = vrot.lane.b32.xlu0 %v1581, 4
      %v1688 = vpop.permute.xlu0 %1687
      %1689 = vrot.lane.b32.xlu0 %v1584, 4
      %v1690 = vpop.permute.xlu0 %1689
      %1691 = vrot.lane.b32.xlu0 %v1587, 4
      %v1692 = vpop.permute.xlu0 %1691
      %1693 = vrot.lane.b32.xlu0 %v1590, 4
      %v1694 = vpop.permute.xlu0 %1693
      %1695 = vrot.lane.b32.xlu0 %v1593, 4
      %v1696 = vpop.permute.xlu0 %1695
      %1697 = vrot.lane.b32.xlu0 %v1596, 4
      %v1698 = vpop.permute.xlu0 %1697
      %1699 = vrot.lane.b32.xlu0 %v1599, 4
      %v1700 = vpop.permute.xlu0 %1699
      %1701 = vrot.lane.b32.xlu0 %v1602, 4
      %v1702 = vpop.permute.xlu0 %1701
      %1703 = vrot.lane.b32.xlu0 %v1605, 4
      %v1704 = vpop.permute.xlu0 %1703
      %1705 = vrot.lane.b32.xlu0 %v1608, 4
      %v1706 = vpop.permute.xlu0 %1705
      %1707 = vrot.lane.b32.xlu0 %v1611, 4
      %v1708 = vpop.permute.xlu0 %1707
      %1709 = vrot.lane.b32.xlu0 %v1614, 4
      %v1710 = vpop.permute.xlu0 %1709
      %1711 = vrot.lane.b32.xlu0 %v1617, 4
      %v1712 = vpop.permute.xlu0 %1711
      %1713 = vrot.lane.b32.xlu0 %v1620, 4
      %v1714 = vpop.permute.xlu0 %1713
      %1715 = vrot.lane.b32.xlu0 %v1623, 4
      %v1716 = vpop.permute.xlu0 %1715
      %1717 = vrot.lane.b32.xlu0 %v1626, 4
      %v1718 = vpop.permute.xlu0 %1717
      %1719 = vrot.lane.b32.xlu0 %v1629, 4
      %v1720 = vpop.permute.xlu0 %1719
      %1721 = vrot.lane.b32.xlu0 %v1632, 4
      %v1722 = vpop.permute.xlu0 %1721
      %1723 = vrot.lane.b32.xlu0 %v1635, 4
      %v1724 = vpop.permute.xlu0 %1723
      %1725 = vrot.lane.b32.xlu0 %v1638, 4
      %v1726 = vpop.permute.xlu0 %1725
      %1727 = vrot.lane.b32.xlu0 %v1641, 4
      %v1728 = vpop.permute.xlu0 %1727
      %1729 = vrot.lane.b32.xlu0 %v1644, 4
      %v1730 = vpop.permute.xlu0 %1729
      %1731 = vrot.lane.b32.xlu0 %v1647, 4
      %v1732 = vpop.permute.xlu0 %1731
      %1733 = vrot.lane.b32.xlu0 %v1650, 4
      %v1734 = vpop.permute.xlu0 %1733
      %1735 = vrot.lane.b32.xlu0 %v1653, 4
      %v1736 = vpop.permute.xlu0 %1735
      %1737 = vrot.lane.b32.xlu0 %v1656, 4
      %v1738 = vpop.permute.xlu0 %1737
      %1739 = vrot.lane.b32.xlu0 %v1659, 4
      %v1740 = vpop.permute.xlu0 %1739
      %1741 = vrot.lane.b32.xlu0 %v1662, 4
      %v1742 = vpop.permute.xlu0 %1741
      %1743 = vrot.lane.b32.xlu0 %v1665, 4
      %v1744 = vpop.permute.xlu0 %1743
      %1745 = vrot.lane.b32.xlu0 %v1668, 4
      %v1746 = vpop.permute.xlu0 %1745
      %1747 = vrot.lane.b32.xlu0 %v1671, 4
      %v1748 = vpop.permute.xlu0 %1747
      %1749 = vrot.lane.b32.xlu0 %v1674, 4
      %v1750 = vpop.permute.xlu0 %1749
      %1751 = vrot.lane.b32.xlu0 %v1677, 4
      %v1752 = vpop.permute.xlu0 %1751
      %1753 = vrot.lane.b32.xlu0 %v1680, 4
      %v1754 = vpop.permute.xlu0 %1753
      %1755 = vrot.lane.b32.xlu0 %v1683, 4
      %v1756 = vpop.permute.xlu0 %1755
      %1757 = vrot.lane.b32.xlu0 %v1684, 4
      %v1758 = vpop.permute.xlu0 %1757
      %vm1796 = vcmask 60449
      %1797 = vst.msk [vmem:[#allocation2 + $0x8] sm:$0xe] %vm1796, %v1686
      %vm1798 = vcmask 60448
      %1799 = vst.msk [vmem:[#allocation2 + $0xc] sm:$0xf] %vm1798, %v1688
      %1800 = vst.msk [vmem:[#allocation2 + $0x10] sm:$0xf] %vm1798, %v1690
      %1801 = vst.msk [vmem:[#allocation2 + $0x14] sm:$0xf] %vm1798, %v1692
      %1802 = vst.msk [vmem:[#allocation2 + $0x18] sm:$0xf] %vm1798, %v1694
      %1803 = vst.msk [vmem:[#allocation2 + $0x1c] sm:$0xf] %vm1798, %v1696
      %1804 = vst.msk [vmem:[#allocation2 + $0x20] sm:$0xf] %vm1798, %v1698
      %1805 = vst.msk [vmem:[#allocation2 + $0x24] sm:$0xf] %vm1798, %v1700
      %1806 = vst.msk [vmem:[#allocation2 + $0x28] sm:$0xf] %vm1798, %v1702
      %1807 = vst.msk [vmem:[#allocation2 + $0x2c] sm:$0xf] %vm1798, %v1704
      %1808 = vst.msk [vmem:[#allocation2 + $0x30] sm:$0xf] %vm1798, %v1706
      %1809 = vst.msk [vmem:[#allocation2 + $0x34] sm:$0xf] %vm1798, %v1708
      %1810 = vst.msk [vmem:[#allocation2 + $0x38] sm:$0xf] %vm1798, %v1710
      %1811 = vst.msk [vmem:[#allocation2 + $0x3c] sm:$0xf] %vm1798, %v1712
      %1812 = vst.msk [vmem:[#allocation2 + $0x40] sm:$0xf] %vm1798, %v1714
      %1813 = vst.msk [vmem:[#allocation2 + $0x44] sm:$0xf] %vm1798, %v1716
      %1814 = vst.msk [vmem:[#allocation2 + $0x48] sm:$0xf] %vm1798, %v1718
      %1815 = vst.msk [vmem:[#allocation2 + $0x4c] sm:$0xf] %vm1798, %v1720
      %1816 = vst.msk [vmem:[#allocation2 + $0x50] sm:$0xf] %vm1798, %v1722
      %1817 = vst.msk [vmem:[#allocation2 + $0x54] sm:$0xf] %vm1798, %v1724
      %1818 = vst.msk [vmem:[#allocation2 + $0x58] sm:$0xf] %vm1798, %v1726
      %1819 = vst.msk [vmem:[#allocation2 + $0x5c] sm:$0xf] %vm1798, %v1728
      %1820 = vst.msk [vmem:[#allocation2 + $0x60] sm:$0xf] %vm1798, %v1730
      %1821 = vst.msk [vmem:[#allocation2 + $0x64] sm:$0xf] %vm1798, %v1732
      %1822 = vst.msk [vmem:[#allocation2 + $0x68] sm:$0xf] %vm1798, %v1734
      %1823 = vst.msk [vmem:[#allocation2 + $0x6c] sm:$0xf] %vm1798, %v1736
      %1824 = vst.msk [vmem:[#allocation2 + $0x70] sm:$0xf] %vm1798, %v1738
      %1825 = vst.msk [vmem:[#allocation2 + $0x74] sm:$0xf] %vm1798, %v1740
      %1826 = vst.msk [vmem:[#allocation2 + $0x78] sm:$0xf] %vm1798, %v1742
      %1827 = vst.msk [vmem:[#allocation2 + $0x7c] sm:$0xf] %vm1798, %v1744
      %1828 = vst.msk [vmem:[#allocation2 + $0x80] sm:$0xf] %vm1798, %v1746
      %1829 = vst.msk [vmem:[#allocation2 + $0x84] sm:$0xf] %vm1798, %v1748
      %1830 = vst.msk [vmem:[#allocation2 + $0x88] sm:$0xf] %vm1798, %v1750
      %1831 = vst.msk [vmem:[#allocation2 + $0x8c] sm:$0xf] %vm1798, %v1752
      %1832 = vst.msk [vmem:[#allocation2 + $0x90] sm:$0xf] %vm1798, %v1754
      %1833 = vst.msk [vmem:[#allocation2 + $0x94] sm:$0xf] %vm1798, %v1756
      %vm1834 = vcmask 57376
      %1835 = vst.msk [vmem:[#allocation2 + $0x98] sm:$0x1] %vm1834, %v1758
      %vm1836 = vsmask.f32 256
      %vm1837 = vsmask.f32 4368
      %vm1838 = vmor %vm1836, %vm1837
      %v1839 = vrot.slane %v1133, 7
      %v1840 = vor.u32 %v1839, %v1136
      %v1841 = vrot.slane %v1839, 4
      %v1842 = vrot.slane %v1142, 7
      %v1843 = vor.u32 %v1842, %v1145
      %v1844 = vsel %vm1838, %v1841, %v1843
      %v1845 = vrot.slane %v1842, 4
      %v1846 = vrot.slane %v1152, 7
      %v1847 = vor.u32 %v1846, %v1155
      %v1848 = vsel %vm1838, %v1845, %v1847
      %v1849 = vrot.slane %v1846, 4
      %v1850 = vrot.slane %v1162, 7
      %v1851 = vor.u32 %v1850, %v1165
      %v1852 = vsel %vm1838, %v1849, %v1851
      %v1853 = vrot.slane %v1850, 4
      %v1854 = vrot.slane %v1172, 7
      %v1855 = vor.u32 %v1854, %v1175
      %v1856 = vsel %vm1838, %v1853, %v1855
      %v1857 = vrot.slane %v1854, 4
      %v1858 = vrot.slane %v1182, 7
      %v1859 = vor.u32 %v1858, %v1185
      %v1860 = vsel %vm1838, %v1857, %v1859
      %v1861 = vrot.slane %v1858, 4
      %v1862 = vrot.slane %v1192, 7
      %v1863 = vor.u32 %v1862, %v1195
      %v1864 = vsel %vm1838, %v1861, %v1863
      %v1865 = vrot.slane %v1862, 4
      %v1866 = vrot.slane %v1202, 7
      %v1867 = vor.u32 %v1866, %v1205
      %v1868 = vsel %vm1838, %v1865, %v1867
      %v1869 = vrot.slane %v1866, 4
      %v1870 = vrot.slane %v1212, 7
      %v1871 = vor.u32 %v1870, %v1215
      %v1872 = vsel %vm1838, %v1869, %v1871
      %v1873 = vrot.slane %v1870, 4
      %v1874 = vrot.slane %v1222, 7
      %v1875 = vor.u32 %v1874, %v1225
      %v1876 = vsel %vm1838, %v1873, %v1875
      %v1877 = vrot.slane %v1874, 4
      %v1878 = vrot.slane %v1232, 7
      %v1879 = vor.u32 %v1878, %v1235
      %v1880 = vsel %vm1838, %v1877, %v1879
      %v1881 = vrot.slane %v1878, 4
      %v1882 = vrot.slane %v1242, 7
      %v1883 = vor.u32 %v1882, %v1245
      %v1884 = vsel %vm1838, %v1881, %v1883
      %v1885 = vrot.slane %v1882, 4
      %v1886 = vrot.slane %v1252, 7
      %v1887 = vor.u32 %v1886, %v1255
      %v1888 = vsel %vm1838, %v1885, %v1887
      %v1889 = vrot.slane %v1886, 4
      %v1890 = vrot.slane %v1262, 7
      %v1891 = vor.u32 %v1890, %v1265
      %v1892 = vsel %vm1838, %v1889, %v1891
      %v1893 = vrot.slane %v1890, 4
      %v1894 = vrot.slane %v1272, 7
      %v1895 = vor.u32 %v1894, %v1275
      %v1896 = vsel %vm1838, %v1893, %v1895
      %v1897 = vrot.slane %v1894, 4
      %v1898 = vrot.slane %v1282, 7
      %v1899 = vor.u32 %v1898, %v1285
      %v1900 = vsel %vm1838, %v1897, %v1899
      %v1901 = vrot.slane %v1898, 4
      %v1902 = vrot.slane %v1292, 7
      %v1903 = vor.u32 %v1902, %v1295
      %v1904 = vsel %vm1838, %v1901, %v1903
      %v1905 = vrot.slane %v1902, 4
      %v1906 = vrot.slane %v1302, 7
      %v1907 = vor.u32 %v1906, %v1305
      %v1908 = vsel %vm1838, %v1905, %v1907
      %v1909 = vrot.slane %v1906, 4
      %v1910 = vrot.slane %v1312, 7
      %v1911 = vor.u32 %v1910, %v1315
      %v1912 = vsel %vm1838, %v1909, %v1911
      %v1913 = vrot.slane %v1910, 4
      %v1914 = vrot.slane %v1322, 7
      %v1915 = vor.u32 %v1914, %v1325
      %v1916 = vsel %vm1838, %v1913, %v1915
      %v1917 = vrot.slane %v1914, 4
      %v1918 = vrot.slane %v1332, 7
      %v1919 = vor.u32 %v1918, %v1335
      %v1920 = vsel %vm1838, %v1917, %v1919
      %v1921 = vrot.slane %v1918, 4
      %v1922 = vrot.slane %v1342, 7
      %v1923 = vor.u32 %v1922, %v1345
      %v1924 = vsel %vm1838, %v1921, %v1923
      %v1925 = vrot.slane %v1922, 4
      %v1926 = vrot.slane %v1352, 7
      %v1927 = vor.u32 %v1926, %v1355
      %v1928 = vsel %vm1838, %v1925, %v1927
      %v1929 = vrot.slane %v1926, 4
      %v1930 = vrot.slane %v1362, 7
      %v1931 = vor.u32 %v1930, %v1365
      %v1932 = vsel %vm1838, %v1929, %v1931
      %v1933 = vrot.slane %v1930, 4
      %v1934 = vrot.slane %v1372, 7
      %v1935 = vor.u32 %v1934, %v1375
      %v1936 = vsel %vm1838, %v1933, %v1935
      %v1937 = vrot.slane %v1934, 4
      %v1938 = vrot.slane %v1382, 7
      %v1939 = vor.u32 %v1938, %v1385
      %v1940 = vsel %vm1838, %v1937, %v1939
      %v1941 = vrot.slane %v1938, 4
      %v1942 = vrot.slane %v1392, 7
      %v1943 = vor.u32 %v1942, %v1395
      %v1944 = vsel %vm1838, %v1941, %v1943
      %v1945 = vrot.slane %v1942, 4
      %v1946 = vrot.slane %v1402, 7
      %v1947 = vor.u32 %v1946, %v1405
      %v1948 = vsel %vm1838, %v1945, %v1947
      %v1949 = vrot.slane %v1946, 4
      %v1950 = vrot.slane %v1412, 7
      %v1951 = vor.u32 %v1950, %v1415
      %v1952 = vsel %vm1838, %v1949, %v1951
      %v1953 = vrot.slane %v1950, 4
      %v1954 = vrot.slane %v1422, 7
      %v1955 = vor.u32 %v1954, %v1425
      %v1956 = vsel %vm1838, %v1953, %v1955
      %v1957 = vrot.slane %v1954, 4
      %v1958 = vrot.slane %v1432, 7
      %v1959 = vor.u32 %v1958, %v1435
      %v1960 = vsel %vm1838, %v1957, %v1959
      %v1961 = vrot.slane %v1958, 4
      %v1962 = vrot.slane %v1442, 7
      %v1963 = vor.u32 %v1962, %v1445
      %v1964 = vsel %vm1838, %v1961, %v1963
      %v1965 = vrot.slane %v1962, 4
      %v1966 = vrot.slane %v1452, 7
      %v1967 = vor.u32 %v1966, %v1455
      %v1968 = vsel %vm1838, %v1965, %v1967
      %v1969 = vrot.slane %v1966, 4
      %v1970 = vrot.slane %v1462, 7
      %v1971 = vor.u32 %v1970, %v1465
      %v1972 = vsel %vm1838, %v1969, %v1971
      %v1973 = vrot.slane %v1970, 4
      %v1974 = vrot.slane %v1472, 7
      %v1975 = vor.u32 %v1974, %v1475
      %v1976 = vsel %vm1838, %v1973, %v1975
      %v1977 = vrot.slane %v1974, 4
      %v1978 = vrot.slane %v1482, 7
      %v1979 = vor.u32 %v1978, %v1485
      %v1980 = vsel %vm1838, %v1977, %v1979
      %v1981 = vrot.slane %v1978, 4
      %1982 = vrot.lane.b32.xlu0 %v1840, 8
      %v1983 = vpop.permute.xlu0 %1982
      %1984 = vrot.lane.b32.xlu0 %v1844, 8
      %v1985 = vpop.permute.xlu0 %1984
      %1986 = vrot.lane.b32.xlu0 %v1848, 8
      %v1987 = vpop.permute.xlu0 %1986
      %1988 = vrot.lane.b32.xlu0 %v1852, 8
      %v1989 = vpop.permute.xlu0 %1988
      %1990 = vrot.lane.b32.xlu0 %v1856, 8
      %v1991 = vpop.permute.xlu0 %1990
      %1992 = vrot.lane.b32.xlu0 %v1860, 8
      %v1993 = vpop.permute.xlu0 %1992
      %1994 = vrot.lane.b32.xlu0 %v1864, 8
      %v1995 = vpop.permute.xlu0 %1994
      %1996 = vrot.lane.b32.xlu0 %v1868, 8
      %v1997 = vpop.permute.xlu0 %1996
      %1998 = vrot.lane.b32.xlu0 %v1872, 8
      %v1999 = vpop.permute.xlu0 %1998
      %2000 = vrot.lane.b32.xlu0 %v1876, 8
      %v2001 = vpop.permute.xlu0 %2000
      %2002 = vrot.lane.b32.xlu0 %v1880, 8
      %v2003 = vpop.permute.xlu0 %2002
      %2004 = vrot.lane.b32.xlu0 %v1884, 8
      %v2005 = vpop.permute.xlu0 %2004
      %2006 = vrot.lane.b32.xlu0 %v1888, 8
      %v2007 = vpop.permute.xlu0 %2006
      %2008 = vrot.lane.b32.xlu0 %v1892, 8
      %v2009 = vpop.permute.xlu0 %2008
      %2010 = vrot.lane.b32.xlu0 %v1896, 8
      %v2011 = vpop.permute.xlu0 %2010
      %2012 = vrot.lane.b32.xlu0 %v1900, 8
      %v2013 = vpop.permute.xlu0 %2012
      %2014 = vrot.lane.b32.xlu0 %v1904, 8
      %v2015 = vpop.permute.xlu0 %2014
      %2016 = vrot.lane.b32.xlu0 %v1908, 8
      %v2017 = vpop.permute.xlu0 %2016
      %2018 = vrot.lane.b32.xlu0 %v1912, 8
      %v2019 = vpop.permute.xlu0 %2018
      %2020 = vrot.lane.b32.xlu0 %v1916, 8
      %v2021 = vpop.permute.xlu0 %2020
      %2022 = vrot.lane.b32.xlu0 %v1920, 8
      %v2023 = vpop.permute.xlu0 %2022
      %2024 = vrot.lane.b32.xlu0 %v1924, 8
      %v2025 = vpop.permute.xlu0 %2024
      %2026 = vrot.lane.b32.xlu0 %v1928, 8
      %v2027 = vpop.permute.xlu0 %2026
      %2028 = vrot.lane.b32.xlu0 %v1932, 8
      %v2029 = vpop.permute.xlu0 %2028
      %2030 = vrot.lane.b32.xlu0 %v1936, 8
      %v2031 = vpop.permute.xlu0 %2030
      %2032 = vrot.lane.b32.xlu0 %v1940, 8
      %v2033 = vpop.permute.xlu0 %2032
      %2034 = vrot.lane.b32.xlu0 %v1944, 8
      %v2035 = vpop.permute.xlu0 %2034
      %2036 = vrot.lane.b32.xlu0 %v1948, 8
      %v2037 = vpop.permute.xlu0 %2036
      %2038 = vrot.lane.b32.xlu0 %v1952, 8
      %v2039 = vpop.permute.xlu0 %2038
      %2040 = vrot.lane.b32.xlu0 %v1956, 8
      %v2041 = vpop.permute.xlu0 %2040
      %2042 = vrot.lane.b32.xlu0 %v1960, 8
      %v2043 = vpop.permute.xlu0 %2042
      %2044 = vrot.lane.b32.xlu0 %v1964, 8
      %v2045 = vpop.permute.xlu0 %2044
      %2046 = vrot.lane.b32.xlu0 %v1968, 8
      %v2047 = vpop.permute.xlu0 %2046
      %2048 = vrot.lane.b32.xlu0 %v1972, 8
      %v2049 = vpop.permute.xlu0 %2048
      %2050 = vrot.lane.b32.xlu0 %v1976, 8
      %v2051 = vpop.permute.xlu0 %2050
      %2052 = vrot.lane.b32.xlu0 %v1980, 8
      %v2053 = vpop.permute.xlu0 %2052
      %2054 = vrot.lane.b32.xlu0 %v1981, 8
      %v2055 = vpop.permute.xlu0 %2054
      %vm2093 = vcmask 93248
      %vm2094 = vmand %vm2093, %vm1032
      %v2095 = vld [vmem:[#allocation2 + $0x8] sm:$0xf]
      %v2096 = vsel %vm2094, %v1983, %v2095
      %2097 = vst [vmem:[#allocation2 + $0x8] sm:$0xf] %v2096
      %vm2098 = vcmask 93248
      %2099 = vst.msk [vmem:[#allocation2 + $0xc] sm:$0xf] %vm2098, %v1985
      %2100 = vst.msk [vmem:[#allocation2 + $0x10] sm:$0xf] %vm2098, %v1987
      %2101 = vst.msk [vmem:[#allocation2 + $0x14] sm:$0xf] %vm2098, %v1989
      %2102 = vst.msk [vmem:[#allocation2 + $0x18] sm:$0xf] %vm2098, %v1991
      %2103 = vst.msk [vmem:[#allocation2 + $0x1c] sm:$0xf] %vm2098, %v1993
      %2104 = vst.msk [vmem:[#allocation2 + $0x20] sm:$0xf] %vm2098, %v1995
      %2105 = vst.msk [vmem:[#allocation2 + $0x24] sm:$0xf] %vm2098, %v1997
      %2106 = vst.msk [vmem:[#allocation2 + $0x28] sm:$0xf] %vm2098, %v1999
      %2107 = vst.msk [vmem:[#allocation2 + $0x2c] sm:$0xf] %vm2098, %v2001
      %2108 = vst.msk [vmem:[#allocation2 + $0x30] sm:$0xf] %vm2098, %v2003
      %2109 = vst.msk [vmem:[#allocation2 + $0x34] sm:$0xf] %vm2098, %v2005
      %2110 = vst.msk [vmem:[#allocation2 + $0x38] sm:$0xf] %vm2098, %v2007
      %2111 = vst.msk [vmem:[#allocation2 + $0x3c] sm:$0xf] %vm2098, %v2009
      %2112 = vst.msk [vmem:[#allocation2 + $0x40] sm:$0xf] %vm2098, %v2011
      %2113 = vst.msk [vmem:[#allocation2 + $0x44] sm:$0xf] %vm2098, %v2013
      %2114 = vst.msk [vmem:[#allocation2 + $0x48] sm:$0xf] %vm2098, %v2015
      %2115 = vst.msk [vmem:[#allocation2 + $0x4c] sm:$0xf] %vm2098, %v2017
      %2116 = vst.msk [vmem:[#allocation2 + $0x50] sm:$0xf] %vm2098, %v2019
      %2117 = vst.msk [vmem:[#allocation2 + $0x54] sm:$0xf] %vm2098, %v2021
      %2118 = vst.msk [vmem:[#allocation2 + $0x58] sm:$0xf] %vm2098, %v2023
      %2119 = vst.msk [vmem:[#allocation2 + $0x5c] sm:$0xf] %vm2098, %v2025
      %2120 = vst.msk [vmem:[#allocation2 + $0x60] sm:$0xf] %vm2098, %v2027
      %2121 = vst.msk [vmem:[#allocation2 + $0x64] sm:$0xf] %vm2098, %v2029
      %2122 = vst.msk [vmem:[#allocation2 + $0x68] sm:$0xf] %vm2098, %v2031
      %2123 = vst.msk [vmem:[#allocation2 + $0x6c] sm:$0xf] %vm2098, %v2033
      %2124 = vst.msk [vmem:[#allocation2 + $0x70] sm:$0xf] %vm2098, %v2035
      %2125 = vst.msk [vmem:[#allocation2 + $0x74] sm:$0xf] %vm2098, %v2037
      %2126 = vst.msk [vmem:[#allocation2 + $0x78] sm:$0xf] %vm2098, %v2039
      %2127 = vst.msk [vmem:[#allocation2 + $0x7c] sm:$0xf] %vm2098, %v2041
      %2128 = vst.msk [vmem:[#allocation2 + $0x80] sm:$0xf] %vm2098, %v2043
      %2129 = vst.msk [vmem:[#allocation2 + $0x84] sm:$0xf] %vm2098, %v2045
      %2130 = vst.msk [vmem:[#allocation2 + $0x88] sm:$0xf] %vm2098, %v2047
      %2131 = vst.msk [vmem:[#allocation2 + $0x8c] sm:$0xf] %vm2098, %v2049
      %2132 = vst.msk [vmem:[#allocation2 + $0x90] sm:$0xf] %vm2098, %v2051
      %2133 = vst.msk [vmem:[#allocation2 + $0x94] sm:$0xf] %vm2098, %v2053
      %vm2134 = vcmask 90176
      %vm2135 = vmand %vm2134, %vm1836
      %v2136 = vld [vmem:[#allocation2 + $0x98] sm:$0x1]
      %v2137 = vsel %vm2135, %v2055, %v2136
      %2138 = vst [vmem:[#allocation2 + $0x98] sm:$0x1] %v2137
      %v2139 = vld [vmem:[#allocation2] sm:$0xf]
      %v2140 = vld [vmem:[#allocation2 + $0x4] sm:$0xf]
      %v2141 = vld [vmem:[#allocation2 + $0x8] sm:$0xf]
      %v2142 = vld [vmem:[#allocation2 + $0xc] sm:$0xf]
      %v2143 = vld [vmem:[#allocation2 + $0x10] sm:$0xf]
      %v2144 = vld [vmem:[#allocation2 + $0x14] sm:$0xf]
      %v2145 = vld [vmem:[#allocation2 + $0x18] sm:$0xf]
      %v2146 = vld [vmem:[#allocation2 + $0x1c] sm:$0xf]
      %v2147 = vld [vmem:[#allocation2 + $0x20] sm:$0xf]
      %v2148 = vld [vmem:[#allocation2 + $0x24] sm:$0xf]
      %v2149 = vld [vmem:[#allocation2 + $0x28] sm:$0xf]
      %v2150 = vld [vmem:[#allocation2 + $0x2c] sm:$0xf]
      %v2151 = vld [vmem:[#allocation2 + $0x30] sm:$0xf]
      %v2152 = vld [vmem:[#allocation2 + $0x34] sm:$0xf]
      %v2153 = vld [vmem:[#allocation2 + $0x38] sm:$0xf]
      %v2154 = vld [vmem:[#allocation2 + $0x3c] sm:$0xf]
      %v2155 = vld [vmem:[#allocation2 + $0x40] sm:$0xf]
      %v2156 = vld [vmem:[#allocation2 + $0x44] sm:$0xf]
      %v2157 = vld [vmem:[#allocation2 + $0x48] sm:$0xf]
      %v2158 = vld [vmem:[#allocation2 + $0x4c] sm:$0xf]
      %v2159 = vld [vmem:[#allocation2 + $0x50] sm:$0xf]
      %v2160 = vld [vmem:[#allocation2 + $0x54] sm:$0xf]
      %v2161 = vld [vmem:[#allocation2 + $0x58] sm:$0xf]
      %v2162 = vld [vmem:[#allocation2 + $0x5c] sm:$0xf]
      %v2163 = vld [vmem:[#allocation2 + $0x60] sm:$0xf]
      %v2164 = vld [vmem:[#allocation2 + $0x64] sm:$0xf]
      %v2165 = vld [vmem:[#allocation2 + $0x68] sm:$0xf]
      %v2166 = vld [vmem:[#allocation2 + $0x6c] sm:$0xf]
      %v2167 = vld [vmem:[#allocation2 + $0x70] sm:$0xf]
      %v2168 = vld [vmem:[#allocation2 + $0x74] sm:$0xf]
      %v2169 = vld [vmem:[#allocation2 + $0x78] sm:$0xf]
      %v2170 = vld [vmem:[#allocation2 + $0x7c] sm:$0xf]
      %v2171 = vld [vmem:[#allocation2 + $0x80] sm:$0xf]
      %v2172 = vld [vmem:[#allocation2 + $0x84] sm:$0xf]
      %v2173 = vld [vmem:[#allocation2 + $0x88] sm:$0xf]
      %v2174 = vld [vmem:[#allocation2 + $0x8c] sm:$0xf]
      %v2175 = vld [vmem:[%s4] sm:$0xf]
      %v2176 = vld [vmem:[%s4 + $0x4] sm:$0x3]
      %v2177 = vld [vmem:[#allocation2 + $0x8] sm:$0xe]
      %v2178 = vld [vmem:[#allocation2 + $0x90] sm:$0xf]
      %v2179 = vld [vmem:[#allocation2 + $0x94] sm:$0xf]
      %v2180 = vld [vmem:[#allocation2 + $0x98] sm:$0x1]
      %s2181 = scalar_lea.vmem %s4, 8
      %v2182 = vld [vmem:[%s2181] sm:$0xf]
      %v2183 = vld [vmem:[%s2181 + $0x4] sm:$0x3]
      %v2221 = vunpack.c.l.b16 %v2177
      %v2222 = vunpack.c.l.b16 %v2142
      %v2223 = vunpack.c.l.b16 %v2143
      %v2224 = vunpack.c.l.b16 %v2144
      %v2225 = vunpack.c.l.b16 %v2145
      %v2226 = vunpack.c.l.b16 %v2146
      %v2227 = vunpack.c.l.b16 %v2147
      %v2228 = vunpack.c.l.b16 %v2148
      %v2229 = vunpack.c.l.b16 %v2149
      %v2230 = vunpack.c.l.b16 %v2150
      %v2231 = vunpack.c.l.b16 %v2151
      %v2232 = vunpack.c.l.b16 %v2152
      %v2233 = vunpack.c.l.b16 %v2153
      %v2234 = vunpack.c.l.b16 %v2154
      %v2235 = vunpack.c.l.b16 %v2155
      %v2236 = vunpack.c.l.b16 %v2156
      %v2237 = vunpack.c.l.b16 %v2157
      %v2238 = vunpack.c.l.b16 %v2158
      %v2239 = vunpack.c.l.b16 %v2159
      %v2240 = vunpack.c.l.b16 %v2160
      %v2241 = vunpack.c.l.b16 %v2161
      %v2242 = vunpack.c.l.b16 %v2162
      %v2243 = vunpack.c.l.b16 %v2163
      %v2244 = vunpack.c.l.b16 %v2164
      %v2245 = vunpack.c.l.b16 %v2165
      %v2246 = vunpack.c.l.b16 %v2166
      %v2247 = vunpack.c.l.b16 %v2167
      %v2248 = vunpack.c.l.b16 %v2168
      %v2249 = vunpack.c.l.b16 %v2169
      %v2250 = vunpack.c.l.b16 %v2170
      %v2251 = vunpack.c.l.b16 %v2171
      %v2252 = vunpack.c.l.b16 %v2172
      %v2253 = vunpack.c.l.b16 %v2173
      %v2254 = vunpack.c.l.b16 %v2174
      %v2255 = vunpack.c.l.b16 %v2178
      %v2256 = vunpack.c.l.b16 %v2179
      %v2257 = vunpack.c.l.b16 %v2180
      %v2258 = vpack.c.b16 %v2222, %v2221
      %v2259 = vpack.c.b16 %v2224, %v2223
      %v2260 = vpack.c.b16 %v2226, %v2225
      %v2261 = vpack.c.b16 %v2228, %v2227
      %v2262 = vpack.c.b16 %v2230, %v2229
      %v2263 = vpack.c.b16 %v2232, %v2231
      %v2264 = vpack.c.b16 %v2234, %v2233
      %v2265 = vpack.c.b16 %v2236, %v2235
      %v2266 = vpack.c.b16 %v2238, %v2237
      %v2267 = vpack.c.b16 %v2240, %v2239
      %v2268 = vpack.c.b16 %v2242, %v2241
      %v2269 = vpack.c.b16 %v2244, %v2243
      %v2270 = vpack.c.b16 %v2246, %v2245
      %v2271 = vpack.c.b16 %v2248, %v2247
      %v2272 = vpack.c.b16 %v2250, %v2249
      %v2273 = vpack.c.b16 %v2252, %v2251
      %v2274 = vpack.c.b16 %v2254, %v2253
      %v2275 = vpack.c.b16 %v2256, %v2255
      %v2276 = vpack.c.b16 %v2257, %v2257
      %vm2277 = vcmask 1046528
      %v2278 = vrot.slane %v2258, 1
      %v2279 = vrot.slane %v2259, 1
      %v2280 = vsel %vm2277, %v2278, %v2279
      %v2281 = vrot.slane %v2260, 1
      %v2282 = vsel %vm2277, %v2279, %v2281
      %v2283 = vrot.slane %v2261, 1
      %v2284 = vsel %vm2277, %v2281, %v2283
      %v2285 = vrot.slane %v2262, 1
      %v2286 = vsel %vm2277, %v2283, %v2285
      %v2287 = vrot.slane %v2263, 1
      %v2288 = vsel %vm2277, %v2285, %v2287
      %v2289 = vrot.slane %v2264, 1
      %v2290 = vsel %vm2277, %v2287, %v2289
      %v2291 = vrot.slane %v2265, 1
      %v2292 = vsel %vm2277, %v2289, %v2291
      %v2293 = vrot.slane %v2266, 1
      %v2294 = vsel %vm2277, %v2291, %v2293
      %v2295 = vrot.slane %v2267, 1
      %v2296 = vsel %vm2277, %v2293, %v2295
      %v2297 = vrot.slane %v2268, 1
      %v2298 = vsel %vm2277, %v2295, %v2297
      %v2299 = vrot.slane %v2269, 1
      %v2300 = vsel %vm2277, %v2297, %v2299
      %v2301 = vrot.slane %v2270, 1
      %v2302 = vsel %vm2277, %v2299, %v2301
      %v2303 = vrot.slane %v2271, 1
      %v2304 = vsel %vm2277, %v2301, %v2303
      %v2305 = vrot.slane %v2272, 1
      %v2306 = vsel %vm2277, %v2303, %v2305
      %v2307 = vrot.slane %v2273, 1
      %v2308 = vsel %vm2277, %v2305, %v2307
      %v2309 = vrot.slane %v2274, 1
      %v2310 = vsel %vm2277, %v2307, %v2309
      %v2311 = vrot.slane %v2275, 1
      %v2312 = vsel %vm2277, %v2309, %v2311
      %v2313 = vrot.slane %v2276, 1
      %v2314 = vsel %vm2277, %v2311, %v2313
      %v2317 = vunpack.c.l.b16 %v2182
      %v2318 = vunpack.c.l.b16 %v2183
      %v2319 = vpack.c.b16 %v2318, %v2317
      %vm2320 = vcmask 97280
      %v2322 = vsel %vm2320, %v2280, 0
      %v2325 = vsel %vm2320, %v2282, 0
      %v2328 = vsel %vm2320, %v2284, 0
      %v2331 = vsel %vm2320, %v2286, 0
      %v2334 = vsel %vm2320, %v2288, 0
      %v2337 = vsel %vm2320, %v2290, 0
      %v2340 = vsel %vm2320, %v2292, 0
      %v2343 = vsel %vm2320, %v2294, 0
      %v2346 = vsel %vm2320, %v2296, 0
      %v2349 = vsel %vm2320, %v2298, 0
      %v2352 = vsel %vm2320, %v2300, 0
      %v2355 = vsel %vm2320, %v2302, 0
      %v2358 = vsel %vm2320, %v2304, 0
      %v2361 = vsel %vm2320, %v2306, 0
      %v2364 = vsel %vm2320, %v2308, 0
      %v2367 = vsel %vm2320, %v2310, 0
      %v2370 = vsel %vm2320, %v2312, 0
      %v2373 = vsel %vm2320, %v2314, 0
      %vm2375 = vcmask 1045504
      %v2377 = vsel %vm2375, %v2319, 0
      %2379 = vmatprep.subr.bf16.mxu0 0
      %2380 = vmatpush1.bf16.msra.mxu0 0
      %2381 = vmatprep.subr.bf16.mxu0 0
      %2382 = vmatpush1.bf16.msra.mxu0 0
      %2383 = vmatprep.subr.bf16.mxu0 0
      %2384 = vmatpush1.bf16.msra.mxu0 0
      %2385 = vmatprep.subr.bf16.mxu0 0
      %2386 = vmatpush1.bf16.msra.mxu0 0
      %2387 = vmatprep.subr.bf16.mxu0 0
      %2388 = vmatpush1.bf16.msra.mxu0 0
      %2389 = vmatprep.subr.bf16.mxu0 0
      %2390 = vmatpush1.bf16.msra.mxu0 0
      %2391 = vmatprep.subr.bf16.mxu0 0
      %2392 = vmatpush1.bf16.msra.mxu0 0
      %2393 = vmatprep.subr.bf16.mxu0 0
      %2394 = vmatpush1.bf16.msra.mxu0 %v2377
      %2395 = vmatprep.subr.bf16.mxu0 0
      %2396 = vmatpush2.bf16.msra.mxu0 0
      %2397 = vmatprep.subr.bf16.mxu0 0
      %2398 = vmatpush2.bf16.msra.mxu0 0
      %2399 = vmatprep.subr.bf16.mxu0 0
      %2400 = vmatpush2.bf16.msra.mxu0 0
      %2401 = vmatprep.subr.bf16.mxu0 0
      %2402 = vmatpush2.bf16.msra.mxu0 0
      %2403 = vmatprep.subr.bf16.mxu0 0
      %2404 = vmatpush2.bf16.msra.mxu0 0
      %2405 = vmatprep.subr.bf16.mxu0 0
      %2406 = vmatpush2.bf16.msra.mxu0 0
      %2407 = vmatprep.subr.bf16.mxu0 0
      %2408 = vmatpush2.bf16.msra.mxu0 0
      %2409 = vmatprep.subr.bf16.mxu0 0
      %2410 = vmatpush2.bf16.msra.mxu0 0
      %2411 = vmatprep.mubr.bf16.mxu0 0
      %2412 = vmatmul.mubr.bf16.gmra.mxu0 %v2322
      %v2413 = vpop.f32.mrf.mxu0
      %v2414 = vadd.f32 0.0, %v2413
      %v2415 = vpop.f32.mrf.mxu0
      %v2416 = vpop.f32.mrf.mxu0
      %v2417 = vadd.f32 0.0, %v2416
      %v2418 = vpop.f32.mrf.mxu0
      %2419 = vmatprep.mubr.bf16.mxu0 0
      %2420 = vmatmul.mubr.bf16.gmra.mxu0 %v2325
      %v2421 = vpop.f32.mrf.mxu0
      %v2422 = vadd.f32 0.0, %v2421
      %v2423 = vpop.f32.mrf.mxu0
      %v2424 = vpop.f32.mrf.mxu0
      %v2425 = vadd.f32 0.0, %v2424
      %v2426 = vpop.f32.mrf.mxu0
      %2427 = vmatprep.mubr.bf16.mxu0 0
      %2428 = vmatmul.mubr.bf16.gmra.mxu0 %v2328
      %v2429 = vpop.f32.mrf.mxu0
      %v2430 = vadd.f32 0.0, %v2429
      %v2431 = vpop.f32.mrf.mxu0
      %v2432 = vpop.f32.mrf.mxu0
      %v2433 = vadd.f32 0.0, %v2432
      %v2434 = vpop.f32.mrf.mxu0
      %2435 = vmatprep.mubr.bf16.mxu0 0
      %2436 = vmatmul.mubr.bf16.gmra.mxu0 %v2331
      %v2437 = vpop.f32.mrf.mxu0
      %v2438 = vadd.f32 0.0, %v2437
      %v2439 = vpop.f32.mrf.mxu0
      %v2440 = vpop.f32.mrf.mxu0
      %v2441 = vadd.f32 0.0, %v2440
      %v2442 = vpop.f32.mrf.mxu0
      %2443 = vmatprep.mubr.bf16.mxu0 0
      %2444 = vmatmul.mubr.bf16.gmra.mxu0 %v2334
      %v2445 = vpop.f32.mrf.mxu0
      %v2446 = vadd.f32 0.0, %v2445
      %v2447 = vpop.f32.mrf.mxu0
      %v2448 = vpop.f32.mrf.mxu0
      %v2449 = vadd.f32 0.0, %v2448
      %v2450 = vpop.f32.mrf.mxu0
      %2451 = vmatprep.mubr.bf16.mxu0 0
      %2452 = vmatmul.mubr.bf16.gmra.mxu0 %v2337
      %v2453 = vpop.f32.mrf.mxu0
      %v2454 = vadd.f32 0.0, %v2453
      %v2455 = vpop.f32.mrf.mxu0
      %v2456 = vpop.f32.mrf.mxu0
      %v2457 = vadd.f32 0.0, %v2456
      %v2458 = vpop.f32.mrf.mxu0
      %2459 = vmatprep.mubr.bf16.mxu0 0
      %2460 = vmatmul.mubr.bf16.gmra.mxu0 %v2340
      %v2461 = vpop.f32.mrf.mxu0
      %v2462 = vadd.f32 0.0, %v2461
      %v2463 = vpop.f32.mrf.mxu0
      %v2464 = vpop.f32.mrf.mxu0
      %v2465 = vadd.f32 0.0, %v2464
      %v2466 = vpop.f32.mrf.mxu0
      %2467 = vmatprep.mubr.bf16.mxu0 0
      %2468 = vmatmul.mubr.bf16.gmra.mxu0 %v2343
      %v2469 = vpop.f32.mrf.mxu0
      %v2470 = vadd.f32 0.0, %v2469
      %v2471 = vpop.f32.mrf.mxu0
      %v2472 = vpop.f32.mrf.mxu0
      %v2473 = vadd.f32 0.0, %v2472
      %v2474 = vpop.f32.mrf.mxu0
      %2475 = vmatprep.mubr.bf16.mxu0 0
      %2476 = vmatmul.mubr.bf16.gmra.mxu0 %v2346
      %v2477 = vpop.f32.mrf.mxu0
      %v2478 = vadd.f32 0.0, %v2477
      %v2479 = vpop.f32.mrf.mxu0
      %v2480 = vpop.f32.mrf.mxu0
      %v2481 = vadd.f32 0.0, %v2480
      %v2482 = vpop.f32.mrf.mxu0
      %2483 = vmatprep.mubr.bf16.mxu0 0
      %2484 = vmatmul.mubr.bf16.gmra.mxu0 %v2349
      %v2485 = vpop.f32.mrf.mxu0
      %v2486 = vadd.f32 0.0, %v2485
      %v2487 = vpop.f32.mrf.mxu0
      %v2488 = vpop.f32.mrf.mxu0
      %v2489 = vadd.f32 0.0, %v2488
      %v2490 = vpop.f32.mrf.mxu0
      %2491 = vmatprep.mubr.bf16.mxu0 0
      %2492 = vmatmul.mubr.bf16.gmra.mxu0 %v2352
      %v2493 = vpop.f32.mrf.mxu0
      %v2494 = vadd.f32 0.0, %v2493
      %v2495 = vpop.f32.mrf.mxu0
      %v2496 = vpop.f32.mrf.mxu0
      %v2497 = vadd.f32 0.0, %v2496
      %v2498 = vpop.f32.mrf.mxu0
      %2499 = vmatprep.mubr.bf16.mxu0 0
      %2500 = vmatmul.mubr.bf16.gmra.mxu0 %v2355
      %v2501 = vpop.f32.mrf.mxu0
      %v2502 = vadd.f32 0.0, %v2501
      %v2503 = vpop.f32.mrf.mxu0
      %v2504 = vpop.f32.mrf.mxu0
      %v2505 = vadd.f32 0.0, %v2504
      %v2506 = vpop.f32.mrf.mxu0
      %2507 = vmatprep.mubr.bf16.mxu0 0
      %2508 = vmatmul.mubr.bf16.gmra.mxu0 %v2358
      %v2509 = vpop.f32.mrf.mxu0
      %v2510 = vadd.f32 0.0, %v2509
      %v2511 = vpop.f32.mrf.mxu0
      %v2512 = vpop.f32.mrf.mxu0
      %v2513 = vadd.f32 0.0, %v2512
      %v2514 = vpop.f32.mrf.mxu0
      %2515 = vmatprep.mubr.bf16.mxu0 0
      %2516 = vmatmul.mubr.bf16.gmra.mxu0 %v2361
      %v2517 = vpop.f32.mrf.mxu0
      %v2518 = vadd.f32 0.0, %v2517
      %v2519 = vpop.f32.mrf.mxu0
      %v2520 = vpop.f32.mrf.mxu0
      %v2521 = vadd.f32 0.0, %v2520
      %v2522 = vpop.f32.mrf.mxu0
      %2523 = vmatprep.mubr.bf16.mxu0 0
      %2524 = vmatmul.mubr.bf16.gmra.mxu0 %v2364
      %v2525 = vpop.f32.mrf.mxu0
      %v2526 = vadd.f32 0.0, %v2525
      %v2527 = vpop.f32.mrf.mxu0
      %v2528 = vpop.f32.mrf.mxu0
      %v2529 = vadd.f32 0.0, %v2528
      %v2530 = vpop.f32.mrf.mxu0
      %2531 = vmatprep.mubr.bf16.mxu0 0
      %2532 = vmatmul.mubr.bf16.gmra.mxu0 %v2367
      %v2533 = vpop.f32.mrf.mxu0
      %v2534 = vadd.f32 0.0, %v2533
      %v2535 = vpop.f32.mrf.mxu0
      %v2536 = vpop.f32.mrf.mxu0
      %v2537 = vadd.f32 0.0, %v2536
      %v2538 = vpop.f32.mrf.mxu0
      %2539 = vmatprep.mubr.bf16.mxu0 0
      %2540 = vmatmul.mubr.bf16.gmra.mxu0 %v2370
      %v2541 = vpop.f32.mrf.mxu0
      %v2542 = vadd.f32 0.0, %v2541
      %v2543 = vpop.f32.mrf.mxu0
      %v2544 = vpop.f32.mrf.mxu0
      %v2545 = vadd.f32 0.0, %v2544
      %v2546 = vpop.f32.mrf.mxu0
      %2547 = vmatprep.mubr.bf16.mxu0 0
      %2548 = vmatmul.mubr.bf16.gmra.mxu0 %v2373
      %v2549 = vpop.f32.mrf.mxu0
      %v2550 = vadd.f32 0.0, %v2549
      %v2551 = vpop.f32.mrf.mxu0
      %v2552 = vpop.f32.mrf.mxu0
      %v2553 = vadd.f32 0.0, %v2552
      %v2554 = vpop.f32.mrf.mxu0
      %2555 = vdwg.mxu0
      %v2559 = vunpack.c.l.b16 %v2139
      %v2560 = vunpack.c.l.b16 %v2140
      %v2561 = vunpack.c.l.b16 %v2141
      %v2562 = vpack.c.b16 %v2560, %v2559
      %v2563 = vpack.c.b16 %v2222, %v2561
      %v2566 = vunpack.c.l.b16 %v2175
      %v2567 = vunpack.c.l.b16 %v2176
      %v2568 = vpack.c.b16 %v2567, %v2566
      %v2570 = vsel %vm2320, %v2562, 0
      %v2573 = vsel %vm2320, %v2563, 0
      %v2576 = vsel %vm2320, %v2259, 0
      %v2579 = vsel %vm2320, %v2260, 0
      %v2582 = vsel %vm2320, %v2261, 0
      %v2585 = vsel %vm2320, %v2262, 0
      %v2588 = vsel %vm2320, %v2263, 0
      %v2591 = vsel %vm2320, %v2264, 0
      %v2594 = vsel %vm2320, %v2265, 0
      %v2597 = vsel %vm2320, %v2266, 0
      %v2600 = vsel %vm2320, %v2267, 0
      %v2603 = vsel %vm2320, %v2268, 0
      %v2606 = vsel %vm2320, %v2269, 0
      %v2609 = vsel %vm2320, %v2270, 0
      %v2612 = vsel %vm2320, %v2271, 0
      %v2615 = vsel %vm2320, %v2272, 0
      %v2618 = vsel %vm2320, %v2273, 0
      %v2621 = vsel %vm2320, %v2274, 0
      %v2624 = vsel %vm2375, %v2568, 0
      %2626 = vmatprep.subr.bf16.mxu0 0
      %2627 = vmatpush1.bf16.msra.mxu0 0
      %2628 = vmatprep.subr.bf16.mxu0 0
      %2629 = vmatpush1.bf16.msra.mxu0 0
      %2630 = vmatprep.subr.bf16.mxu0 0
      %2631 = vmatpush1.bf16.msra.mxu0 0
      %2632 = vmatprep.subr.bf16.mxu0 0
      %2633 = vmatpush1.bf16.msra.mxu0 0
      %2634 = vmatprep.subr.bf16.mxu0 0
      %2635 = vmatpush1.bf16.msra.mxu0 0
      %2636 = vmatprep.subr.bf16.mxu0 0
      %2637 = vmatpush1.bf16.msra.mxu0 0
      %2638 = vmatprep.subr.bf16.mxu0 0
      %2639 = vmatpush1.bf16.msra.mxu0 0
      %2640 = vmatprep.subr.bf16.mxu0 0
      %2641 = vmatpush1.bf16.msra.mxu0 %v2624
      %2642 = vmatprep.subr.bf16.mxu0 0
      %2643 = vmatpush2.bf16.msra.mxu0 0
      %2644 = vmatprep.subr.bf16.mxu0 0
      %2645 = vmatpush2.bf16.msra.mxu0 0
      %2646 = vmatprep.subr.bf16.mxu0 0
      %2647 = vmatpush2.bf16.msra.mxu0 0
      %2648 = vmatprep.subr.bf16.mxu0 0
      %2649 = vmatpush2.bf16.msra.mxu0 0
      %2650 = vmatprep.subr.bf16.mxu0 0
      %2651 = vmatpush2.bf16.msra.mxu0 0
      %2652 = vmatprep.subr.bf16.mxu0 0
      %2653 = vmatpush2.bf16.msra.mxu0 0
      %2654 = vmatprep.subr.bf16.mxu0 0
      %2655 = vmatpush2.bf16.msra.mxu0 0
      %2656 = vmatprep.subr.bf16.mxu0 0
      %2657 = vmatpush2.bf16.msra.mxu0 0
      %2658 = vmatprep.mubr.bf16.mxu0 0
      %2659 = vmatmul.mubr.bf16.gmra.mxu0 %v2570
      %v2660 = vpop.f32.mrf.mxu0
      %v2661 = vadd.f32 %v2414, %v2660
      %v2662 = vpop.f32.mrf.mxu0
      %v2663 = vpop.f32.mrf.mxu0
      %v2664 = vadd.f32 %v2417, %v2663
      %v2665 = vpop.f32.mrf.mxu0
      %2666 = vmatprep.mubr.bf16.mxu0 0
      %2667 = vmatmul.mubr.bf16.gmra.mxu0 %v2573
      %v2668 = vpop.f32.mrf.mxu0
      %v2669 = vadd.f32 %v2422, %v2668
      %v2670 = vpop.f32.mrf.mxu0
      %v2671 = vpop.f32.mrf.mxu0
      %v2672 = vadd.f32 %v2425, %v2671
      %v2673 = vpop.f32.mrf.mxu0
      %2674 = vmatprep.mubr.bf16.mxu0 0
      %2675 = vmatmul.mubr.bf16.gmra.mxu0 %v2576
      %v2676 = vpop.f32.mrf.mxu0
      %v2677 = vadd.f32 %v2430, %v2676
      %v2678 = vpop.f32.mrf.mxu0
      %v2679 = vpop.f32.mrf.mxu0
      %v2680 = vadd.f32 %v2433, %v2679
      %v2681 = vpop.f32.mrf.mxu0
      %2682 = vmatprep.mubr.bf16.mxu0 0
      %2683 = vmatmul.mubr.bf16.gmra.mxu0 %v2579
      %v2684 = vpop.f32.mrf.mxu0
      %v2685 = vadd.f32 %v2438, %v2684
      %v2686 = vpop.f32.mrf.mxu0
      %v2687 = vpop.f32.mrf.mxu0
      %v2688 = vadd.f32 %v2441, %v2687
      %v2689 = vpop.f32.mrf.mxu0
      %2690 = vmatprep.mubr.bf16.mxu0 0
      %2691 = vmatmul.mubr.bf16.gmra.mxu0 %v2582
      %v2692 = vpop.f32.mrf.mxu0
      %v2693 = vadd.f32 %v2446, %v2692
      %v2694 = vpop.f32.mrf.mxu0
      %v2695 = vpop.f32.mrf.mxu0
      %v2696 = vadd.f32 %v2449, %v2695
      %v2697 = vpop.f32.mrf.mxu0
      %2698 = vmatprep.mubr.bf16.mxu0 0
      %2699 = vmatmul.mubr.bf16.gmra.mxu0 %v2585
      %v2700 = vpop.f32.mrf.mxu0
      %v2701 = vadd.f32 %v2454, %v2700
      %v2702 = vpop.f32.mrf.mxu0
      %v2703 = vpop.f32.mrf.mxu0
      %v2704 = vadd.f32 %v2457, %v2703
      %v2705 = vpop.f32.mrf.mxu0
      %2706 = vmatprep.mubr.bf16.mxu0 0
      %2707 = vmatmul.mubr.bf16.gmra.mxu0 %v2588
      %v2708 = vpop.f32.mrf.mxu0
      %v2709 = vadd.f32 %v2462, %v2708
      %v2710 = vpop.f32.mrf.mxu0
      %v2711 = vpop.f32.mrf.mxu0
      %v2712 = vadd.f32 %v2465, %v2711
      %v2713 = vpop.f32.mrf.mxu0
      %2714 = vmatprep.mubr.bf16.mxu0 0
      %2715 = vmatmul.mubr.bf16.gmra.mxu0 %v2591
      %v2716 = vpop.f32.mrf.mxu0
      %v2717 = vadd.f32 %v2470, %v2716
      %v2718 = vpop.f32.mrf.mxu0
      %v2719 = vpop.f32.mrf.mxu0
      %v2720 = vadd.f32 %v2473, %v2719
      %v2721 = vpop.f32.mrf.mxu0
      %2722 = vmatprep.mubr.bf16.mxu0 0
      %2723 = vmatmul.mubr.bf16.gmra.mxu0 %v2594
      %v2724 = vpop.f32.mrf.mxu0
      %v2725 = vadd.f32 %v2478, %v2724
      %v2726 = vpop.f32.mrf.mxu0
      %v2727 = vpop.f32.mrf.mxu0
      %v2728 = vadd.f32 %v2481, %v2727
      %v2729 = vpop.f32.mrf.mxu0
      %2730 = vmatprep.mubr.bf16.mxu0 0
      %2731 = vmatmul.mubr.bf16.gmra.mxu0 %v2597
      %v2732 = vpop.f32.mrf.mxu0
      %v2733 = vadd.f32 %v2486, %v2732
      %v2734 = vpop.f32.mrf.mxu0
      %v2735 = vpop.f32.mrf.mxu0
      %v2736 = vadd.f32 %v2489, %v2735
      %v2737 = vpop.f32.mrf.mxu0
      %2738 = vmatprep.mubr.bf16.mxu0 0
      %2739 = vmatmul.mubr.bf16.gmra.mxu0 %v2600
      %v2740 = vpop.f32.mrf.mxu0
      %v2741 = vadd.f32 %v2494, %v2740
      %v2742 = vpop.f32.mrf.mxu0
      %v2743 = vpop.f32.mrf.mxu0
      %v2744 = vadd.f32 %v2497, %v2743
      %v2745 = vpop.f32.mrf.mxu0
      %2746 = vmatprep.mubr.bf16.mxu0 0
      %2747 = vmatmul.mubr.bf16.gmra.mxu0 %v2603
      %v2748 = vpop.f32.mrf.mxu0
      %v2749 = vadd.f32 %v2502, %v2748
      %v2750 = vpop.f32.mrf.mxu0
      %v2751 = vpop.f32.mrf.mxu0
      %v2752 = vadd.f32 %v2505, %v2751
      %v2753 = vpop.f32.mrf.mxu0
      %2754 = vmatprep.mubr.bf16.mxu0 0
      %2755 = vmatmul.mubr.bf16.gmra.mxu0 %v2606
      %v2756 = vpop.f32.mrf.mxu0
      %v2757 = vadd.f32 %v2510, %v2756
      %v2758 = vpop.f32.mrf.mxu0
      %v2759 = vpop.f32.mrf.mxu0
      %v2760 = vadd.f32 %v2513, %v2759
      %v2761 = vpop.f32.mrf.mxu0
      %2762 = vmatprep.mubr.bf16.mxu0 0
      %2763 = vmatmul.mubr.bf16.gmra.mxu0 %v2609
      %v2764 = vpop.f32.mrf.mxu0
      %v2765 = vadd.f32 %v2518, %v2764
      %v2766 = vpop.f32.mrf.mxu0
      %v2767 = vpop.f32.mrf.mxu0
      %v2768 = vadd.f32 %v2521, %v2767
      %v2769 = vpop.f32.mrf.mxu0
      %2770 = vmatprep.mubr.bf16.mxu0 0
      %2771 = vmatmul.mubr.bf16.gmra.mxu0 %v2612
      %v2772 = vpop.f32.mrf.mxu0
      %v2773 = vadd.f32 %v2526, %v2772
      %v2774 = vpop.f32.mrf.mxu0
      %v2775 = vpop.f32.mrf.mxu0
      %v2776 = vadd.f32 %v2529, %v2775
      %v2777 = vpop.f32.mrf.mxu0
      %2778 = vmatprep.mubr.bf16.mxu0 0
      %2779 = vmatmul.mubr.bf16.gmra.mxu0 %v2615
      %v2780 = vpop.f32.mrf.mxu0
      %v2781 = vadd.f32 %v2534, %v2780
      %v2782 = vpop.f32.mrf.mxu0
      %v2783 = vpop.f32.mrf.mxu0
      %v2784 = vadd.f32 %v2537, %v2783
      %v2785 = vpop.f32.mrf.mxu0
      %2786 = vmatprep.mubr.bf16.mxu0 0
      %2787 = vmatmul.mubr.bf16.gmra.mxu0 %v2618
      %v2788 = vpop.f32.mrf.mxu0
      %v2789 = vadd.f32 %v2542, %v2788
      %v2790 = vpop.f32.mrf.mxu0
      %v2791 = vpop.f32.mrf.mxu0
      %v2792 = vadd.f32 %v2545, %v2791
      %v2793 = vpop.f32.mrf.mxu0
      %2794 = vmatprep.mubr.bf16.mxu0 0
      %2795 = vmatmul.mubr.bf16.gmra.mxu0 %v2621
      %v2796 = vpop.f32.mrf.mxu0
      %v2797 = vadd.f32 %v2550, %v2796
      %v2798 = vpop.f32.mrf.mxu0
      %v2799 = vpop.f32.mrf.mxu0
      %v2800 = vadd.f32 %v2553, %v2799
      %v2801 = vpop.f32.mrf.mxu0
      %2802 = vdwg.mxu0
      %v2803 = vld [vmem:[#allocation2 + $0x10] sm:$0xc]
      %v2804 = vld [vmem:[#allocation2 + $0x14] sm:$0xf]
      %v2805 = vld [vmem:[#allocation2 + $0x18] sm:$0xf]
      %v2806 = vld [vmem:[#allocation2 + $0x1c] sm:$0xf]
      %v2807 = vld [vmem:[#allocation2 + $0x20] sm:$0xf]
      %v2808 = vld [vmem:[#allocation2 + $0x24] sm:$0xf]
      %v2809 = vld [vmem:[#allocation2 + $0x28] sm:$0xf]
      %v2810 = vld [vmem:[#allocation2 + $0x2c] sm:$0xf]
      %v2811 = vld [vmem:[#allocation2 + $0x30] sm:$0xf]
      %v2812 = vld [vmem:[#allocation2 + $0x34] sm:$0xf]
      %v2813 = vld [vmem:[#allocation2 + $0x38] sm:$0xf]
      %v2814 = vld [vmem:[#allocation2 + $0x3c] sm:$0xf]
      %v2815 = vld [vmem:[#allocation2 + $0x40] sm:$0xf]
      %v2816 = vld [vmem:[#allocation2 + $0x44] sm:$0xf]
      %v2817 = vld [vmem:[#allocation2 + $0x48] sm:$0xf]
      %v2818 = vld [vmem:[#allocation2 + $0x4c] sm:$0xf]
      %v2819 = vld [vmem:[#allocation2 + $0x50] sm:$0xf]
      %v2820 = vld [vmem:[#allocation2 + $0x54] sm:$0xf]
      %v2821 = vld [vmem:[#allocation2 + $0x58] sm:$0xf]
      %v2822 = vld [vmem:[#allocation2 + $0x5c] sm:$0xf]
      %v2823 = vld [vmem:[#allocation2 + $0x60] sm:$0xf]
      %v2824 = vld [vmem:[#allocation2 + $0x64] sm:$0xf]
      %v2825 = vld [vmem:[#allocation2 + $0x68] sm:$0xf]
      %v2826 = vld [vmem:[#allocation2 + $0x6c] sm:$0xf]
      %v2827 = vld [vmem:[#allocation2 + $0x70] sm:$0xf]
      %v2828 = vld [vmem:[#allocation2 + $0x74] sm:$0xf]
      %v2829 = vld [vmem:[#allocation2 + $0x78] sm:$0xf]
      %v2830 = vld [vmem:[#allocation2 + $0x7c] sm:$0xf]
      %v2831 = vld [vmem:[#allocation2 + $0x80] sm:$0xf]
      %v2832 = vld [vmem:[#allocation2 + $0x84] sm:$0xf]
      %v2833 = vld [vmem:[#allocation2 + $0x88] sm:$0xf]
      %v2834 = vld [vmem:[#allocation2 + $0x8c] sm:$0xf]
      %v2835 = vld [vmem:[#allocation2 + $0x90] sm:$0xf]
      %v2836 = vld [vmem:[#allocation2 + $0x94] sm:$0xf]
      %v2837 = vld [vmem:[#allocation2 + $0x98] sm:$0xf]
      %v2838 = vld [vmem:[#allocation2 + $0x9c] sm:$0xf]
      %v2839 = vld [vmem:[#allocation2 + $0xa0] sm:$0x3]
      %s2840 = scalar_lea.vmem %s4, 16
      %v2841 = vld [vmem:[%s2840] sm:$0xf]
      %v2842 = vld [vmem:[%s2840 + $0x4] sm:$0x3]
      %v2880 = vunpack.c.l.b16 %v2803
      %v2881 = vunpack.c.l.b16 %v2804
      %v2882 = vunpack.c.l.b16 %v2805
      %v2883 = vunpack.c.l.b16 %v2806
      %v2884 = vunpack.c.l.b16 %v2807
      %v2885 = vunpack.c.l.b16 %v2808
      %v2886 = vunpack.c.l.b16 %v2809
      %v2887 = vunpack.c.l.b16 %v2810
      %v2888 = vunpack.c.l.b16 %v2811
      %v2889 = vunpack.c.l.b16 %v2812
      %v2890 = vunpack.c.l.b16 %v2813
      %v2891 = vunpack.c.l.b16 %v2814
      %v2892 = vunpack.c.l.b16 %v2815
      %v2893 = vunpack.c.l.b16 %v2816
      %v2894 = vunpack.c.l.b16 %v2817
      %v2895 = vunpack.c.l.b16 %v2818
      %v2896 = vunpack.c.l.b16 %v2819
      %v2897 = vunpack.c.l.b16 %v2820
      %v2898 = vunpack.c.l.b16 %v2821
      %v2899 = vunpack.c.l.b16 %v2822
      %v2900 = vunpack.c.l.b16 %v2823
      %v2901 = vunpack.c.l.b16 %v2824
      %v2902 = vunpack.c.l.b16 %v2825
      %v2903 = vunpack.c.l.b16 %v2826
      %v2904 = vunpack.c.l.b16 %v2827
      %v2905 = vunpack.c.l.b16 %v2828
      %v2906 = vunpack.c.l.b16 %v2829
      %v2907 = vunpack.c.l.b16 %v2830
      %v2908 = vunpack.c.l.b16 %v2831
      %v2909 = vunpack.c.l.b16 %v2832
      %v2910 = vunpack.c.l.b16 %v2833
      %v2911 = vunpack.c.l.b16 %v2834
      %v2912 = vunpack.c.l.b16 %v2835
      %v2913 = vunpack.c.l.b16 %v2836
      %v2914 = vunpack.c.l.b16 %v2837
      %v2915 = vunpack.c.l.b16 %v2838
      %v2916 = vunpack.c.l.b16 %v2839
      %v2917 = vpack.c.b16 %v2881, %v2880
      %v2918 = vpack.c.b16 %v2883, %v2882
      %v2919 = vpack.c.b16 %v2885, %v2884
      %v2920 = vpack.c.b16 %v2887, %v2886
      %v2921 = vpack.c.b16 %v2889, %v2888
      %v2922 = vpack.c.b16 %v2891, %v2890
      %v2923 = vpack.c.b16 %v2893, %v2892
      %v2924 = vpack.c.b16 %v2895, %v2894
      %v2925 = vpack.c.b16 %v2897, %v2896
      %v2926 = vpack.c.b16 %v2899, %v2898
      %v2927 = vpack.c.b16 %v2901, %v2900
      %v2928 = vpack.c.b16 %v2903, %v2902
      %v2929 = vpack.c.b16 %v2905, %v2904
      %v2930 = vpack.c.b16 %v2907, %v2906
      %v2931 = vpack.c.b16 %v2909, %v2908
      %v2932 = vpack.c.b16 %v2911, %v2910
      %v2933 = vpack.c.b16 %v2913, %v2912
      %v2934 = vpack.c.b16 %v2915, %v2914
      %v2935 = vpack.c.b16 %v2916, %v2916
      %vm2936 = vcmask 1045504
      %v2937 = vrot.slane %v2917, 2
      %v2938 = vrot.slane %v2918, 2
      %v2939 = vsel %vm2936, %v2937, %v2938
      %v2940 = vrot.slane %v2919, 2
      %v2941 = vsel %vm2936, %v2938, %v2940
      %v2942 = vrot.slane %v2920, 2
      %v2943 = vsel %vm2936, %v2940, %v2942
      %v2944 = vrot.slane %v2921, 2
      %v2945 = vsel %vm2936, %v2942, %v2944
      %v2946 = vrot.slane %v2922, 2
      %v2947 = vsel %vm2936, %v2944, %v2946
      %v2948 = vrot.slane %v2923, 2
      %v2949 = vsel %vm2936, %v2946, %v2948
      %v2950 = vrot.slane %v2924, 2
      %v2951 = vsel %vm2936, %v2948, %v2950
      %v2952 = vrot.slane %v2925, 2
      %v2953 = vsel %vm2936, %v2950, %v2952
      %v2954 = vrot.slane %v2926, 2
      %v2955 = vsel %vm2936, %v2952, %v2954
      %v2956 = vrot.slane %v2927, 2
      %v2957 = vsel %vm2936, %v2954, %v2956
      %v2958 = vrot.slane %v2928, 2
      %v2959 = vsel %vm2936, %v2956, %v2958
      %v2960 = vrot.slane %v2929, 2
      %v2961 = vsel %vm2936, %v2958, %v2960
      %v2962 = vrot.slane %v2930, 2
      %v2963 = vsel %vm2936, %v2960, %v2962
      %v2964 = vrot.slane %v2931, 2
      %v2965 = vsel %vm2936, %v2962, %v2964
      %v2966 = vrot.slane %v2932, 2
      %v2967 = vsel %vm2936, %v2964, %v2966
      %v2968 = vrot.slane %v2933, 2
      %v2969 = vsel %vm2936, %v2966, %v2968
      %v2970 = vrot.slane %v2934, 2
      %v2971 = vsel %vm2936, %v2968, %v2970
      %v2972 = vrot.slane %v2935, 2
      %v2973 = vsel %vm2936, %v2970, %v2972
      %v2976 = vunpack.c.l.b16 %v2841
      %v2977 = vunpack.c.l.b16 %v2842
      %v2978 = vpack.c.b16 %v2977, %v2976
      %v2980 = vsel %vm2320, %v2939, 0
      %v2983 = vsel %vm2320, %v2941, 0
      %v2986 = vsel %vm2320, %v2943, 0
      %v2989 = vsel %vm2320, %v2945, 0
      %v2992 = vsel %vm2320, %v2947, 0
      %v2995 = vsel %vm2320, %v2949, 0
      %v2998 = vsel %vm2320, %v2951, 0
      %v3001 = vsel %vm2320, %v2953, 0
      %v3004 = vsel %vm2320, %v2955, 0
      %v3007 = vsel %vm2320, %v2957, 0
      %v3010 = vsel %vm2320, %v2959, 0
      %v3013 = vsel %vm2320, %v2961, 0
      %v3016 = vsel %vm2320, %v2963, 0
      %v3019 = vsel %vm2320, %v2965, 0
      %v3022 = vsel %vm2320, %v2967, 0
      %v3025 = vsel %vm2320, %v2969, 0
      %v3028 = vsel %vm2320, %v2971, 0
      %v3031 = vsel %vm2320, %v2973, 0
      %v3034 = vsel %vm2375, %v2978, 0
      %3036 = vmatprep.subr.bf16.mxu0 0
      %3037 = vmatpush1.bf16.msra.mxu0 0
      %3038 = vmatprep.subr.bf16.mxu0 0
      %3039 = vmatpush1.bf16.msra.mxu0 0
      %3040 = vmatprep.subr.bf16.mxu0 0
      %3041 = vmatpush1.bf16.msra.mxu0 0
      %3042 = vmatprep.subr.bf16.mxu0 0
      %3043 = vmatpush1.bf16.msra.mxu0 0
      %3044 = vmatprep.subr.bf16.mxu0 0
      %3045 = vmatpush1.bf16.msra.mxu0 0
      %3046 = vmatprep.subr.bf16.mxu0 0
      %3047 = vmatpush1.bf16.msra.mxu0 0
      %3048 = vmatprep.subr.bf16.mxu0 0
      %3049 = vmatpush1.bf16.msra.mxu0 0
      %3050 = vmatprep.subr.bf16.mxu0 0
      %3051 = vmatpush1.bf16.msra.mxu0 %v3034
      %3052 = vmatprep.subr.bf16.mxu0 0
      %3053 = vmatpush2.bf16.msra.mxu0 0
      %3054 = vmatprep.subr.bf16.mxu0 0
      %3055 = vmatpush2.bf16.msra.mxu0 0
      %3056 = vmatprep.subr.bf16.mxu0 0
      %3057 = vmatpush2.bf16.msra.mxu0 0
      %3058 = vmatprep.subr.bf16.mxu0 0
      %3059 = vmatpush2.bf16.msra.mxu0 0
      %3060 = vmatprep.subr.bf16.mxu0 0
      %3061 = vmatpush2.bf16.msra.mxu0 0
      %3062 = vmatprep.subr.bf16.mxu0 0
      %3063 = vmatpush2.bf16.msra.mxu0 0
      %3064 = vmatprep.subr.bf16.mxu0 0
      %3065 = vmatpush2.bf16.msra.mxu0 0
      %3066 = vmatprep.subr.bf16.mxu0 0
      %3067 = vmatpush2.bf16.msra.mxu0 0
      %3068 = vmatprep.mubr.bf16.mxu0 0
      %3069 = vmatmul.mubr.bf16.gmra.mxu0 %v2980
      %v3070 = vpop.f32.mrf.mxu0
      %v3071 = vadd.f32 0.0, %v3070
      %v3072 = vpop.f32.mrf.mxu0
      %v3073 = vpop.f32.mrf.mxu0
      %v3074 = vadd.f32 0.0, %v3073
      %v3075 = vpop.f32.mrf.mxu0
      %3076 = vmatprep.mubr.bf16.mxu0 0
      %3077 = vmatmul.mubr.bf16.gmra.mxu0 %v2983
      %v3078 = vpop.f32.mrf.mxu0
      %v3079 = vadd.f32 0.0, %v3078
      %v3080 = vpop.f32.mrf.mxu0
      %v3081 = vpop.f32.mrf.mxu0
      %v3082 = vadd.f32 0.0, %v3081
      %v3083 = vpop.f32.mrf.mxu0
      %3084 = vmatprep.mubr.bf16.mxu0 0
      %3085 = vmatmul.mubr.bf16.gmra.mxu0 %v2986
      %v3086 = vpop.f32.mrf.mxu0
      %v3087 = vadd.f32 0.0, %v3086
      %v3088 = vpop.f32.mrf.mxu0
      %v3089 = vpop.f32.mrf.mxu0
      %v3090 = vadd.f32 0.0, %v3089
      %v3091 = vpop.f32.mrf.mxu0
      %3092 = vmatprep.mubr.bf16.mxu0 0
      %3093 = vmatmul.mubr.bf16.gmra.mxu0 %v2989
      %v3094 = vpop.f32.mrf.mxu0
      %v3095 = vadd.f32 0.0, %v3094
      %v3096 = vpop.f32.mrf.mxu0
      %v3097 = vpop.f32.mrf.mxu0
      %v3098 = vadd.f32 0.0, %v3097
      %v3099 = vpop.f32.mrf.mxu0
      %3100 = vmatprep.mubr.bf16.mxu0 0
      %3101 = vmatmul.mubr.bf16.gmra.mxu0 %v2992
      %v3102 = vpop.f32.mrf.mxu0
      %v3103 = vadd.f32 0.0, %v3102
      %v3104 = vpop.f32.mrf.mxu0
      %v3105 = vpop.f32.mrf.mxu0
      %v3106 = vadd.f32 0.0, %v3105
      %v3107 = vpop.f32.mrf.mxu0
      %3108 = vmatprep.mubr.bf16.mxu0 0
      %3109 = vmatmul.mubr.bf16.gmra.mxu0 %v2995
      %v3110 = vpop.f32.mrf.mxu0
      %v3111 = vadd.f32 0.0, %v3110
      %v3112 = vpop.f32.mrf.mxu0
      %v3113 = vpop.f32.mrf.mxu0
      %v3114 = vadd.f32 0.0, %v3113
      %v3115 = vpop.f32.mrf.mxu0
      %3116 = vmatprep.mubr.bf16.mxu0 0
      %3117 = vmatmul.mubr.bf16.gmra.mxu0 %v2998
      %v3118 = vpop.f32.mrf.mxu0
      %v3119 = vadd.f32 0.0, %v3118
      %v3120 = vpop.f32.mrf.mxu0
      %v3121 = vpop.f32.mrf.mxu0
      %v3122 = vadd.f32 0.0, %v3121
      %v3123 = vpop.f32.mrf.mxu0
      %3124 = vmatprep.mubr.bf16.mxu0 0
      %3125 = vmatmul.mubr.bf16.gmra.mxu0 %v3001
      %v3126 = vpop.f32.mrf.mxu0
      %v3127 = vadd.f32 0.0, %v3126
      %v3128 = vpop.f32.mrf.mxu0
      %v3129 = vpop.f32.mrf.mxu0
      %v3130 = vadd.f32 0.0, %v3129
      %v3131 = vpop.f32.mrf.mxu0
      %3132 = vmatprep.mubr.bf16.mxu0 0
      %3133 = vmatmul.mubr.bf16.gmra.mxu0 %v3004
      %v3134 = vpop.f32.mrf.mxu0
      %v3135 = vadd.f32 0.0, %v3134
      %v3136 = vpop.f32.mrf.mxu0
      %v3137 = vpop.f32.mrf.mxu0
      %v3138 = vadd.f32 0.0, %v3137
      %v3139 = vpop.f32.mrf.mxu0
      %3140 = vmatprep.mubr.bf16.mxu0 0
      %3141 = vmatmul.mubr.bf16.gmra.mxu0 %v3007
      %v3142 = vpop.f32.mrf.mxu0
      %v3143 = vadd.f32 0.0, %v3142
      %v3144 = vpop.f32.mrf.mxu0
      %v3145 = vpop.f32.mrf.mxu0
      %v3146 = vadd.f32 0.0, %v3145
      %v3147 = vpop.f32.mrf.mxu0
      %3148 = vmatprep.mubr.bf16.mxu0 0
      %3149 = vmatmul.mubr.bf16.gmra.mxu0 %v3010
      %v3150 = vpop.f32.mrf.mxu0
      %v3151 = vadd.f32 0.0, %v3150
      %v3152 = vpop.f32.mrf.mxu0
      %v3153 = vpop.f32.mrf.mxu0
      %v3154 = vadd.f32 0.0, %v3153
      %v3155 = vpop.f32.mrf.mxu0
      %3156 = vmatprep.mubr.bf16.mxu0 0
      %3157 = vmatmul.mubr.bf16.gmra.mxu0 %v3013
      %v3158 = vpop.f32.mrf.mxu0
      %v3159 = vadd.f32 0.0, %v3158
      %v3160 = vpop.f32.mrf.mxu0
      %v3161 = vpop.f32.mrf.mxu0
      %v3162 = vadd.f32 0.0, %v3161
      %v3163 = vpop.f32.mrf.mxu0
      %3164 = vmatprep.mubr.bf16.mxu0 0
      %3165 = vmatmul.mubr.bf16.gmra.mxu0 %v3016
      %v3166 = vpop.f32.mrf.mxu0
      %v3167 = vadd.f32 0.0, %v3166
      %v3168 = vpop.f32.mrf.mxu0
      %v3169 = vpop.f32.mrf.mxu0
      %v3170 = vadd.f32 0.0, %v3169
      %v3171 = vpop.f32.mrf.mxu0
      %3172 = vmatprep.mubr.bf16.mxu0 0
      %3173 = vmatmul.mubr.bf16.gmra.mxu0 %v3019
      %v3174 = vpop.f32.mrf.mxu0
      %v3175 = vadd.f32 0.0, %v3174
      %v3176 = vpop.f32.mrf.mxu0
      %v3177 = vpop.f32.mrf.mxu0
      %v3178 = vadd.f32 0.0, %v3177
      %v3179 = vpop.f32.mrf.mxu0
      %3180 = vmatprep.mubr.bf16.mxu0 0
      %3181 = vmatmul.mubr.bf16.gmra.mxu0 %v3022
      %v3182 = vpop.f32.mrf.mxu0
      %v3183 = vadd.f32 0.0, %v3182
      %v3184 = vpop.f32.mrf.mxu0
      %v3185 = vpop.f32.mrf.mxu0
      %v3186 = vadd.f32 0.0, %v3185
      %v3187 = vpop.f32.mrf.mxu0
      %3188 = vmatprep.mubr.bf16.mxu0 0
      %3189 = vmatmul.mubr.bf16.gmra.mxu0 %v3025
      %v3190 = vpop.f32.mrf.mxu0
      %v3191 = vadd.f32 0.0, %v3190
      %v3192 = vpop.f32.mrf.mxu0
      %v3193 = vpop.f32.mrf.mxu0
      %v3194 = vadd.f32 0.0, %v3193
      %v3195 = vpop.f32.mrf.mxu0
      %3196 = vmatprep.mubr.bf16.mxu0 0
      %3197 = vmatmul.mubr.bf16.gmra.mxu0 %v3028
      %v3198 = vpop.f32.mrf.mxu0
      %v3199 = vadd.f32 0.0, %v3198
      %v3200 = vpop.f32.mrf.mxu0
      %v3201 = vpop.f32.mrf.mxu0
      %v3202 = vadd.f32 0.0, %v3201
      %v3203 = vpop.f32.mrf.mxu0
      %3204 = vmatprep.mubr.bf16.mxu0 0
      %3205 = vmatmul.mubr.bf16.gmra.mxu0 %v3031
      %v3206 = vpop.f32.mrf.mxu0
      %v3207 = vadd.f32 0.0, %v3206
      %v3208 = vpop.f32.mrf.mxu0
      %v3209 = vpop.f32.mrf.mxu0
      %v3210 = vadd.f32 0.0, %v3209
      %v3211 = vpop.f32.mrf.mxu0
      %3212 = vdwg.mxu0
      %v3213 = vadd.f32 %v2661, %v3071
      %v3214 = vadd.f32 %v2664, %v3074
      %v3215 = vadd.f32 %v2669, %v3079
      %v3216 = vadd.f32 %v2672, %v3082
      %v3217 = vadd.f32 %v2677, %v3087
      %v3218 = vadd.f32 %v2680, %v3090
      %v3219 = vadd.f32 %v2685, %v3095
      %v3220 = vadd.f32 %v2688, %v3098
      %v3221 = vadd.f32 %v2693, %v3103
      %v3222 = vadd.f32 %v2696, %v3106
      %v3223 = vadd.f32 %v2701, %v3111
      %v3224 = vadd.f32 %v2704, %v3114
      %v3225 = vadd.f32 %v2709, %v3119
      %v3226 = vadd.f32 %v2712, %v3122
      %v3227 = vadd.f32 %v2717, %v3127
      %v3228 = vadd.f32 %v2720, %v3130
      %v3229 = vadd.f32 %v2725, %v3135
      %v3230 = vadd.f32 %v2728, %v3138
      %v3231 = vadd.f32 %v2733, %v3143
      %v3232 = vadd.f32 %v2736, %v3146
      %v3233 = vadd.f32 %v2741, %v3151
      %v3234 = vadd.f32 %v2744, %v3154
      %v3235 = vadd.f32 %v2749, %v3159
      %v3236 = vadd.f32 %v2752, %v3162
      %v3237 = vadd.f32 %v2757, %v3167
      %v3238 = vadd.f32 %v2760, %v3170
      %v3239 = vadd.f32 %v2765, %v3175
      %v3240 = vadd.f32 %v2768, %v3178
      %v3241 = vadd.f32 %v2773, %v3183
      %v3242 = vadd.f32 %v2776, %v3186
      %v3243 = vadd.f32 %v2781, %v3191
      %v3244 = vadd.f32 %v2784, %v3194
      %v3245 = vadd.f32 %v2789, %v3199
      %v3246 = vadd.f32 %v2792, %v3202
      %v3247 = vadd.f32 %v2797, %v3207
      %v3248 = vadd.f32 %v2800, %v3210
      %v3249 = vld [vmem:[%s5] sm:$0x1]
      %v3251 = vlaneseq
      %v3252 = vshrl.u32 %v3251, 7
      %v3253 = vsub.s32 0, %v3252
      %v3254 = vrot.slane %v3249, %v3253
      %v3256 = vadd.f32 %v3213, %v3254
      %v3257 = vadd.f32 %v3214, %v3254
      %v3258 = vadd.f32 %v3215, %v3254
      %v3259 = vadd.f32 %v3216, %v3254
      %v3260 = vadd.f32 %v3217, %v3254
      %v3261 = vadd.f32 %v3218, %v3254
      %v3262 = vadd.f32 %v3219, %v3254
      %v3263 = vadd.f32 %v3220, %v3254
      %v3264 = vadd.f32 %v3221, %v3254
      %v3265 = vadd.f32 %v3222, %v3254
      %v3266 = vadd.f32 %v3223, %v3254
      %v3267 = vadd.f32 %v3224, %v3254
      %v3268 = vadd.f32 %v3225, %v3254
      %v3269 = vadd.f32 %v3226, %v3254
      %v3270 = vadd.f32 %v3227, %v3254
      %v3271 = vadd.f32 %v3228, %v3254
      %v3272 = vadd.f32 %v3229, %v3254
      %v3273 = vadd.f32 %v3230, %v3254
      %v3274 = vadd.f32 %v3231, %v3254
      %v3275 = vadd.f32 %v3232, %v3254
      %v3276 = vadd.f32 %v3233, %v3254
      %v3277 = vadd.f32 %v3234, %v3254
      %v3278 = vadd.f32 %v3235, %v3254
      %v3279 = vadd.f32 %v3236, %v3254
      %v3280 = vadd.f32 %v3237, %v3254
      %v3281 = vadd.f32 %v3238, %v3254
      %v3282 = vadd.f32 %v3239, %v3254
      %v3283 = vadd.f32 %v3240, %v3254
      %v3284 = vadd.f32 %v3241, %v3254
      %v3285 = vadd.f32 %v3242, %v3254
      %v3286 = vadd.f32 %v3243, %v3254
      %v3287 = vadd.f32 %v3244, %v3254
      %v3288 = vadd.f32 %v3245, %v3254
      %v3289 = vadd.f32 %v3246, %v3254
      %v3290 = vadd.f32 %v3247, %v3254
      %v3291 = vadd.f32 %v3248, %v3254
      %v3292 = vmax.f32 %v3256, 0.0
      %v3293 = vmax.f32 %v3257, 0.0
      %v3294 = vmax.f32 %v3258, 0.0
      %v3295 = vmax.f32 %v3259, 0.0
      %v3296 = vmax.f32 %v3260, 0.0
      %v3297 = vmax.f32 %v3261, 0.0
      %v3298 = vmax.f32 %v3262, 0.0
      %v3299 = vmax.f32 %v3263, 0.0
      %v3300 = vmax.f32 %v3264, 0.0
      %v3301 = vmax.f32 %v3265, 0.0
      %v3302 = vmax.f32 %v3266, 0.0
      %v3303 = vmax.f32 %v3267, 0.0
      %v3304 = vmax.f32 %v3268, 0.0
      %v3305 = vmax.f32 %v3269, 0.0
      %v3306 = vmax.f32 %v3270, 0.0
      %v3307 = vmax.f32 %v3271, 0.0
      %v3308 = vmax.f32 %v3272, 0.0
      %v3309 = vmax.f32 %v3273, 0.0
      %v3310 = vmax.f32 %v3274, 0.0
      %v3311 = vmax.f32 %v3275, 0.0
      %v3312 = vmax.f32 %v3276, 0.0
      %v3313 = vmax.f32 %v3277, 0.0
      %v3314 = vmax.f32 %v3278, 0.0
      %v3315 = vmax.f32 %v3279, 0.0
      %v3316 = vmax.f32 %v3280, 0.0
      %v3317 = vmax.f32 %v3281, 0.0
      %v3318 = vmax.f32 %v3282, 0.0
      %v3319 = vmax.f32 %v3283, 0.0
      %v3320 = vmax.f32 %v3284, 0.0
      %v3321 = vmax.f32 %v3285, 0.0
      %v3322 = vmax.f32 %v3286, 0.0
      %v3323 = vmax.f32 %v3287, 0.0
      %v3324 = vmax.f32 %v3288, 0.0
      %v3325 = vmax.f32 %v3289, 0.0
      %v3326 = vmax.f32 %v3290, 0.0
      %v3327 = vmax.f32 %v3291, 0.0
      %v3328 = vpack.c.bf16 %v3293, %v3292
      %v3329 = vpack.c.bf16 %v3295, %v3294
      %v3330 = vpack.c.bf16 %v3297, %v3296
      %v3331 = vpack.c.bf16 %v3299, %v3298
      %v3332 = vpack.c.bf16 %v3301, %v3300
      %v3333 = vpack.c.bf16 %v3303, %v3302
      %v3334 = vpack.c.bf16 %v3305, %v3304
      %v3335 = vpack.c.bf16 %v3307, %v3306
      %v3336 = vpack.c.bf16 %v3309, %v3308
      %v3337 = vpack.c.bf16 %v3311, %v3310
      %v3338 = vpack.c.bf16 %v3313, %v3312
      %v3339 = vpack.c.bf16 %v3315, %v3314
      %v3340 = vpack.c.bf16 %v3317, %v3316
      %v3341 = vpack.c.bf16 %v3319, %v3318
      %v3342 = vpack.c.bf16 %v3321, %v3320
      %v3343 = vpack.c.bf16 %v3323, %v3322
      %v3344 = vpack.c.bf16 %v3325, %v3324
      %v3345 = vpack.c.bf16 %v3327, %v3326
      %v3346 = vld [vmem:[%s6] sm:$0x3]
      %v3347 = vld [vmem:[%s7] sm:$0x1]
      %v3349 = vlaneseq
      %v3350 = vshrl.u32 %v3349, 7
      %v3351 = vsub.s32 0, %v3350
      %v3352 = vrot.slane %v3347, %v3351
      %vm3354 = vcmask 31744
      %v3356 = vsel %vm3354, %v3328, 0
      %v3359 = vsel %vm3354, %v3329, 0
      %v3362 = vsel %vm3354, %v3330, 0
      %v3365 = vsel %vm3354, %v3331, 0
      %v3368 = vsel %vm3354, %v3332, 0
      %v3371 = vsel %vm3354, %v3333, 0
      %v3374 = vsel %vm3354, %v3334, 0
      %v3377 = vsel %vm3354, %v3335, 0
      %v3380 = vsel %vm3354, %v3336, 0
      %v3383 = vsel %vm3354, %v3337, 0
      %v3386 = vsel %vm3354, %v3338, 0
      %v3389 = vsel %vm3354, %v3339, 0
      %v3392 = vsel %vm3354, %v3340, 0
      %v3395 = vsel %vm3354, %v3341, 0
      %v3398 = vsel %vm3354, %v3342, 0
      %v3401 = vsel %vm3354, %v3343, 0
      %v3404 = vsel %vm3354, %v3344, 0
      %v3407 = vsel %vm3354, %v3345, 0
      %vm3409 = vcmask 1041408
      %v3411 = vsel %vm3409, %v3346, 0
      %3413 = vmatprep.subr.bf16.mxu0 0
      %3414 = vmatpush1.bf16.msra.mxu0 0
      %3415 = vmatprep.subr.bf16.mxu0 0
      %3416 = vmatpush1.bf16.msra.mxu0 0
      %3417 = vmatprep.subr.bf16.mxu0 0
      %3418 = vmatpush1.bf16.msra.mxu0 0
      %3419 = vmatprep.subr.bf16.mxu0 0
      %3420 = vmatpush1.bf16.msra.mxu0 0
      %3421 = vmatprep.subr.bf16.mxu0 0
      %3422 = vmatpush1.bf16.msra.mxu0 0
      %3423 = vmatprep.subr.bf16.mxu0 0
      %3424 = vmatpush1.bf16.msra.mxu0 0
      %3425 = vmatprep.subr.bf16.mxu0 0
      %3426 = vmatpush1.bf16.msra.mxu0 0
      %3427 = vmatprep.subr.bf16.mxu0 0
      %3428 = vmatpush1.bf16.msra.mxu0 %v3411
      %3429 = vmatprep.subr.bf16.mxu0 0
      %3430 = vmatpush2.bf16.msra.mxu0 0
      %3431 = vmatprep.subr.bf16.mxu0 0
      %3432 = vmatpush2.bf16.msra.mxu0 0
      %3433 = vmatprep.subr.bf16.mxu0 0
      %3434 = vmatpush2.bf16.msra.mxu0 0
      %3435 = vmatprep.subr.bf16.mxu0 0
      %3436 = vmatpush2.bf16.msra.mxu0 0
      %3437 = vmatprep.subr.bf16.mxu0 0
      %3438 = vmatpush2.bf16.msra.mxu0 0
      %3439 = vmatprep.subr.bf16.mxu0 0
      %3440 = vmatpush2.bf16.msra.mxu0 0
      %3441 = vmatprep.subr.bf16.mxu0 0
      %3442 = vmatpush2.bf16.msra.mxu0 0
      %3443 = vmatprep.subr.bf16.mxu0 0
      %3444 = vmatpush2.bf16.msra.mxu0 0
      %3445 = vmatprep.mubr.bf16.mxu0 0
      %3446 = vmatmul.mubr.bf16.gmra.mxu0 %v3356
      %v3447 = vpop.f32.mrf.mxu0
      %v3448 = vadd.f32 %v3352, %v3447
      %v3449 = vpop.f32.mrf.mxu0
      %v3450 = vpop.f32.mrf.mxu0
      %v3451 = vadd.f32 %v3352, %v3450
      %v3452 = vpop.f32.mrf.mxu0
      %3453 = vmatprep.mubr.bf16.mxu0 0
      %3454 = vmatmul.mubr.bf16.gmra.mxu0 %v3359
      %v3455 = vpop.f32.mrf.mxu0
      %v3456 = vadd.f32 %v3352, %v3455
      %v3457 = vpop.f32.mrf.mxu0
      %v3458 = vpop.f32.mrf.mxu0
      %v3459 = vadd.f32 %v3352, %v3458
      %v3460 = vpop.f32.mrf.mxu0
      %3461 = vmatprep.mubr.bf16.mxu0 0
      %3462 = vmatmul.mubr.bf16.gmra.mxu0 %v3362
      %v3463 = vpop.f32.mrf.mxu0
      %v3464 = vadd.f32 %v3352, %v3463
      %v3465 = vpop.f32.mrf.mxu0
      %v3466 = vpop.f32.mrf.mxu0
      %v3467 = vadd.f32 %v3352, %v3466
      %v3468 = vpop.f32.mrf.mxu0
      %3469 = vmatprep.mubr.bf16.mxu0 0
      %3470 = vmatmul.mubr.bf16.gmra.mxu0 %v3365
      %v3471 = vpop.f32.mrf.mxu0
      %v3472 = vadd.f32 %v3352, %v3471
      %v3473 = vpop.f32.mrf.mxu0
      %v3474 = vpop.f32.mrf.mxu0
      %v3475 = vadd.f32 %v3352, %v3474
      %v3476 = vpop.f32.mrf.mxu0
      %3477 = vmatprep.mubr.bf16.mxu0 0
      %3478 = vmatmul.mubr.bf16.gmra.mxu0 %v3368
      %v3479 = vpop.f32.mrf.mxu0
      %v3480 = vadd.f32 %v3352, %v3479
      %v3481 = vpop.f32.mrf.mxu0
      %v3482 = vpop.f32.mrf.mxu0
      %v3483 = vadd.f32 %v3352, %v3482
      %v3484 = vpop.f32.mrf.mxu0
      %3485 = vmatprep.mubr.bf16.mxu0 0
      %3486 = vmatmul.mubr.bf16.gmra.mxu0 %v3371
      %v3487 = vpop.f32.mrf.mxu0
      %v3488 = vadd.f32 %v3352, %v3487
      %v3489 = vpop.f32.mrf.mxu0
      %v3490 = vpop.f32.mrf.mxu0
      %v3491 = vadd.f32 %v3352, %v3490
      %v3492 = vpop.f32.mrf.mxu0
      %3493 = vmatprep.mubr.bf16.mxu0 0
      %3494 = vmatmul.mubr.bf16.gmra.mxu0 %v3374
      %v3495 = vpop.f32.mrf.mxu0
      %v3496 = vadd.f32 %v3352, %v3495
      %v3497 = vpop.f32.mrf.mxu0
      %v3498 = vpop.f32.mrf.mxu0
      %v3499 = vadd.f32 %v3352, %v3498
      %v3500 = vpop.f32.mrf.mxu0
      %3501 = vmatprep.mubr.bf16.mxu0 0
      %3502 = vmatmul.mubr.bf16.gmra.mxu0 %v3377
      %v3503 = vpop.f32.mrf.mxu0
      %v3504 = vadd.f32 %v3352, %v3503
      %v3505 = vpop.f32.mrf.mxu0
      %v3506 = vpop.f32.mrf.mxu0
      %v3507 = vadd.f32 %v3352, %v3506
      %v3508 = vpop.f32.mrf.mxu0
      %3509 = vmatprep.mubr.bf16.mxu0 0
      %3510 = vmatmul.mubr.bf16.gmra.mxu0 %v3380
      %v3511 = vpop.f32.mrf.mxu0
      %v3512 = vadd.f32 %v3352, %v3511
      %v3513 = vpop.f32.mrf.mxu0
      %v3514 = vpop.f32.mrf.mxu0
      %v3515 = vadd.f32 %v3352, %v3514
      %v3516 = vpop.f32.mrf.mxu0
      %3517 = vmatprep.mubr.bf16.mxu0 0
      %3518 = vmatmul.mubr.bf16.gmra.mxu0 %v3383
      %v3519 = vpop.f32.mrf.mxu0
      %v3520 = vadd.f32 %v3352, %v3519
      %v3521 = vpop.f32.mrf.mxu0
      %v3522 = vpop.f32.mrf.mxu0
      %v3523 = vadd.f32 %v3352, %v3522
      %v3524 = vpop.f32.mrf.mxu0
      %3525 = vmatprep.mubr.bf16.mxu0 0
      %3526 = vmatmul.mubr.bf16.gmra.mxu0 %v3386
      %v3527 = vpop.f32.mrf.mxu0
      %v3528 = vadd.f32 %v3352, %v3527
      %v3529 = vpop.f32.mrf.mxu0
      %v3530 = vpop.f32.mrf.mxu0
      %v3531 = vadd.f32 %v3352, %v3530
      %v3532 = vpop.f32.mrf.mxu0
      %3533 = vmatprep.mubr.bf16.mxu0 0
      %3534 = vmatmul.mubr.bf16.gmra.mxu0 %v3389
      %v3535 = vpop.f32.mrf.mxu0
      %v3536 = vadd.f32 %v3352, %v3535
      %v3537 = vpop.f32.mrf.mxu0
      %v3538 = vpop.f32.mrf.mxu0
      %v3539 = vadd.f32 %v3352, %v3538
      %v3540 = vpop.f32.mrf.mxu0
      %3541 = vmatprep.mubr.bf16.mxu0 0
      %3542 = vmatmul.mubr.bf16.gmra.mxu0 %v3392
      %v3543 = vpop.f32.mrf.mxu0
      %v3544 = vadd.f32 %v3352, %v3543
      %v3545 = vpop.f32.mrf.mxu0
      %v3546 = vpop.f32.mrf.mxu0
      %v3547 = vadd.f32 %v3352, %v3546
      %v3548 = vpop.f32.mrf.mxu0
      %3549 = vmatprep.mubr.bf16.mxu0 0
      %3550 = vmatmul.mubr.bf16.gmra.mxu0 %v3395
      %v3551 = vpop.f32.mrf.mxu0
      %v3552 = vadd.f32 %v3352, %v3551
      %v3553 = vpop.f32.mrf.mxu0
      %v3554 = vpop.f32.mrf.mxu0
      %v3555 = vadd.f32 %v3352, %v3554
      %v3556 = vpop.f32.mrf.mxu0
      %3557 = vmatprep.mubr.bf16.mxu0 0
      %3558 = vmatmul.mubr.bf16.gmra.mxu0 %v3398
      %v3559 = vpop.f32.mrf.mxu0
      %v3560 = vadd.f32 %v3352, %v3559
      %v3561 = vpop.f32.mrf.mxu0
      %v3562 = vpop.f32.mrf.mxu0
      %v3563 = vadd.f32 %v3352, %v3562
      %v3564 = vpop.f32.mrf.mxu0
      %3565 = vmatprep.mubr.bf16.mxu0 0
      %3566 = vmatmul.mubr.bf16.gmra.mxu0 %v3401
      %v3567 = vpop.f32.mrf.mxu0
      %v3568 = vadd.f32 %v3352, %v3567
      %v3569 = vpop.f32.mrf.mxu0
      %v3570 = vpop.f32.mrf.mxu0
      %v3571 = vadd.f32 %v3352, %v3570
      %v3572 = vpop.f32.mrf.mxu0
      %3573 = vmatprep.mubr.bf16.mxu0 0
      %3574 = vmatmul.mubr.bf16.gmra.mxu0 %v3404
      %v3575 = vpop.f32.mrf.mxu0
      %v3576 = vadd.f32 %v3352, %v3575
      %v3577 = vpop.f32.mrf.mxu0
      %v3578 = vpop.f32.mrf.mxu0
      %v3579 = vadd.f32 %v3352, %v3578
      %v3580 = vpop.f32.mrf.mxu0
      %3581 = vmatprep.mubr.bf16.mxu0 0
      %3582 = vmatmul.mubr.bf16.gmra.mxu0 %v3407
      %v3583 = vpop.f32.mrf.mxu0
      %v3584 = vadd.f32 %v3352, %v3583
      %v3585 = vpop.f32.mrf.mxu0
      %v3586 = vpop.f32.mrf.mxu0
      %v3587 = vadd.f32 %v3352, %v3586
      %v3588 = vpop.f32.mrf.mxu0
      %3589 = vdwg.mxu0
      %v3590 = vunpack.c.l.bf16 %v307
      %v3591 = vunpack.c.l.bf16 %v308
      %v3592 = vunpack.c.l.bf16 %v309
      %v3593 = vunpack.c.l.bf16 %v310
      %v3594 = vunpack.c.l.bf16 %v311
      %v3595 = vunpack.c.l.bf16 %v312
      %v3596 = vunpack.c.l.bf16 %v313
      %v3597 = vunpack.c.l.bf16 %v314
      %v3598 = vunpack.c.l.bf16 %v315
      %v3599 = vunpack.c.l.bf16 %v316
      %v3600 = vunpack.c.l.bf16 %v317
      %v3601 = vunpack.c.l.bf16 %v318
      %v3602 = vunpack.c.l.bf16 %v319
      %v3603 = vunpack.c.l.bf16 %v320
      %v3604 = vunpack.c.l.bf16 %v321
      %v3605 = vunpack.c.l.bf16 %v322
      %v3606 = vunpack.c.l.bf16 %v323
      %v3607 = vunpack.c.l.bf16 %v324
      %v3608 = vunpack.c.l.bf16 %v325
      %v3609 = vunpack.c.l.bf16 %v326
      %v3610 = vunpack.c.l.bf16 %v327
      %v3611 = vunpack.c.l.bf16 %v328
      %v3612 = vunpack.c.l.bf16 %v329
      %v3613 = vunpack.c.l.bf16 %v330
      %v3614 = vunpack.c.l.bf16 %v331
      %v3615 = vunpack.c.l.bf16 %v332
      %v3616 = vunpack.c.l.bf16 %v333
      %v3617 = vunpack.c.l.bf16 %v334
      %v3618 = vunpack.c.l.bf16 %v335
      %v3619 = vunpack.c.l.bf16 %v336
      %v3620 = vunpack.c.l.bf16 %v337
      %v3621 = vunpack.c.l.bf16 %v338
      %v3622 = vunpack.c.l.bf16 %v339
      %v3623 = vunpack.c.l.bf16 %v340
      %v3624 = vunpack.c.l.bf16 %v341
      %v3625 = vunpack.c.l.bf16 %v342
      %v3626 = vadd.f32 %v3448, %v3590
      %v3627 = vadd.f32 %v3451, %v3591
      %v3628 = vadd.f32 %v3456, %v3592
      %v3629 = vadd.f32 %v3459, %v3593
      %v3630 = vadd.f32 %v3464, %v3594
      %v3631 = vadd.f32 %v3467, %v3595
      %v3632 = vadd.f32 %v3472, %v3596
      %v3633 = vadd.f32 %v3475, %v3597
      %v3634 = vadd.f32 %v3480, %v3598
      %v3635 = vadd.f32 %v3483, %v3599
      %v3636 = vadd.f32 %v3488, %v3600
      %v3637 = vadd.f32 %v3491, %v3601
      %v3638 = vadd.f32 %v3496, %v3602
      %v3639 = vadd.f32 %v3499, %v3603
      %v3640 = vadd.f32 %v3504, %v3604
      %v3641 = vadd.f32 %v3507, %v3605
      %v3642 = vadd.f32 %v3512, %v3606
      %v3643 = vadd.f32 %v3515, %v3607
      %v3644 = vadd.f32 %v3520, %v3608
      %v3645 = vadd.f32 %v3523, %v3609
      %v3646 = vadd.f32 %v3528, %v3610
      %v3647 = vadd.f32 %v3531, %v3611
      %v3648 = vadd.f32 %v3536, %v3612
      %v3649 = vadd.f32 %v3539, %v3613
      %v3650 = vadd.f32 %v3544, %v3614
      %v3651 = vadd.f32 %v3547, %v3615
      %v3652 = vadd.f32 %v3552, %v3616
      %v3653 = vadd.f32 %v3555, %v3617
      %v3654 = vadd.f32 %v3560, %v3618
      %v3655 = vadd.f32 %v3563, %v3619
      %v3656 = vadd.f32 %v3568, %v3620
      %v3657 = vadd.f32 %v3571, %v3621
      %v3658 = vadd.f32 %v3576, %v3622
      %v3659 = vadd.f32 %v3579, %v3623
      %v3660 = vadd.f32 %v3584, %v3624
      %v3661 = vadd.f32 %v3587, %v3625
      %v3662 = vmax.f32 %v3626, 0.0
      %v3663 = vmax.f32 %v3627, 0.0
      %v3664 = vmax.f32 %v3628, 0.0
      %v3665 = vmax.f32 %v3629, 0.0
      %v3666 = vmax.f32 %v3630, 0.0
      %v3667 = vmax.f32 %v3631, 0.0
      %v3668 = vmax.f32 %v3632, 0.0
      %v3669 = vmax.f32 %v3633, 0.0
      %v3670 = vmax.f32 %v3634, 0.0
      %v3671 = vmax.f32 %v3635, 0.0
      %v3672 = vmax.f32 %v3636, 0.0
      %v3673 = vmax.f32 %v3637, 0.0
      %v3674 = vmax.f32 %v3638, 0.0
      %v3675 = vmax.f32 %v3639, 0.0
      %v3676 = vmax.f32 %v3640, 0.0
      %v3677 = vmax.f32 %v3641, 0.0
      %v3678 = vmax.f32 %v3642, 0.0
      %v3679 = vmax.f32 %v3643, 0.0
      %v3680 = vmax.f32 %v3644, 0.0
      %v3681 = vmax.f32 %v3645, 0.0
      %v3682 = vmax.f32 %v3646, 0.0
      %v3683 = vmax.f32 %v3647, 0.0
      %v3684 = vmax.f32 %v3648, 0.0
      %v3685 = vmax.f32 %v3649, 0.0
      %v3686 = vmax.f32 %v3650, 0.0
      %v3687 = vmax.f32 %v3651, 0.0
      %v3688 = vmax.f32 %v3652, 0.0
      %v3689 = vmax.f32 %v3653, 0.0
      %v3690 = vmax.f32 %v3654, 0.0
      %v3691 = vmax.f32 %v3655, 0.0
      %v3692 = vmax.f32 %v3656, 0.0
      %v3693 = vmax.f32 %v3657, 0.0
      %v3694 = vmax.f32 %v3658, 0.0
      %v3695 = vmax.f32 %v3659, 0.0
      %v3696 = vmax.f32 %v3660, 0.0
      %v3697 = vmax.f32 %v3661, 0.0
      %3698 = vst.msk [vmem:[%s305] sm:$0xff] %vm448, %v3662
      %3699 = vst.msk [vmem:[%s305 + $0x8] sm:$0xff] %vm448, %v3663
      %3700 = vst.msk [vmem:[%s305 + $0x10] sm:$0xff] %vm448, %v3664
      %3701 = vst.msk [vmem:[%s305 + $0x18] sm:$0xff] %vm448, %v3665
      %3702 = vst.msk [vmem:[%s305 + $0x20] sm:$0xff] %vm448, %v3666
      %3703 = vst.msk [vmem:[%s305 + $0x28] sm:$0xff] %vm448, %v3667
      %3704 = vst.msk [vmem:[%s305 + $0x30] sm:$0xff] %vm448, %v3668
      %3705 = vst.msk [vmem:[%s305 + $0x38] sm:$0xff] %vm448, %v3669
      %3706 = vst.msk [vmem:[%s305 + $0x40] sm:$0xff] %vm448, %v3670
      %3707 = vst.msk [vmem:[%s305 + $0x48] sm:$0xff] %vm448, %v3671
      %3708 = vst.msk [vmem:[%s305 + $0x50] sm:$0xff] %vm448, %v3672
      %3709 = vst.msk [vmem:[%s305 + $0x58] sm:$0xff] %vm448, %v3673
      %3710 = vst.msk [vmem:[%s305 + $0x60] sm:$0xff] %vm448, %v3674
      %3711 = vst.msk [vmem:[%s305 + $0x68] sm:$0xff] %vm448, %v3675
      %3712 = vst.msk [vmem:[%s305 + $0x70] sm:$0xff] %vm448, %v3676
      %3713 = vst.msk [vmem:[%s305 + $0x78] sm:$0xff] %vm448, %v3677
      %3714 = vst.msk [vmem:[%s305 + $0x80] sm:$0xff] %vm448, %v3678
      %3715 = vst.msk [vmem:[%s305 + $0x88] sm:$0xff] %vm448, %v3679
      %3716 = vst.msk [vmem:[%s305 + $0x90] sm:$0xff] %vm448, %v3680
      %3717 = vst.msk [vmem:[%s305 + $0x98] sm:$0xff] %vm448, %v3681
      %3718 = vst.msk [vmem:[%s305 + $0xa0] sm:$0xff] %vm448, %v3682
      %3719 = vst.msk [vmem:[%s305 + $0xa8] sm:$0xff] %vm448, %v3683
      %3720 = vst.msk [vmem:[%s305 + $0xb0] sm:$0xff] %vm448, %v3684
      %3721 = vst.msk [vmem:[%s305 + $0xb8] sm:$0xff] %vm448, %v3685
      %3722 = vst.msk [vmem:[%s305 + $0xc0] sm:$0xff] %vm448, %v3686
      %3723 = vst.msk [vmem:[%s305 + $0xc8] sm:$0xff] %vm448, %v3687
      %3724 = vst.msk [vmem:[%s305 + $0xd0] sm:$0xff] %vm448, %v3688
      %3725 = vst.msk [vmem:[%s305 + $0xd8] sm:$0xff] %vm448, %v3689
      %3726 = vst.msk [vmem:[%s305 + $0xe0] sm:$0xff] %vm448, %v3690
      %3727 = vst.msk [vmem:[%s305 + $0xe8] sm:$0xff] %vm448, %v3691
      %3728 = vst.msk [vmem:[%s305 + $0xf0] sm:$0xff] %vm448, %v3692
      %3729 = vst.msk [vmem:[%s305 + $0xf8] sm:$0xff] %vm448, %v3693
      %3730 = vst.msk [vmem:[%s305 + $0x100] sm:$0xff] %vm448, %v3694
      %3731 = vst.msk [vmem:[%s305 + $0x108] sm:$0xff] %vm448, %v3695
      %3732 = vst.msk [vmem:[%s305 + $0x110] sm:$0xff] %vm448, %v3696
      %3733 = vst.msk [vmem:[%s305 + $0x118] sm:$0xff] %vm448, %v3697
      %p3734 = scmp.lt.s32.totalorder %s19, 1
      %s3735 = scalar_select %p3734, %s19, 1
      %s3736 = smul.addr %s3735, 36
      %s3737 = smul.addr %s3736, 8
      %s3738 = scalar_lea.vmem %s8, %s3737
      // Predicated region
      $region53: #{bottleneck_forward.1} parent=51 // pred_check
        %p3739 = pneg %p210
      $region54: #{bottleneck_forward.1} parent=51 // pred_check_branch
        %3741 = sbr.rel (%p3739) target = $region56
      $region55: #{bottleneck_forward.1} parent=51 // pred_region
        _
      $region56: #{bottleneck_forward.1} parent=51 // pred_fallthru
        _
    $region52: #{bottleneck_forward.1} parent=5 // pred_fallthru
      _
    %p3742 = scmp.le.s32.totalorder 2, %s14
    // Predicated region
    $region57: #{bottleneck_forward.1} parent=5 // pred_check
      %p3743 = pneg %p3742
    $region58: #{bottleneck_forward.1} parent=5 // pred_check_branch
      %3745 = sbr.rel (%p3743) target = $region60
    $region59: #{bottleneck_forward.1} parent=5 // pred_region
      %s3746 = ssub.s32 %s14, 2
      // Predicated region
      $region61: #{bottleneck_forward.1} parent=59 // pred_check
        %p3747 = pneg %p216
      $region62: #{bottleneck_forward.1} parent=59 // pred_check_branch
        %3749 = sbr.rel (%p3747) target = $region64
      $region63: #{bottleneck_forward.1} parent=59 // pred_region
        %p3750 = scmp.lt.s32.totalorder %s20, 1
        %s3751 = scalar_select %p3750, %s20, 1
        %s3752 = smul.addr %s3751, 36
        %s3753 = smul.addr %s3752, 8
        %s3754 = scalar_lea.vmem %s8, %s3753
      $region64: #{bottleneck_forward.1} parent=59 // pred_fallthru
        _
    $region60: #{bottleneck_forward.1} parent=5 // pred_fallthru
      _
  $region6: #{bottleneck_forward.1} parent=0 // loop_footer
    %s18 = sadd.s32 1, %s14
  $region7: #{bottleneck_forward.1} parent=0 // loop_footer_branch
    %13 = sbr.rel target = $region3
  $region8: #{bottleneck_forward.1} parent=0 // loop_exit
    _

</llo_original>
